<compile_context>
chip_gen: v7x
topology: tpu7x:2x2x1
jax: 0.10.0
libtpu: 0.0.40
codegen_flags: <defaults>
</compile_context>

<pallas_src>
import functools

import jax
import jax.numpy as jnp
from jax.experimental import pallas as pl
from jax.experimental.pallas import tpu as pltpu

D_IN, D_HID, D_OUT = 512, 1024, 512
EPS = 1e-5


def encoder_kernel(x_ref, w1_ref, b1_ref, w2_ref, b2_ref, o_ref):
    # ---- Linear1 (+ folded BN1) + ReLU;  Dropout(eval) = identity ----
    h = jnp.dot(x_ref[...], w1_ref[...], preferred_element_type=jnp.float32)
    h = jnp.maximum(h + b1_ref[...], 0.0)

    # ---- Linear2 (+ folded BN2) + ReLU ----
    # h feeds the second matmul directly (no explicit VMEM scratch round-trip).
    y = jnp.dot(h.astype(jnp.bfloat16), w2_ref[...],
                preferred_element_type=jnp.float32)
    y = jnp.maximum(y + b2_ref[...], 0.0)
    o_ref[...] = y.astype(o_ref.dtype)


def fold_params(raw):
    """Fold BatchNorm running stats + affine (and Linear bias) into the
    weights:  w' = w * scale (per output column), b' = (b - mean)*scale + beta.
    Weights stored bf16 for the MXU; biases stay f32."""
    s1 = raw["g1"] / jnp.sqrt(raw["v1"] + EPS)          # (1, D_HID)
    s2 = raw["g2"] / jnp.sqrt(raw["v2"] + EPS)          # (1, D_OUT)
    return {
        "w1": (raw["w1"] * s1).astype(jnp.bfloat16),    # (D_IN, D_HID)
        "b1": ((raw["b1"] - raw["m1"]) * s1 + raw["be1"]).astype(jnp.float32),
        "w2": (raw["w2"] * s2).astype(jnp.bfloat16),    # (D_HID, D_OUT)
        "b2": ((raw["b2"] - raw["m2"]) * s2 + raw["be2"]).astype(jnp.float32),
    }


def _round_up(n, m):
    return ((n + m - 1) // m) * m


def _pick_tm(B):
    """Adaptive batch tile: >=2 grid steps whenever possible (v7x has 2
    TensorCores sharing the 'parallel' axis), capped at 512 rows (amortizes
    per-step overhead, M multiple of the 256-wide MXU, ~11 MiB/step VMEM with
    bf16 I/O -> fits the 32 MiB scoped limit on every generation)."""
    Bp = _round_up(B, 8)
    return max(8, min(512, _round_up(pl.cdiv(Bp, 2), 8)))


@functools.partial(jax.jit, static_argnames=("tm", "out_dtype"))
def encoder_forward(x, folded, *, tm=None, out_dtype=jnp.bfloat16):
    """x: (B, 512) -> (B, 512) in `out_dtype`, using pre-folded (bf16) params."""
    B = x.shape[0]
    if tm is None:
        tm = _pick_tm(B)
    n_blocks = pl.cdiv(B, tm)
    Bp = n_blocks * tm

    # bf16 input halves the HBM read traffic (kernel is HBM-bound on v6e/v7x).
    # NOTE: ideally the upstream producer already emits bf16 so this convert
    # fuses away instead of becoming a standalone XLA pass.
    x = x.astype(jnp.bfloat16)
    if Bp != B:
        # With the adaptive tm the pad is always small (< tm rows, and < 8 for
        # most batch sizes).  Pad rows compute ReLU(bias) garbage and are
        # sliced off below; nothing inside the kernel reduces over them.
        x = jnp.pad(x, ((0, Bp - B), (0, 0)))

    out_itemsize = jnp.dtype(out_dtype).itemsize
    cost = pl.CostEstimate(
        flops=2 * Bp * (D_IN * D_HID + D_HID * D_OUT),
        transcendentals=0,
        bytes_accessed=(Bp * D_IN * 2                      # x (bf16)
                        + Bp * D_OUT * out_itemsize        # out
                        + (D_IN * D_HID + D_HID * D_OUT) * 2   # weights (bf16)
                        + (D_HID + D_OUT) * 4),            # biases (f32)
    )

    const = lambda i: (0, 0)   # weights/biases fetched once, stay VMEM-resident
    out = pl.pallas_call(
        encoder_kernel,
        out_shape=jax.ShapeDtypeStruct((Bp, D_OUT), out_dtype),
        grid_spec=pltpu.PrefetchScalarGridSpec(
            num_scalar_prefetch=0,
            grid=(n_blocks,),
            in_specs=[
                pl.BlockSpec((tm, D_IN), lambda i: (i, 0)),   # x tile (pipelined)
                pl.BlockSpec((D_IN, D_HID), const),           # w1 (resident)
                pl.BlockSpec((1, D_HID), const),              # b1
                pl.BlockSpec((D_HID, D_OUT), const),          # w2
                pl.BlockSpec((1, D_OUT), const),              # b2
            ],
            out_specs=pl.BlockSpec((tm, D_OUT), lambda i: (i, 0)),
        ),
        compiler_params=pltpu.CompilerParams(
            dimension_semantics=("parallel",),
            vmem_limit_bytes=32 * 1024 * 1024,
        ),
        cost_estimate=cost,
    )(x, folded["w1"], folded["b1"], folded["w2"], folded["b2"])

    return out[:B]


def make_params(key):
    ks = jax.random.split(key, 12)
    return {
        # Linear 1  (stored as (in, out) = PyTorch weight.T)
        "w1": jax.random.normal(ks[0], (D_IN, D_HID), jnp.float32) * 0.02,
        "b1": jax.random.normal(ks[1], (1, D_HID), jnp.float32) * 0.01,
        # BatchNorm1d(1024) — non-trivial running stats / affine for testing
        "g1": 1.0 + 0.1 * jax.random.normal(ks[2], (1, D_HID), jnp.float32),
        "be1": 0.1 * jax.random.normal(ks[3], (1, D_HID), jnp.float32),
        "m1": 0.1 * jax.random.normal(ks[4], (1, D_HID), jnp.float32),
        "v1": jax.random.uniform(ks[5], (1, D_HID), jnp.float32, 0.5, 1.5),
        # Linear 2
        "w2": jax.random.normal(ks[6], (D_HID, D_OUT), jnp.float32) * 0.02,
        "b2": jax.random.normal(ks[7], (1, D_OUT), jnp.float32) * 0.01,
        # BatchNorm1d(512)
        "g2": 1.0 + 0.1 * jax.random.normal(ks[8], (1, D_OUT), jnp.float32),
        "be2": 0.1 * jax.random.normal(ks[9], (1, D_OUT), jnp.float32),
        "m2": 0.1 * jax.random.normal(ks[10], (1, D_OUT), jnp.float32),
        "v2": jax.random.uniform(ks[11], (1, D_OUT), jnp.float32, 0.5, 1.5),
    }


def reference_forward(x, p):
    """Pure-JAX f32 reference with un-folded params (PyTorch eval semantics)."""
    h = x @ p["w1"] + p["b1"]
    h = (h - p["m1"]) * (p["g1"] / jnp.sqrt(p["v1"] + EPS)) + p["be1"]
    h = jnp.maximum(h, 0.0)
    y = h @ p["w2"] + p["b2"]
    y = (y - p["m2"]) * (p["g2"] / jnp.sqrt(p["v2"] + EPS)) + p["be2"]
    return jnp.maximum(y, 0.0)


if __name__ == "__main__":
    key = jax.random.PRNGKey(0)
    kx1, kx2, kp = jax.random.split(key, 3)

    raw = make_params(kp)
    folded = fold_params(raw)

    # bf16 activations/weights loosen parity vs. the f32 PyTorch reference;
    # tolerance documented here.
    RTOL = ATOL = 3e-2

    # Small batch: adaptive tile -> tm=8, no wasted pad rows.
    B1 = 8
    x1 = jax.random.normal(kx1, (B1, D_IN), jnp.float32)
    out1 = jax.block_until_ready(encoder_forward(x1, folded))
    ref1 = reference_forward(x1, raw)
    assert out1.shape == (B1, D_OUT)
    assert jnp.allclose(out1.astype(jnp.float32), ref1, rtol=RTOL, atol=ATOL), \
        "B=8 mismatch"

    # Ragged batch: adaptive tile -> tm=152, 2 grid steps (both v7x TCs busy),
    # only 4 pad rows.
    B2 = 300
    x2 = jax.random.normal(kx2, (B2, D_IN), jnp.float32)
    out2 = jax.block_until_ready(encoder_forward(x2, folded))
    ref2 = reference_forward(x2, raw)
    assert out2.shape == (B2, D_OUT)
    assert jnp.allclose(out2.astype(jnp.float32), ref2, rtol=RTOL, atol=ATOL), \
        "B=300 mismatch"

    print("KERNEL_OK")
</pallas_src>

<mosaic_0001>
module attributes {stable_mosaic.version = 11 : i64} {
  func.func @encoder_kernel(%arg0: i32, %arg1: memref<8x512xbf16, #tpu.memory_space<vmem>>, %arg2: memref<512x1024xbf16, #tpu.memory_space<vmem>>, %arg3: memref<1x1024xf32, #tpu.memory_space<vmem>>, %arg4: memref<1024x512xbf16, #tpu.memory_space<vmem>>, %arg5: memref<1x512xf32, #tpu.memory_space<vmem>>, %arg6: memref<8x512xbf16, #tpu.memory_space<vmem>>) attributes {dimension_semantics = [#tpu.dimension_semantics<parallel>], iteration_bounds = array<i64: 1>, scalar_prefetch = 0 : i64, scratch_operands = 0 : i64, tpu.core_type = #tpu.core_type<tc>, window_params = [{transform_indices = @transform_0, window_bounds = array<i64: 8, 512>}, {pipeline_mode = #tpu.pipeline_mode<synchronous>, transform_indices = @transform_1, window_bounds = array<i64: 512, 1024>}, {pipeline_mode = #tpu.pipeline_mode<synchronous>, transform_indices = @transform_2, window_bounds = array<i64: 1, 1024>}, {pipeline_mode = #tpu.pipeline_mode<synchronous>, transform_indices = @transform_3, window_bounds = array<i64: 1024, 512>}, {pipeline_mode = #tpu.pipeline_mode<synchronous>, transform_indices = @transform_4, window_bounds = array<i64: 1, 512>}, {transform_indices = @transform_5, window_bounds = array<i64: 8, 512>}]} {
    %c0 = arith.constant 0 : index
    %c0_0 = arith.constant 0 : index
    %0 = vector.load %arg1[%c0, %c0_0] : memref<8x512xbf16, #tpu.memory_space<vmem>>, vector<8x512xbf16>
    %c0_1 = arith.constant 0 : index
    %c0_2 = arith.constant 0 : index
    %1 = vector.load %arg2[%c0_1, %c0_2] : memref<512x1024xbf16, #tpu.memory_space<vmem>>, vector<512x1024xbf16>
    %cst = arith.constant dense<0.000000e+00> : vector<8x1024xf32>
    %2 = tpu.matmul %0, %1, %cst {dimension_numbers = #tpu.dot_dimension_numbers<[1], [0], [0], [1], [0, 0, 1, 1], [], []>} : vector<8x512xbf16>, vector<512x1024xbf16>, vector<8x1024xf32> -> vector<8x1024xf32>
    %c0_3 = arith.constant 0 : index
    %c0_4 = arith.constant 0 : index
    %3 = vector.load %arg3[%c0_3, %c0_4] : memref<1x1024xf32, #tpu.memory_space<vmem>>, vector<1x1024xf32>
    %4 = vector.broadcast %3 : vector<1x1024xf32> to vector<8x1024xf32>
    %5 = arith.addf %2, %4 : vector<8x1024xf32>
    %cst_5 = arith.constant 0.000000e+00 : f32
    %6 = vector.broadcast %cst_5 : f32 to vector<8x1024xf32>
    %7 = arith.maximumf %5, %6 : vector<8x1024xf32>
    %8 = arith.truncf %7 : vector<8x1024xf32> to vector<8x1024xbf16>
    %c0_6 = arith.constant 0 : index
    %c0_7 = arith.constant 0 : index
    %9 = vector.load %arg4[%c0_6, %c0_7] : memref<1024x512xbf16, #tpu.memory_space<vmem>>, vector<1024x512xbf16>
    %cst_8 = arith.constant dense<0.000000e+00> : vector<8x512xf32>
    %10 = tpu.matmul %8, %9, %cst_8 {dimension_numbers = #tpu.dot_dimension_numbers<[1], [0], [0], [1], [0, 0, 1, 1], [], []>} : vector<8x1024xbf16>, vector<1024x512xbf16>, vector<8x512xf32> -> vector<8x512xf32>
    %c0_9 = arith.constant 0 : index
    %c0_10 = arith.constant 0 : index
    %11 = vector.load %arg5[%c0_9, %c0_10] : memref<1x512xf32, #tpu.memory_space<vmem>>, vector<1x512xf32>
    %12 = vector.broadcast %11 : vector<1x512xf32> to vector<8x512xf32>
    %13 = arith.addf %10, %12 : vector<8x512xf32>
    %cst_11 = arith.constant 0.000000e+00 : f32
    %14 = vector.broadcast %cst_11 : f32 to vector<8x512xf32>
    %15 = arith.maximumf %13, %14 : vector<8x512xf32>
    %16 = arith.truncf %15 : vector<8x512xf32> to vector<8x512xbf16>
    %c0_12 = arith.constant 0 : index
    %c0_13 = arith.constant 0 : index
    %17 = vector.load %arg6[%c0_12, %c0_13] : memref<8x512xbf16, #tpu.memory_space<vmem>>, vector<8x512xbf16>
    tpu.vector_store %arg6[%c0_12, %c0_13], %16 {strides = array<i32>} : memref<8x512xbf16, #tpu.memory_space<vmem>>, vector<8x512xbf16>,
    return
  }
  func.func @transform_0(%arg0: i32) -> (i32, i32) {
    %c0_i32 = arith.constant 0 : i32
    %c0_i32_0 = arith.constant 0 : i32
    return %arg0, %c0_i32 : i32, i32
  }
  func.func @transform_1(%arg0: i32) -> (i32, i32) {
    %c0_i32 = arith.constant 0 : i32
    %c0_i32_0 = arith.constant 0 : i32
    %c0_i32_1 = arith.constant 0 : i32
    return %c0_i32, %c0_i32_0 : i32, i32
  }
  func.func @transform_2(%arg0: i32) -> (i32, i32) {
    %c0_i32 = arith.constant 0 : i32
    %c0_i32_0 = arith.constant 0 : i32
    %c0_i32_1 = arith.constant 0 : i32
    return %c0_i32, %c0_i32_0 : i32, i32
  }
  func.func @transform_3(%arg0: i32) -> (i32, i32) {
    %c0_i32 = arith.constant 0 : i32
    %c0_i32_0 = arith.constant 0 : i32
    %c0_i32_1 = arith.constant 0 : i32
    return %c0_i32, %c0_i32_0 : i32, i32
  }
  func.func @transform_4(%arg0: i32) -> (i32, i32) {
    %c0_i32 = arith.constant 0 : i32
    %c0_i32_0 = arith.constant 0 : i32
    %c0_i32_1 = arith.constant 0 : i32
    return %c0_i32, %c0_i32_0 : i32, i32
  }
  func.func @transform_5(%arg0: i32) -> (i32, i32) {
    %c0_i32 = arith.constant 0 : i32
    %c0_i32_0 = arith.constant 0 : i32
    return %arg0, %c0_i32 : i32, i32
  }
}

</mosaic_0001>

<llo_original>
// kernel: encoder_forward.1
$region0: #{encoder_forward.1}
  #allocation0 [shape = 'u32[]', space=smem, size = 0x4, offset = 0x4, fixed_abs, tag = 'smem constant byte address 0x4 - core index']
  #allocation1 [shape = 'u32[144,128]{1,0:T(1,128)}', space=vmem, size = 0x12000, scoped, tag = 'internal scratch']
  %s0 = inlined_call_operand.vmem [shape: bf16[8,512], index: 0, kind: input, shape index: {}]
  %s1 = inlined_call_operand.hbm [shape: bf16[512,1024], index: 1, kind: input, shape index: {}]
  %s2 = inlined_call_operand.vmem [shape: f32[1,1024], index: 2, kind: input, shape index: {}]
  %s3 = inlined_call_operand.hbm [shape: bf16[1024,512], index: 3, kind: input, shape index: {}]
  %s4 = inlined_call_operand.vmem [shape: f32[1,512], index: 4, kind: input, shape index: {}]
  %s5 = inlined_call_operand.hbm [shape: bf16[8,512], index: 5, kind: output, shape index: {}]
  %s6 = sld [smem:[#allocation0]]
  $region38: #{encoder_forward.1} parent=0
    _
  %s8 = ssub.s32 1, %s6
  %s9 = scalar_select 0, %s8, %s6
  $region1: #{encoder_forward.1} parent=0
    #allocation2 [shape = 'u8[1048576]{0}', space=vmem, size = 0x100000, scoped, tag = 'input window, operand 1, single buffered']
    #allocation3 [shape = 's32[1]{0}', space=sflag, size = 0x4, scoped, tag = 'scoped memory for encoder_forward.1']
    #allocation4 [shape = 's32[1]{0}', space=sflag, size = 0x4, scoped, tag = 'scoped memory for encoder_forward.1']
    #allocation5 [shape = 'u8[1048576]{0}', space=vmem, size = 0x100000, scoped, tag = 'input window, operand 3, single buffered']
    #allocation6 [shape = 's32[1]{0}', space=sflag, size = 0x4, scoped, tag = 'scoped memory for encoder_forward.1']
    #allocation7 [shape = 'u8[8192]{0}', space=vmem, size = 0x2000, scoped, tag = 'output window, operand 0, single buffered']
    %10 = vsyncpa [#allocation3], 0
    %11 = vsyncpa [#allocation6], 0
    %12 = vsyncpa [#allocation4], 0
    // Predicated region
    $region2: #{encoder_forward.1} parent=1 // pred_check
      _
    $region3: #{encoder_forward.1} parent=1 // pred_check_branch
      %14 = sbr.rel (0) target = $region5
    $region4: #{encoder_forward.1} parent=1 // pred_region
      _
    $region5: #{encoder_forward.1} parent=1 // pred_fallthru
      _
    // Predicated region
    $region6: #{encoder_forward.1} parent=1 // pred_check
      _
    $region7: #{encoder_forward.1} parent=1 // pred_check_branch
      %16 = sbr.rel (0) target = $region9
    $region8: #{encoder_forward.1} parent=1 // pred_region
      %s18 = ssub.s32 32768, 32768
      %19 = vsyncadd [#allocation3], %s18
      %s20 = sshll.u32 [#allocation2], 4
      %s21 = int_to_ptr.vmem [resolvable:$true] %s20
      %26 = dma.hbm_to_vmem [thread:$0]  %s1, 32768, %s21, [#allocation3], 512, 512, 32
    $region9: #{encoder_forward.1} parent=1 // pred_fallthru
      _
    // Predicated region
    $region10: #{encoder_forward.1} parent=1 // pred_check
      _
    $region11: #{encoder_forward.1} parent=1 // pred_check_branch
      %28 = sbr.rel (0) target = $region13
    $region12: #{encoder_forward.1} parent=1 // pred_region
      _
    $region13: #{encoder_forward.1} parent=1 // pred_fallthru
      _
    // Predicated region
    $region14: #{encoder_forward.1} parent=1 // pred_check
      _
    $region15: #{encoder_forward.1} parent=1 // pred_check_branch
      %30 = sbr.rel (0) target = $region17
    $region16: #{encoder_forward.1} parent=1 // pred_region
      %s32 = ssub.s32 32768, 32768
      %33 = vsyncadd [#allocation6], %s32
      %s34 = sshll.u32 [#allocation5], 4
      %s35 = int_to_ptr.vmem [resolvable:$true] %s34
      %40 = dma.hbm_to_vmem [thread:$0]  %s3, 32768, %s35, [#allocation6], 256, 256, 16
    $region17: #{encoder_forward.1} parent=1 // pred_fallthru
      _
    // Predicated region
    $region18: #{encoder_forward.1} parent=1 // pred_check
      _
    $region19: #{encoder_forward.1} parent=1 // pred_check_branch
      %42 = sbr.rel (0) target = $region21
    $region20: #{encoder_forward.1} parent=1 // pred_region
      _
    $region21: #{encoder_forward.1} parent=1 // pred_fallthru
      _
    // Predicated region
    $region22: #{encoder_forward.1} parent=1 // pred_check
      _
    $region23: #{encoder_forward.1} parent=1 // pred_check_branch
      %44 = sbr.rel (0) target = $region25
    $region24: #{encoder_forward.1} parent=1 // pred_region
      %45 = dma.done [#allocation3], 32768
    $region25: #{encoder_forward.1} parent=1 // pred_fallthru
      _
    // Predicated region
    $region26: #{encoder_forward.1} parent=1 // pred_check
      _
    $region27: #{encoder_forward.1} parent=1 // pred_check_branch
      %47 = sbr.rel (0) target = $region29
    $region28: #{encoder_forward.1} parent=1 // pred_region
      %48 = dma.done [#allocation6], 32768
    $region29: #{encoder_forward.1} parent=1 // pred_fallthru
      _
    %v49 = vld [vmem:[%s0] sm:$0xff]
    %v50 = vld [vmem:[%s0 + $0x8] sm:$0xff]
    %v51 = vld [vmem:[#allocation2] sm:$0xff]
    %v52 = vld [vmem:[#allocation2 + $0x8] sm:$0xff]
    %v53 = vld [vmem:[#allocation2 + $0x10] sm:$0xff]
    %v54 = vld [vmem:[#allocation2 + $0x18] sm:$0xff]
    %v55 = vld [vmem:[#allocation2 + $0x20] sm:$0xff]
    %v56 = vld [vmem:[#allocation2 + $0x28] sm:$0xff]
    %v57 = vld [vmem:[#allocation2 + $0x30] sm:$0xff]
    %v58 = vld [vmem:[#allocation2 + $0x38] sm:$0xff]
    %v59 = vld [vmem:[#allocation2 + $0x40] sm:$0xff]
    %v60 = vld [vmem:[#allocation2 + $0x48] sm:$0xff]
    %v61 = vld [vmem:[#allocation2 + $0x50] sm:$0xff]
    %v62 = vld [vmem:[#allocation2 + $0x58] sm:$0xff]
    %v63 = vld [vmem:[#allocation2 + $0x60] sm:$0xff]
    %v64 = vld [vmem:[#allocation2 + $0x68] sm:$0xff]
    %v65 = vld [vmem:[#allocation2 + $0x70] sm:$0xff]
    %v66 = vld [vmem:[#allocation2 + $0x78] sm:$0xff]
    %v67 = vld [vmem:[#allocation2 + $0x80] sm:$0xff]
    %v68 = vld [vmem:[#allocation2 + $0x88] sm:$0xff]
    %v69 = vld [vmem:[#allocation2 + $0x90] sm:$0xff]
    %v70 = vld [vmem:[#allocation2 + $0x98] sm:$0xff]
    %v71 = vld [vmem:[#allocation2 + $0xa0] sm:$0xff]
    %v72 = vld [vmem:[#allocation2 + $0xa8] sm:$0xff]
    %v73 = vld [vmem:[#allocation2 + $0xb0] sm:$0xff]
    %v74 = vld [vmem:[#allocation2 + $0xb8] sm:$0xff]
    %v75 = vld [vmem:[#allocation2 + $0xc0] sm:$0xff]
    %v76 = vld [vmem:[#allocation2 + $0xc8] sm:$0xff]
    %v77 = vld [vmem:[#allocation2 + $0xd0] sm:$0xff]
    %v78 = vld [vmem:[#allocation2 + $0xd8] sm:$0xff]
    %v79 = vld [vmem:[#allocation2 + $0xe0] sm:$0xff]
    %v80 = vld [vmem:[#allocation2 + $0xe8] sm:$0xff]
    %v81 = vld [vmem:[#allocation2 + $0xf0] sm:$0xff]
    %v82 = vld [vmem:[#allocation2 + $0xf8] sm:$0xff]
    %v83 = vld [vmem:[#allocation2 + $0x100] sm:$0xff]
    %v84 = vld [vmem:[#allocation2 + $0x108] sm:$0xff]
    %v85 = vld [vmem:[#allocation2 + $0x110] sm:$0xff]
    %v86 = vld [vmem:[#allocation2 + $0x118] sm:$0xff]
    %v87 = vld [vmem:[#allocation2 + $0x120] sm:$0xff]
    %v88 = vld [vmem:[#allocation2 + $0x128] sm:$0xff]
    %v89 = vld [vmem:[#allocation2 + $0x130] sm:$0xff]
    %v90 = vld [vmem:[#allocation2 + $0x138] sm:$0xff]
    %v91 = vld [vmem:[#allocation2 + $0x140] sm:$0xff]
    %v92 = vld [vmem:[#allocation2 + $0x148] sm:$0xff]
    %v93 = vld [vmem:[#allocation2 + $0x150] sm:$0xff]
    %v94 = vld [vmem:[#allocation2 + $0x158] sm:$0xff]
    %v95 = vld [vmem:[#allocation2 + $0x160] sm:$0xff]
    %v96 = vld [vmem:[#allocation2 + $0x168] sm:$0xff]
    %v97 = vld [vmem:[#allocation2 + $0x170] sm:$0xff]
    %v98 = vld [vmem:[#allocation2 + $0x178] sm:$0xff]
    %v99 = vld [vmem:[#allocation2 + $0x180] sm:$0xff]
    %v100 = vld [vmem:[#allocation2 + $0x188] sm:$0xff]
    %v101 = vld [vmem:[#allocation2 + $0x190] sm:$0xff]
    %v102 = vld [vmem:[#allocation2 + $0x198] sm:$0xff]
    %v103 = vld [vmem:[#allocation2 + $0x1a0] sm:$0xff]
    %v104 = vld [vmem:[#allocation2 + $0x1a8] sm:$0xff]
    %v105 = vld [vmem:[#allocation2 + $0x1b0] sm:$0xff]
    %v106 = vld [vmem:[#allocation2 + $0x1b8] sm:$0xff]
    %v107 = vld [vmem:[#allocation2 + $0x1c0] sm:$0xff]
    %v108 = vld [vmem:[#allocation2 + $0x1c8] sm:$0xff]
    %v109 = vld [vmem:[#allocation2 + $0x1d0] sm:$0xff]
    %v110 = vld [vmem:[#allocation2 + $0x1d8] sm:$0xff]
    %v111 = vld [vmem:[#allocation2 + $0x1e0] sm:$0xff]
    %v112 = vld [vmem:[#allocation2 + $0x1e8] sm:$0xff]
    %v113 = vld [vmem:[#allocation2 + $0x1f0] sm:$0xff]
    %v114 = vld [vmem:[#allocation2 + $0x1f8] sm:$0xff]
    %v115 = vld [vmem:[#allocation2 + $0x200] sm:$0xff]
    %v116 = vld [vmem:[#allocation2 + $0x208] sm:$0xff]
    %v117 = vld [vmem:[#allocation2 + $0x210] sm:$0xff]
    %v118 = vld [vmem:[#allocation2 + $0x218] sm:$0xff]
    %v119 = vld [vmem:[#allocation2 + $0x220] sm:$0xff]
    %v120 = vld [vmem:[#allocation2 + $0x228] sm:$0xff]
    %v121 = vld [vmem:[#allocation2 + $0x230] sm:$0xff]
    %v122 = vld [vmem:[#allocation2 + $0x238] sm:$0xff]
    %v123 = vld [vmem:[#allocation2 + $0x240] sm:$0xff]
    %v124 = vld [vmem:[#allocation2 + $0x248] sm:$0xff]
    %v125 = vld [vmem:[#allocation2 + $0x250] sm:$0xff]
    %v126 = vld [vmem:[#allocation2 + $0x258] sm:$0xff]
    %v127 = vld [vmem:[#allocation2 + $0x260] sm:$0xff]
    %v128 = vld [vmem:[#allocation2 + $0x268] sm:$0xff]
    %v129 = vld [vmem:[#allocation2 + $0x270] sm:$0xff]
    %v130 = vld [vmem:[#allocation2 + $0x278] sm:$0xff]
    %v131 = vld [vmem:[#allocation2 + $0x280] sm:$0xff]
    %v132 = vld [vmem:[#allocation2 + $0x288] sm:$0xff]
    %v133 = vld [vmem:[#allocation2 + $0x290] sm:$0xff]
    %v134 = vld [vmem:[#allocation2 + $0x298] sm:$0xff]
    %v135 = vld [vmem:[#allocation2 + $0x2a0] sm:$0xff]
    %v136 = vld [vmem:[#allocation2 + $0x2a8] sm:$0xff]
    %v137 = vld [vmem:[#allocation2 + $0x2b0] sm:$0xff]
    %v138 = vld [vmem:[#allocation2 + $0x2b8] sm:$0xff]
    %v139 = vld [vmem:[#allocation2 + $0x2c0] sm:$0xff]
    %v140 = vld [vmem:[#allocation2 + $0x2c8] sm:$0xff]
    %v141 = vld [vmem:[#allocation2 + $0x2d0] sm:$0xff]
    %v142 = vld [vmem:[#allocation2 + $0x2d8] sm:$0xff]
    %v143 = vld [vmem:[#allocation2 + $0x2e0] sm:$0xff]
    %v144 = vld [vmem:[#allocation2 + $0x2e8] sm:$0xff]
    %v145 = vld [vmem:[#allocation2 + $0x2f0] sm:$0xff]
    %v146 = vld [vmem:[#allocation2 + $0x2f8] sm:$0xff]
    %v147 = vld [vmem:[#allocation2 + $0x300] sm:$0xff]
    %v148 = vld [vmem:[#allocation2 + $0x308] sm:$0xff]
    %v149 = vld [vmem:[#allocation2 + $0x310] sm:$0xff]
    %v150 = vld [vmem:[#allocation2 + $0x318] sm:$0xff]
    %v151 = vld [vmem:[#allocation2 + $0x320] sm:$0xff]
    %v152 = vld [vmem:[#allocation2 + $0x328] sm:$0xff]
    %v153 = vld [vmem:[#allocation2 + $0x330] sm:$0xff]
    %v154 = vld [vmem:[#allocation2 + $0x338] sm:$0xff]
    %v155 = vld [vmem:[#allocation2 + $0x340] sm:$0xff]
    %v156 = vld [vmem:[#allocation2 + $0x348] sm:$0xff]
    %v157 = vld [vmem:[#allocation2 + $0x350] sm:$0xff]
    %v158 = vld [vmem:[#allocation2 + $0x358] sm:$0xff]
    %v159 = vld [vmem:[#allocation2 + $0x360] sm:$0xff]
    %v160 = vld [vmem:[#allocation2 + $0x368] sm:$0xff]
    %v161 = vld [vmem:[#allocation2 + $0x370] sm:$0xff]
    %v162 = vld [vmem:[#allocation2 + $0x378] sm:$0xff]
    %v163 = vld [vmem:[#allocation2 + $0x380] sm:$0xff]
    %v164 = vld [vmem:[#allocation2 + $0x388] sm:$0xff]
    %v165 = vld [vmem:[#allocation2 + $0x390] sm:$0xff]
    %v166 = vld [vmem:[#allocation2 + $0x398] sm:$0xff]
    %v167 = vld [vmem:[#allocation2 + $0x3a0] sm:$0xff]
    %v168 = vld [vmem:[#allocation2 + $0x3a8] sm:$0xff]
    %v169 = vld [vmem:[#allocation2 + $0x3b0] sm:$0xff]
    %v170 = vld [vmem:[#allocation2 + $0x3b8] sm:$0xff]
    %v171 = vld [vmem:[#allocation2 + $0x3c0] sm:$0xff]
    %v172 = vld [vmem:[#allocation2 + $0x3c8] sm:$0xff]
    %v173 = vld [vmem:[#allocation2 + $0x3d0] sm:$0xff]
    %v174 = vld [vmem:[#allocation2 + $0x3d8] sm:$0xff]
    %v175 = vld [vmem:[#allocation2 + $0x3e0] sm:$0xff]
    %v176 = vld [vmem:[#allocation2 + $0x3e8] sm:$0xff]
    %v177 = vld [vmem:[#allocation2 + $0x3f0] sm:$0xff]
    %v178 = vld [vmem:[#allocation2 + $0x3f8] sm:$0xff]
    %v179 = vld [vmem:[#allocation2 + $0x400] sm:$0xff]
    %v180 = vld [vmem:[#allocation2 + $0x408] sm:$0xff]
    %v181 = vld [vmem:[#allocation2 + $0x410] sm:$0xff]
    %v182 = vld [vmem:[#allocation2 + $0x418] sm:$0xff]
    %v183 = vld [vmem:[#allocation2 + $0x420] sm:$0xff]
    %v184 = vld [vmem:[#allocation2 + $0x428] sm:$0xff]
    %v185 = vld [vmem:[#allocation2 + $0x430] sm:$0xff]
    %v186 = vld [vmem:[#allocation2 + $0x438] sm:$0xff]
    %v187 = vld [vmem:[#allocation2 + $0x440] sm:$0xff]
    %v188 = vld [vmem:[#allocation2 + $0x448] sm:$0xff]
    %v189 = vld [vmem:[#allocation2 + $0x450] sm:$0xff]
    %v190 = vld [vmem:[#allocation2 + $0x458] sm:$0xff]
    %v191 = vld [vmem:[#allocation2 + $0x460] sm:$0xff]
    %v192 = vld [vmem:[#allocation2 + $0x468] sm:$0xff]
    %v193 = vld [vmem:[#allocation2 + $0x470] sm:$0xff]
    %v194 = vld [vmem:[#allocation2 + $0x478] sm:$0xff]
    %v195 = vld [vmem:[#allocation2 + $0x480] sm:$0xff]
    %v196 = vld [vmem:[#allocation2 + $0x488] sm:$0xff]
    %v197 = vld [vmem:[#allocation2 + $0x490] sm:$0xff]
    %v198 = vld [vmem:[#allocation2 + $0x498] sm:$0xff]
    %v199 = vld [vmem:[#allocation2 + $0x4a0] sm:$0xff]
    %v200 = vld [vmem:[#allocation2 + $0x4a8] sm:$0xff]
    %v201 = vld [vmem:[#allocation2 + $0x4b0] sm:$0xff]
    %v202 = vld [vmem:[#allocation2 + $0x4b8] sm:$0xff]
    %v203 = vld [vmem:[#allocation2 + $0x4c0] sm:$0xff]
    %v204 = vld [vmem:[#allocation2 + $0x4c8] sm:$0xff]
    %v205 = vld [vmem:[#allocation2 + $0x4d0] sm:$0xff]
    %v206 = vld [vmem:[#allocation2 + $0x4d8] sm:$0xff]
    %v207 = vld [vmem:[#allocation2 + $0x4e0] sm:$0xff]
    %v208 = vld [vmem:[#allocation2 + $0x4e8] sm:$0xff]
    %v209 = vld [vmem:[#allocation2 + $0x4f0] sm:$0xff]
    %v210 = vld [vmem:[#allocation2 + $0x4f8] sm:$0xff]
    %v211 = vld [vmem:[#allocation2 + $0x500] sm:$0xff]
    %v212 = vld [vmem:[#allocation2 + $0x508] sm:$0xff]
    %v213 = vld [vmem:[#allocation2 + $0x510] sm:$0xff]
    %v214 = vld [vmem:[#allocation2 + $0x518] sm:$0xff]
    %v215 = vld [vmem:[#allocation2 + $0x520] sm:$0xff]
    %v216 = vld [vmem:[#allocation2 + $0x528] sm:$0xff]
    %v217 = vld [vmem:[#allocation2 + $0x530] sm:$0xff]
    %v218 = vld [vmem:[#allocation2 + $0x538] sm:$0xff]
    %v219 = vld [vmem:[#allocation2 + $0x540] sm:$0xff]
    %v220 = vld [vmem:[#allocation2 + $0x548] sm:$0xff]
    %v221 = vld [vmem:[#allocation2 + $0x550] sm:$0xff]
    %v222 = vld [vmem:[#allocation2 + $0x558] sm:$0xff]
    %v223 = vld [vmem:[#allocation2 + $0x560] sm:$0xff]
    %v224 = vld [vmem:[#allocation2 + $0x568] sm:$0xff]
    %v225 = vld [vmem:[#allocation2 + $0x570] sm:$0xff]
    %v226 = vld [vmem:[#allocation2 + $0x578] sm:$0xff]
    %v227 = vld [vmem:[#allocation2 + $0x580] sm:$0xff]
    %v228 = vld [vmem:[#allocation2 + $0x588] sm:$0xff]
    %v229 = vld [vmem:[#allocation2 + $0x590] sm:$0xff]
    %v230 = vld [vmem:[#allocation2 + $0x598] sm:$0xff]
    %v231 = vld [vmem:[#allocation2 + $0x5a0] sm:$0xff]
    %v232 = vld [vmem:[#allocation2 + $0x5a8] sm:$0xff]
    %v233 = vld [vmem:[#allocation2 + $0x5b0] sm:$0xff]
    %v234 = vld [vmem:[#allocation2 + $0x5b8] sm:$0xff]
    %v235 = vld [vmem:[#allocation2 + $0x5c0] sm:$0xff]
    %v236 = vld [vmem:[#allocation2 + $0x5c8] sm:$0xff]
    %v237 = vld [vmem:[#allocation2 + $0x5d0] sm:$0xff]
    %v238 = vld [vmem:[#allocation2 + $0x5d8] sm:$0xff]
    %v239 = vld [vmem:[#allocation2 + $0x5e0] sm:$0xff]
    %v240 = vld [vmem:[#allocation2 + $0x5e8] sm:$0xff]
    %v241 = vld [vmem:[#allocation2 + $0x5f0] sm:$0xff]
    %v242 = vld [vmem:[#allocation2 + $0x5f8] sm:$0xff]
    %v243 = vld [vmem:[#allocation2 + $0x600] sm:$0xff]
    %v244 = vld [vmem:[#allocation2 + $0x608] sm:$0xff]
    %v245 = vld [vmem:[#allocation2 + $0x610] sm:$0xff]
    %v246 = vld [vmem:[#allocation2 + $0x618] sm:$0xff]
    %v247 = vld [vmem:[#allocation2 + $0x620] sm:$0xff]
    %v248 = vld [vmem:[#allocation2 + $0x628] sm:$0xff]
    %v249 = vld [vmem:[#allocation2 + $0x630] sm:$0xff]
    %v250 = vld [vmem:[#allocation2 + $0x638] sm:$0xff]
    %v251 = vld [vmem:[#allocation2 + $0x640] sm:$0xff]
    %v252 = vld [vmem:[#allocation2 + $0x648] sm:$0xff]
    %v253 = vld [vmem:[#allocation2 + $0x650] sm:$0xff]
    %v254 = vld [vmem:[#allocation2 + $0x658] sm:$0xff]
    %v255 = vld [vmem:[#allocation2 + $0x660] sm:$0xff]
    %v256 = vld [vmem:[#allocation2 + $0x668] sm:$0xff]
    %v257 = vld [vmem:[#allocation2 + $0x670] sm:$0xff]
    %v258 = vld [vmem:[#allocation2 + $0x678] sm:$0xff]
    %v259 = vld [vmem:[#allocation2 + $0x680] sm:$0xff]
    %v260 = vld [vmem:[#allocation2 + $0x688] sm:$0xff]
    %v261 = vld [vmem:[#allocation2 + $0x690] sm:$0xff]
    %v262 = vld [vmem:[#allocation2 + $0x698] sm:$0xff]
    %v263 = vld [vmem:[#allocation2 + $0x6a0] sm:$0xff]
    %v264 = vld [vmem:[#allocation2 + $0x6a8] sm:$0xff]
    %v265 = vld [vmem:[#allocation2 + $0x6b0] sm:$0xff]
    %v266 = vld [vmem:[#allocation2 + $0x6b8] sm:$0xff]
    %v267 = vld [vmem:[#allocation2 + $0x6c0] sm:$0xff]
    %v268 = vld [vmem:[#allocation2 + $0x6c8] sm:$0xff]
    %v269 = vld [vmem:[#allocation2 + $0x6d0] sm:$0xff]
    %v270 = vld [vmem:[#allocation2 + $0x6d8] sm:$0xff]
    %v271 = vld [vmem:[#allocation2 + $0x6e0] sm:$0xff]
    %v272 = vld [vmem:[#allocation2 + $0x6e8] sm:$0xff]
    %v273 = vld [vmem:[#allocation2 + $0x6f0] sm:$0xff]
    %v274 = vld [vmem:[#allocation2 + $0x6f8] sm:$0xff]
    %v275 = vld [vmem:[#allocation2 + $0x700] sm:$0xff]
    %v276 = vld [vmem:[#allocation2 + $0x708] sm:$0xff]
    %v277 = vld [vmem:[#allocation2 + $0x710] sm:$0xff]
    %v278 = vld [vmem:[#allocation2 + $0x718] sm:$0xff]
    %v279 = vld [vmem:[#allocation2 + $0x720] sm:$0xff]
    %v280 = vld [vmem:[#allocation2 + $0x728] sm:$0xff]
    %v281 = vld [vmem:[#allocation2 + $0x730] sm:$0xff]
    %v282 = vld [vmem:[#allocation2 + $0x738] sm:$0xff]
    %v283 = vld [vmem:[#allocation2 + $0x740] sm:$0xff]
    %v284 = vld [vmem:[#allocation2 + $0x748] sm:$0xff]
    %v285 = vld [vmem:[#allocation2 + $0x750] sm:$0xff]
    %v286 = vld [vmem:[#allocation2 + $0x758] sm:$0xff]
    %v287 = vld [vmem:[#allocation2 + $0x760] sm:$0xff]
    %v288 = vld [vmem:[#allocation2 + $0x768] sm:$0xff]
    %v289 = vld [vmem:[#allocation2 + $0x770] sm:$0xff]
    %v290 = vld [vmem:[#allocation2 + $0x778] sm:$0xff]
    %v291 = vld [vmem:[#allocation2 + $0x780] sm:$0xff]
    %v292 = vld [vmem:[#allocation2 + $0x788] sm:$0xff]
    %v293 = vld [vmem:[#allocation2 + $0x790] sm:$0xff]
    %v294 = vld [vmem:[#allocation2 + $0x798] sm:$0xff]
    %v295 = vld [vmem:[#allocation2 + $0x7a0] sm:$0xff]
    %v296 = vld [vmem:[#allocation2 + $0x7a8] sm:$0xff]
    %v297 = vld [vmem:[#allocation2 + $0x7b0] sm:$0xff]
    %v298 = vld [vmem:[#allocation2 + $0x7b8] sm:$0xff]
    %v299 = vld [vmem:[#allocation2 + $0x7c0] sm:$0xff]
    %v300 = vld [vmem:[#allocation2 + $0x7c8] sm:$0xff]
    %v301 = vld [vmem:[#allocation2 + $0x7d0] sm:$0xff]
    %v302 = vld [vmem:[#allocation2 + $0x7d8] sm:$0xff]
    %v303 = vld [vmem:[#allocation2 + $0x7e0] sm:$0xff]
    %v304 = vld [vmem:[#allocation2 + $0x7e8] sm:$0xff]
    %v305 = vld [vmem:[#allocation2 + $0x7f0] sm:$0xff]
    %v306 = vld [vmem:[#allocation2 + $0x7f8] sm:$0xff]
    %v307 = vld [vmem:[%s2] sm:$0xff]
    %v309 = vlaneseq
    %v310 = vshrl.u32 %v309, 7
    %v311 = vsub.s32 0, %v310
    %v312 = vrot.slane %v307, %v311
    %v313 = vlaneseq
    %v314 = vshrl.u32 %v313, 7
    %v315 = vsub.s32 1, %v314
    %v316 = vrot.slane %v307, %v315
    %v317 = vlaneseq
    %v318 = vshrl.u32 %v317, 7
    %v319 = vsub.s32 2, %v318
    %v320 = vrot.slane %v307, %v319
    %v321 = vlaneseq
    %v322 = vshrl.u32 %v321, 7
    %v323 = vsub.s32 3, %v322
    %v324 = vrot.slane %v307, %v323
    %v325 = vlaneseq
    %v326 = vshrl.u32 %v325, 7
    %v327 = vsub.s32 4, %v326
    %v328 = vrot.slane %v307, %v327
    %v329 = vlaneseq
    %v330 = vshrl.u32 %v329, 7
    %v331 = vsub.s32 5, %v330
    %v332 = vrot.slane %v307, %v331
    %v333 = vlaneseq
    %v334 = vshrl.u32 %v333, 7
    %v335 = vsub.s32 6, %v334
    %v336 = vrot.slane %v307, %v335
    %v337 = vlaneseq
    %v338 = vshrl.u32 %v337, 7
    %v339 = vsub.s32 7, %v338
    %v340 = vrot.slane %v307, %v339
    %v351 = vunpack.c.l.b16 %v49
    %v352 = vunpack.c.h.b16 %v49
    %v353 = vunpack.c.l.b16 %v50
    %v354 = vunpack.c.h.b16 %v50
    %v355 = vpack.c.b16 %v351, %v351
    %v356 = vpack.c.b16 %v352, %v352
    %v357 = vpack.c.b16 %v353, %v353
    %v358 = vpack.c.b16 %v354, %v354
    %v619 = vunpack.c.l.b16 %v51
    %v620 = vunpack.c.h.b16 %v51
    %v621 = vunpack.c.l.b16 %v52
    %v622 = vunpack.c.h.b16 %v52
    %v623 = vunpack.c.l.b16 %v53
    %v624 = vunpack.c.h.b16 %v53
    %v625 = vunpack.c.l.b16 %v54
    %v626 = vunpack.c.h.b16 %v54
    %v627 = vunpack.c.l.b16 %v55
    %v628 = vunpack.c.h.b16 %v55
    %v629 = vunpack.c.l.b16 %v56
    %v630 = vunpack.c.h.b16 %v56
    %v631 = vunpack.c.l.b16 %v57
    %v632 = vunpack.c.h.b16 %v57
    %v633 = vunpack.c.l.b16 %v58
    %v634 = vunpack.c.h.b16 %v58
    %v635 = vunpack.c.l.b16 %v59
    %v636 = vunpack.c.h.b16 %v59
    %v637 = vunpack.c.l.b16 %v60
    %v638 = vunpack.c.h.b16 %v60
    %v639 = vunpack.c.l.b16 %v61
    %v640 = vunpack.c.h.b16 %v61
    %v641 = vunpack.c.l.b16 %v62
    %v642 = vunpack.c.h.b16 %v62
    %v643 = vunpack.c.l.b16 %v63
    %v644 = vunpack.c.h.b16 %v63
    %v645 = vunpack.c.l.b16 %v64
    %v646 = vunpack.c.h.b16 %v64
    %v647 = vunpack.c.l.b16 %v65
    %v648 = vunpack.c.h.b16 %v65
    %v649 = vunpack.c.l.b16 %v66
    %v650 = vunpack.c.h.b16 %v66
    %v651 = vunpack.c.l.b16 %v67
    %v652 = vunpack.c.h.b16 %v67
    %v653 = vunpack.c.l.b16 %v68
    %v654 = vunpack.c.h.b16 %v68
    %v655 = vunpack.c.l.b16 %v69
    %v656 = vunpack.c.h.b16 %v69
    %v657 = vunpack.c.l.b16 %v70
    %v658 = vunpack.c.h.b16 %v70
    %v659 = vunpack.c.l.b16 %v71
    %v660 = vunpack.c.h.b16 %v71
    %v661 = vunpack.c.l.b16 %v72
    %v662 = vunpack.c.h.b16 %v72
    %v663 = vunpack.c.l.b16 %v73
    %v664 = vunpack.c.h.b16 %v73
    %v665 = vunpack.c.l.b16 %v74
    %v666 = vunpack.c.h.b16 %v74
    %v667 = vunpack.c.l.b16 %v75
    %v668 = vunpack.c.h.b16 %v75
    %v669 = vunpack.c.l.b16 %v76
    %v670 = vunpack.c.h.b16 %v76
    %v671 = vunpack.c.l.b16 %v77
    %v672 = vunpack.c.h.b16 %v77
    %v673 = vunpack.c.l.b16 %v78
    %v674 = vunpack.c.h.b16 %v78
    %v675 = vunpack.c.l.b16 %v79
    %v676 = vunpack.c.h.b16 %v79
    %v677 = vunpack.c.l.b16 %v80
    %v678 = vunpack.c.h.b16 %v80
    %v679 = vunpack.c.l.b16 %v81
    %v680 = vunpack.c.h.b16 %v81
    %v681 = vunpack.c.l.b16 %v82
    %v682 = vunpack.c.h.b16 %v82
    %v683 = vunpack.c.l.b16 %v83
    %v684 = vunpack.c.h.b16 %v83
    %v685 = vunpack.c.l.b16 %v84
    %v686 = vunpack.c.h.b16 %v84
    %v687 = vunpack.c.l.b16 %v85
    %v688 = vunpack.c.h.b16 %v85
    %v689 = vunpack.c.l.b16 %v86
    %v690 = vunpack.c.h.b16 %v86
    %v691 = vunpack.c.l.b16 %v87
    %v692 = vunpack.c.h.b16 %v87
    %v693 = vunpack.c.l.b16 %v88
    %v694 = vunpack.c.h.b16 %v88
    %v695 = vunpack.c.l.b16 %v89
    %v696 = vunpack.c.h.b16 %v89
    %v697 = vunpack.c.l.b16 %v90
    %v698 = vunpack.c.h.b16 %v90
    %v699 = vunpack.c.l.b16 %v91
    %v700 = vunpack.c.h.b16 %v91
    %v701 = vunpack.c.l.b16 %v92
    %v702 = vunpack.c.h.b16 %v92
    %v703 = vunpack.c.l.b16 %v93
    %v704 = vunpack.c.h.b16 %v93
    %v705 = vunpack.c.l.b16 %v94
    %v706 = vunpack.c.h.b16 %v94
    %v707 = vunpack.c.l.b16 %v95
    %v708 = vunpack.c.h.b16 %v95
    %v709 = vunpack.c.l.b16 %v96
    %v710 = vunpack.c.h.b16 %v96
    %v711 = vunpack.c.l.b16 %v97
    %v712 = vunpack.c.h.b16 %v97
    %v713 = vunpack.c.l.b16 %v98
    %v714 = vunpack.c.h.b16 %v98
    %v715 = vunpack.c.l.b16 %v99
    %v716 = vunpack.c.h.b16 %v99
    %v717 = vunpack.c.l.b16 %v100
    %v718 = vunpack.c.h.b16 %v100
    %v719 = vunpack.c.l.b16 %v101
    %v720 = vunpack.c.h.b16 %v101
    %v721 = vunpack.c.l.b16 %v102
    %v722 = vunpack.c.h.b16 %v102
    %v723 = vunpack.c.l.b16 %v103
    %v724 = vunpack.c.h.b16 %v103
    %v725 = vunpack.c.l.b16 %v104
    %v726 = vunpack.c.h.b16 %v104
    %v727 = vunpack.c.l.b16 %v105
    %v728 = vunpack.c.h.b16 %v105
    %v729 = vunpack.c.l.b16 %v106
    %v730 = vunpack.c.h.b16 %v106
    %v731 = vunpack.c.l.b16 %v107
    %v732 = vunpack.c.h.b16 %v107
    %v733 = vunpack.c.l.b16 %v108
    %v734 = vunpack.c.h.b16 %v108
    %v735 = vunpack.c.l.b16 %v109
    %v736 = vunpack.c.h.b16 %v109
    %v737 = vunpack.c.l.b16 %v110
    %v738 = vunpack.c.h.b16 %v110
    %v739 = vunpack.c.l.b16 %v111
    %v740 = vunpack.c.h.b16 %v111
    %v741 = vunpack.c.l.b16 %v112
    %v742 = vunpack.c.h.b16 %v112
    %v743 = vunpack.c.l.b16 %v113
    %v744 = vunpack.c.h.b16 %v113
    %v745 = vunpack.c.l.b16 %v114
    %v746 = vunpack.c.h.b16 %v114
    %v747 = vunpack.c.l.b16 %v115
    %v748 = vunpack.c.h.b16 %v115
    %v749 = vunpack.c.l.b16 %v116
    %v750 = vunpack.c.h.b16 %v116
    %v751 = vunpack.c.l.b16 %v117
    %v752 = vunpack.c.h.b16 %v117
    %v753 = vunpack.c.l.b16 %v118
    %v754 = vunpack.c.h.b16 %v118
    %v755 = vunpack.c.l.b16 %v119
    %v756 = vunpack.c.h.b16 %v119
    %v757 = vunpack.c.l.b16 %v120
    %v758 = vunpack.c.h.b16 %v120
    %v759 = vunpack.c.l.b16 %v121
    %v760 = vunpack.c.h.b16 %v121
    %v761 = vunpack.c.l.b16 %v122
    %v762 = vunpack.c.h.b16 %v122
    %v763 = vunpack.c.l.b16 %v123
    %v764 = vunpack.c.h.b16 %v123
    %v765 = vunpack.c.l.b16 %v124
    %v766 = vunpack.c.h.b16 %v124
    %v767 = vunpack.c.l.b16 %v125
    %v768 = vunpack.c.h.b16 %v125
    %v769 = vunpack.c.l.b16 %v126
    %v770 = vunpack.c.h.b16 %v126
    %v771 = vunpack.c.l.b16 %v127
    %v772 = vunpack.c.h.b16 %v127
    %v773 = vunpack.c.l.b16 %v128
    %v774 = vunpack.c.h.b16 %v128
    %v775 = vunpack.c.l.b16 %v129
    %v776 = vunpack.c.h.b16 %v129
    %v777 = vunpack.c.l.b16 %v130
    %v778 = vunpack.c.h.b16 %v130
    %v779 = vunpack.c.l.b16 %v131
    %v780 = vunpack.c.h.b16 %v131
    %v781 = vunpack.c.l.b16 %v132
    %v782 = vunpack.c.h.b16 %v132
    %v783 = vunpack.c.l.b16 %v133
    %v784 = vunpack.c.h.b16 %v133
    %v785 = vunpack.c.l.b16 %v134
    %v786 = vunpack.c.h.b16 %v134
    %v787 = vunpack.c.l.b16 %v135
    %v788 = vunpack.c.h.b16 %v135
    %v789 = vunpack.c.l.b16 %v136
    %v790 = vunpack.c.h.b16 %v136
    %v791 = vunpack.c.l.b16 %v137
    %v792 = vunpack.c.h.b16 %v137
    %v793 = vunpack.c.l.b16 %v138
    %v794 = vunpack.c.h.b16 %v138
    %v795 = vunpack.c.l.b16 %v139
    %v796 = vunpack.c.h.b16 %v139
    %v797 = vunpack.c.l.b16 %v140
    %v798 = vunpack.c.h.b16 %v140
    %v799 = vunpack.c.l.b16 %v141
    %v800 = vunpack.c.h.b16 %v141
    %v801 = vunpack.c.l.b16 %v142
    %v802 = vunpack.c.h.b16 %v142
    %v803 = vunpack.c.l.b16 %v143
    %v804 = vunpack.c.h.b16 %v143
    %v805 = vunpack.c.l.b16 %v144
    %v806 = vunpack.c.h.b16 %v144
    %v807 = vunpack.c.l.b16 %v145
    %v808 = vunpack.c.h.b16 %v145
    %v809 = vunpack.c.l.b16 %v146
    %v810 = vunpack.c.h.b16 %v146
    %v811 = vunpack.c.l.b16 %v147
    %v812 = vunpack.c.h.b16 %v147
    %v813 = vunpack.c.l.b16 %v148
    %v814 = vunpack.c.h.b16 %v148
    %v815 = vunpack.c.l.b16 %v149
    %v816 = vunpack.c.h.b16 %v149
    %v817 = vunpack.c.l.b16 %v150
    %v818 = vunpack.c.h.b16 %v150
    %v819 = vunpack.c.l.b16 %v151
    %v820 = vunpack.c.h.b16 %v151
    %v821 = vunpack.c.l.b16 %v152
    %v822 = vunpack.c.h.b16 %v152
    %v823 = vunpack.c.l.b16 %v153
    %v824 = vunpack.c.h.b16 %v153
    %v825 = vunpack.c.l.b16 %v154
    %v826 = vunpack.c.h.b16 %v154
    %v827 = vunpack.c.l.b16 %v155
    %v828 = vunpack.c.h.b16 %v155
    %v829 = vunpack.c.l.b16 %v156
    %v830 = vunpack.c.h.b16 %v156
    %v831 = vunpack.c.l.b16 %v157
    %v832 = vunpack.c.h.b16 %v157
    %v833 = vunpack.c.l.b16 %v158
    %v834 = vunpack.c.h.b16 %v158
    %v835 = vunpack.c.l.b16 %v159
    %v836 = vunpack.c.h.b16 %v159
    %v837 = vunpack.c.l.b16 %v160
    %v838 = vunpack.c.h.b16 %v160
    %v839 = vunpack.c.l.b16 %v161
    %v840 = vunpack.c.h.b16 %v161
    %v841 = vunpack.c.l.b16 %v162
    %v842 = vunpack.c.h.b16 %v162
    %v843 = vunpack.c.l.b16 %v163
    %v844 = vunpack.c.h.b16 %v163
    %v845 = vunpack.c.l.b16 %v164
    %v846 = vunpack.c.h.b16 %v164
    %v847 = vunpack.c.l.b16 %v165
    %v848 = vunpack.c.h.b16 %v165
    %v849 = vunpack.c.l.b16 %v166
    %v850 = vunpack.c.h.b16 %v166
    %v851 = vunpack.c.l.b16 %v167
    %v852 = vunpack.c.h.b16 %v167
    %v853 = vunpack.c.l.b16 %v168
    %v854 = vunpack.c.h.b16 %v168
    %v855 = vunpack.c.l.b16 %v169
    %v856 = vunpack.c.h.b16 %v169
    %v857 = vunpack.c.l.b16 %v170
    %v858 = vunpack.c.h.b16 %v170
    %v859 = vunpack.c.l.b16 %v171
    %v860 = vunpack.c.h.b16 %v171
    %v861 = vunpack.c.l.b16 %v172
    %v862 = vunpack.c.h.b16 %v172
    %v863 = vunpack.c.l.b16 %v173
    %v864 = vunpack.c.h.b16 %v173
    %v865 = vunpack.c.l.b16 %v174
    %v866 = vunpack.c.h.b16 %v174
    %v867 = vunpack.c.l.b16 %v175
    %v868 = vunpack.c.h.b16 %v175
    %v869 = vunpack.c.l.b16 %v176
    %v870 = vunpack.c.h.b16 %v176
    %v871 = vunpack.c.l.b16 %v177
    %v872 = vunpack.c.h.b16 %v177
    %v873 = vunpack.c.l.b16 %v178
    %v874 = vunpack.c.h.b16 %v178
    %v875 = vunpack.c.l.b16 %v179
    %v876 = vunpack.c.h.b16 %v179
    %v877 = vunpack.c.l.b16 %v180
    %v878 = vunpack.c.h.b16 %v180
    %v879 = vunpack.c.l.b16 %v181
    %v880 = vunpack.c.h.b16 %v181
    %v881 = vunpack.c.l.b16 %v182
    %v882 = vunpack.c.h.b16 %v182
    %v883 = vunpack.c.l.b16 %v183
    %v884 = vunpack.c.h.b16 %v183
    %v885 = vunpack.c.l.b16 %v184
    %v886 = vunpack.c.h.b16 %v184
    %v887 = vunpack.c.l.b16 %v185
    %v888 = vunpack.c.h.b16 %v185
    %v889 = vunpack.c.l.b16 %v186
    %v890 = vunpack.c.h.b16 %v186
    %v891 = vunpack.c.l.b16 %v187
    %v892 = vunpack.c.h.b16 %v187
    %v893 = vunpack.c.l.b16 %v188
    %v894 = vunpack.c.h.b16 %v188
    %v895 = vunpack.c.l.b16 %v189
    %v896 = vunpack.c.h.b16 %v189
    %v897 = vunpack.c.l.b16 %v190
    %v898 = vunpack.c.h.b16 %v190
    %v899 = vunpack.c.l.b16 %v191
    %v900 = vunpack.c.h.b16 %v191
    %v901 = vunpack.c.l.b16 %v192
    %v902 = vunpack.c.h.b16 %v192
    %v903 = vunpack.c.l.b16 %v193
    %v904 = vunpack.c.h.b16 %v193
    %v905 = vunpack.c.l.b16 %v194
    %v906 = vunpack.c.h.b16 %v194
    %v907 = vunpack.c.l.b16 %v195
    %v908 = vunpack.c.h.b16 %v195
    %v909 = vunpack.c.l.b16 %v196
    %v910 = vunpack.c.h.b16 %v196
    %v911 = vunpack.c.l.b16 %v197
    %v912 = vunpack.c.h.b16 %v197
    %v913 = vunpack.c.l.b16 %v198
    %v914 = vunpack.c.h.b16 %v198
    %v915 = vunpack.c.l.b16 %v199
    %v916 = vunpack.c.h.b16 %v199
    %v917 = vunpack.c.l.b16 %v200
    %v918 = vunpack.c.h.b16 %v200
    %v919 = vunpack.c.l.b16 %v201
    %v920 = vunpack.c.h.b16 %v201
    %v921 = vunpack.c.l.b16 %v202
    %v922 = vunpack.c.h.b16 %v202
    %v923 = vunpack.c.l.b16 %v203
    %v924 = vunpack.c.h.b16 %v203
    %v925 = vunpack.c.l.b16 %v204
    %v926 = vunpack.c.h.b16 %v204
    %v927 = vunpack.c.l.b16 %v205
    %v928 = vunpack.c.h.b16 %v205
    %v929 = vunpack.c.l.b16 %v206
    %v930 = vunpack.c.h.b16 %v206
    %v931 = vunpack.c.l.b16 %v207
    %v932 = vunpack.c.h.b16 %v207
    %v933 = vunpack.c.l.b16 %v208
    %v934 = vunpack.c.h.b16 %v208
    %v935 = vunpack.c.l.b16 %v209
    %v936 = vunpack.c.h.b16 %v209
    %v937 = vunpack.c.l.b16 %v210
    %v938 = vunpack.c.h.b16 %v210
    %v939 = vunpack.c.l.b16 %v211
    %v940 = vunpack.c.h.b16 %v211
    %v941 = vunpack.c.l.b16 %v212
    %v942 = vunpack.c.h.b16 %v212
    %v943 = vunpack.c.l.b16 %v213
    %v944 = vunpack.c.h.b16 %v213
    %v945 = vunpack.c.l.b16 %v214
    %v946 = vunpack.c.h.b16 %v214
    %v947 = vunpack.c.l.b16 %v215
    %v948 = vunpack.c.h.b16 %v215
    %v949 = vunpack.c.l.b16 %v216
    %v950 = vunpack.c.h.b16 %v216
    %v951 = vunpack.c.l.b16 %v217
    %v952 = vunpack.c.h.b16 %v217
    %v953 = vunpack.c.l.b16 %v218
    %v954 = vunpack.c.h.b16 %v218
    %v955 = vunpack.c.l.b16 %v219
    %v956 = vunpack.c.h.b16 %v219
    %v957 = vunpack.c.l.b16 %v220
    %v958 = vunpack.c.h.b16 %v220
    %v959 = vunpack.c.l.b16 %v221
    %v960 = vunpack.c.h.b16 %v221
    %v961 = vunpack.c.l.b16 %v222
    %v962 = vunpack.c.h.b16 %v222
    %v963 = vunpack.c.l.b16 %v223
    %v964 = vunpack.c.h.b16 %v223
    %v965 = vunpack.c.l.b16 %v224
    %v966 = vunpack.c.h.b16 %v224
    %v967 = vunpack.c.l.b16 %v225
    %v968 = vunpack.c.h.b16 %v225
    %v969 = vunpack.c.l.b16 %v226
    %v970 = vunpack.c.h.b16 %v226
    %v971 = vunpack.c.l.b16 %v227
    %v972 = vunpack.c.h.b16 %v227
    %v973 = vunpack.c.l.b16 %v228
    %v974 = vunpack.c.h.b16 %v228
    %v975 = vunpack.c.l.b16 %v229
    %v976 = vunpack.c.h.b16 %v229
    %v977 = vunpack.c.l.b16 %v230
    %v978 = vunpack.c.h.b16 %v230
    %v979 = vunpack.c.l.b16 %v231
    %v980 = vunpack.c.h.b16 %v231
    %v981 = vunpack.c.l.b16 %v232
    %v982 = vunpack.c.h.b16 %v232
    %v983 = vunpack.c.l.b16 %v233
    %v984 = vunpack.c.h.b16 %v233
    %v985 = vunpack.c.l.b16 %v234
    %v986 = vunpack.c.h.b16 %v234
    %v987 = vunpack.c.l.b16 %v235
    %v988 = vunpack.c.h.b16 %v235
    %v989 = vunpack.c.l.b16 %v236
    %v990 = vunpack.c.h.b16 %v236
    %v991 = vunpack.c.l.b16 %v237
    %v992 = vunpack.c.h.b16 %v237
    %v993 = vunpack.c.l.b16 %v238
    %v994 = vunpack.c.h.b16 %v238
    %v995 = vunpack.c.l.b16 %v239
    %v996 = vunpack.c.h.b16 %v239
    %v997 = vunpack.c.l.b16 %v240
    %v998 = vunpack.c.h.b16 %v240
    %v999 = vunpack.c.l.b16 %v241
    %v1000 = vunpack.c.h.b16 %v241
    %v1001 = vunpack.c.l.b16 %v242
    %v1002 = vunpack.c.h.b16 %v242
    %v1003 = vunpack.c.l.b16 %v243
    %v1004 = vunpack.c.h.b16 %v243
    %v1005 = vunpack.c.l.b16 %v244
    %v1006 = vunpack.c.h.b16 %v244
    %v1007 = vunpack.c.l.b16 %v245
    %v1008 = vunpack.c.h.b16 %v245
    %v1009 = vunpack.c.l.b16 %v246
    %v1010 = vunpack.c.h.b16 %v246
    %v1011 = vunpack.c.l.b16 %v247
    %v1012 = vunpack.c.h.b16 %v247
    %v1013 = vunpack.c.l.b16 %v248
    %v1014 = vunpack.c.h.b16 %v248
    %v1015 = vunpack.c.l.b16 %v249
    %v1016 = vunpack.c.h.b16 %v249
    %v1017 = vunpack.c.l.b16 %v250
    %v1018 = vunpack.c.h.b16 %v250
    %v1019 = vunpack.c.l.b16 %v251
    %v1020 = vunpack.c.h.b16 %v251
    %v1021 = vunpack.c.l.b16 %v252
    %v1022 = vunpack.c.h.b16 %v252
    %v1023 = vunpack.c.l.b16 %v253
    %v1024 = vunpack.c.h.b16 %v253
    %v1025 = vunpack.c.l.b16 %v254
    %v1026 = vunpack.c.h.b16 %v254
    %v1027 = vunpack.c.l.b16 %v255
    %v1028 = vunpack.c.h.b16 %v255
    %v1029 = vunpack.c.l.b16 %v256
    %v1030 = vunpack.c.h.b16 %v256
    %v1031 = vunpack.c.l.b16 %v257
    %v1032 = vunpack.c.h.b16 %v257
    %v1033 = vunpack.c.l.b16 %v258
    %v1034 = vunpack.c.h.b16 %v258
    %v1035 = vunpack.c.l.b16 %v259
    %v1036 = vunpack.c.h.b16 %v259
    %v1037 = vunpack.c.l.b16 %v260
    %v1038 = vunpack.c.h.b16 %v260
    %v1039 = vunpack.c.l.b16 %v261
    %v1040 = vunpack.c.h.b16 %v261
    %v1041 = vunpack.c.l.b16 %v262
    %v1042 = vunpack.c.h.b16 %v262
    %v1043 = vunpack.c.l.b16 %v263
    %v1044 = vunpack.c.h.b16 %v263
    %v1045 = vunpack.c.l.b16 %v264
    %v1046 = vunpack.c.h.b16 %v264
    %v1047 = vunpack.c.l.b16 %v265
    %v1048 = vunpack.c.h.b16 %v265
    %v1049 = vunpack.c.l.b16 %v266
    %v1050 = vunpack.c.h.b16 %v266
    %v1051 = vunpack.c.l.b16 %v267
    %v1052 = vunpack.c.h.b16 %v267
    %v1053 = vunpack.c.l.b16 %v268
    %v1054 = vunpack.c.h.b16 %v268
    %v1055 = vunpack.c.l.b16 %v269
    %v1056 = vunpack.c.h.b16 %v269
    %v1057 = vunpack.c.l.b16 %v270
    %v1058 = vunpack.c.h.b16 %v270
    %v1059 = vunpack.c.l.b16 %v271
    %v1060 = vunpack.c.h.b16 %v271
    %v1061 = vunpack.c.l.b16 %v272
    %v1062 = vunpack.c.h.b16 %v272
    %v1063 = vunpack.c.l.b16 %v273
    %v1064 = vunpack.c.h.b16 %v273
    %v1065 = vunpack.c.l.b16 %v274
    %v1066 = vunpack.c.h.b16 %v274
    %v1067 = vunpack.c.l.b16 %v275
    %v1068 = vunpack.c.h.b16 %v275
    %v1069 = vunpack.c.l.b16 %v276
    %v1070 = vunpack.c.h.b16 %v276
    %v1071 = vunpack.c.l.b16 %v277
    %v1072 = vunpack.c.h.b16 %v277
    %v1073 = vunpack.c.l.b16 %v278
    %v1074 = vunpack.c.h.b16 %v278
    %v1075 = vunpack.c.l.b16 %v279
    %v1076 = vunpack.c.h.b16 %v279
    %v1077 = vunpack.c.l.b16 %v280
    %v1078 = vunpack.c.h.b16 %v280
    %v1079 = vunpack.c.l.b16 %v281
    %v1080 = vunpack.c.h.b16 %v281
    %v1081 = vunpack.c.l.b16 %v282
    %v1082 = vunpack.c.h.b16 %v282
    %v1083 = vunpack.c.l.b16 %v283
    %v1084 = vunpack.c.h.b16 %v283
    %v1085 = vunpack.c.l.b16 %v284
    %v1086 = vunpack.c.h.b16 %v284
    %v1087 = vunpack.c.l.b16 %v285
    %v1088 = vunpack.c.h.b16 %v285
    %v1089 = vunpack.c.l.b16 %v286
    %v1090 = vunpack.c.h.b16 %v286
    %v1091 = vunpack.c.l.b16 %v287
    %v1092 = vunpack.c.h.b16 %v287
    %v1093 = vunpack.c.l.b16 %v288
    %v1094 = vunpack.c.h.b16 %v288
    %v1095 = vunpack.c.l.b16 %v289
    %v1096 = vunpack.c.h.b16 %v289
    %v1097 = vunpack.c.l.b16 %v290
    %v1098 = vunpack.c.h.b16 %v290
    %v1099 = vunpack.c.l.b16 %v291
    %v1100 = vunpack.c.h.b16 %v291
    %v1101 = vunpack.c.l.b16 %v292
    %v1102 = vunpack.c.h.b16 %v292
    %v1103 = vunpack.c.l.b16 %v293
    %v1104 = vunpack.c.h.b16 %v293
    %v1105 = vunpack.c.l.b16 %v294
    %v1106 = vunpack.c.h.b16 %v294
    %v1107 = vunpack.c.l.b16 %v295
    %v1108 = vunpack.c.h.b16 %v295
    %v1109 = vunpack.c.l.b16 %v296
    %v1110 = vunpack.c.h.b16 %v296
    %v1111 = vunpack.c.l.b16 %v297
    %v1112 = vunpack.c.h.b16 %v297
    %v1113 = vunpack.c.l.b16 %v298
    %v1114 = vunpack.c.h.b16 %v298
    %v1115 = vunpack.c.l.b16 %v299
    %v1116 = vunpack.c.h.b16 %v299
    %v1117 = vunpack.c.l.b16 %v300
    %v1118 = vunpack.c.h.b16 %v300
    %v1119 = vunpack.c.l.b16 %v301
    %v1120 = vunpack.c.h.b16 %v301
    %v1121 = vunpack.c.l.b16 %v302
    %v1122 = vunpack.c.h.b16 %v302
    %v1123 = vunpack.c.l.b16 %v303
    %v1124 = vunpack.c.h.b16 %v303
    %v1125 = vunpack.c.l.b16 %v304
    %v1126 = vunpack.c.h.b16 %v304
    %v1127 = vunpack.c.l.b16 %v305
    %v1128 = vunpack.c.h.b16 %v305
    %v1129 = vunpack.c.l.b16 %v306
    %v1130 = vunpack.c.h.b16 %v306
    %v1131 = vpack.c.b16 %v627, %v619
    %v1132 = vpack.c.b16 %v628, %v620
    %v1133 = vpack.c.b16 %v629, %v621
    %v1134 = vpack.c.b16 %v630, %v622
    %v1135 = vpack.c.b16 %v631, %v623
    %v1136 = vpack.c.b16 %v632, %v624
    %v1137 = vpack.c.b16 %v633, %v625
    %v1138 = vpack.c.b16 %v634, %v626
    %v1139 = vpack.c.b16 %v643, %v635
    %v1140 = vpack.c.b16 %v644, %v636
    %v1141 = vpack.c.b16 %v645, %v637
    %v1142 = vpack.c.b16 %v646, %v638
    %v1143 = vpack.c.b16 %v647, %v639
    %v1144 = vpack.c.b16 %v648, %v640
    %v1145 = vpack.c.b16 %v649, %v641
    %v1146 = vpack.c.b16 %v650, %v642
    %v1147 = vpack.c.b16 %v659, %v651
    %v1148 = vpack.c.b16 %v660, %v652
    %v1149 = vpack.c.b16 %v661, %v653
    %v1150 = vpack.c.b16 %v662, %v654
    %v1151 = vpack.c.b16 %v663, %v655
    %v1152 = vpack.c.b16 %v664, %v656
    %v1153 = vpack.c.b16 %v665, %v657
    %v1154 = vpack.c.b16 %v666, %v658
    %v1155 = vpack.c.b16 %v675, %v667
    %v1156 = vpack.c.b16 %v676, %v668
    %v1157 = vpack.c.b16 %v677, %v669
    %v1158 = vpack.c.b16 %v678, %v670
    %v1159 = vpack.c.b16 %v679, %v671
    %v1160 = vpack.c.b16 %v680, %v672
    %v1161 = vpack.c.b16 %v681, %v673
    %v1162 = vpack.c.b16 %v682, %v674
    %v1163 = vpack.c.b16 %v691, %v683
    %v1164 = vpack.c.b16 %v692, %v684
    %v1165 = vpack.c.b16 %v693, %v685
    %v1166 = vpack.c.b16 %v694, %v686
    %v1167 = vpack.c.b16 %v695, %v687
    %v1168 = vpack.c.b16 %v696, %v688
    %v1169 = vpack.c.b16 %v697, %v689
    %v1170 = vpack.c.b16 %v698, %v690
    %v1171 = vpack.c.b16 %v707, %v699
    %v1172 = vpack.c.b16 %v708, %v700
    %v1173 = vpack.c.b16 %v709, %v701
    %v1174 = vpack.c.b16 %v710, %v702
    %v1175 = vpack.c.b16 %v711, %v703
    %v1176 = vpack.c.b16 %v712, %v704
    %v1177 = vpack.c.b16 %v713, %v705
    %v1178 = vpack.c.b16 %v714, %v706
    %v1179 = vpack.c.b16 %v723, %v715
    %v1180 = vpack.c.b16 %v724, %v716
    %v1181 = vpack.c.b16 %v725, %v717
    %v1182 = vpack.c.b16 %v726, %v718
    %v1183 = vpack.c.b16 %v727, %v719
    %v1184 = vpack.c.b16 %v728, %v720
    %v1185 = vpack.c.b16 %v729, %v721
    %v1186 = vpack.c.b16 %v730, %v722
    %v1187 = vpack.c.b16 %v739, %v731
    %v1188 = vpack.c.b16 %v740, %v732
    %v1189 = vpack.c.b16 %v741, %v733
    %v1190 = vpack.c.b16 %v742, %v734
    %v1191 = vpack.c.b16 %v743, %v735
    %v1192 = vpack.c.b16 %v744, %v736
    %v1193 = vpack.c.b16 %v745, %v737
    %v1194 = vpack.c.b16 %v746, %v738
    %v1195 = vpack.c.b16 %v755, %v747
    %v1196 = vpack.c.b16 %v756, %v748
    %v1197 = vpack.c.b16 %v757, %v749
    %v1198 = vpack.c.b16 %v758, %v750
    %v1199 = vpack.c.b16 %v759, %v751
    %v1200 = vpack.c.b16 %v760, %v752
    %v1201 = vpack.c.b16 %v761, %v753
    %v1202 = vpack.c.b16 %v762, %v754
    %v1203 = vpack.c.b16 %v771, %v763
    %v1204 = vpack.c.b16 %v772, %v764
    %v1205 = vpack.c.b16 %v773, %v765
    %v1206 = vpack.c.b16 %v774, %v766
    %v1207 = vpack.c.b16 %v775, %v767
    %v1208 = vpack.c.b16 %v776, %v768
    %v1209 = vpack.c.b16 %v777, %v769
    %v1210 = vpack.c.b16 %v778, %v770
    %v1211 = vpack.c.b16 %v787, %v779
    %v1212 = vpack.c.b16 %v788, %v780
    %v1213 = vpack.c.b16 %v789, %v781
    %v1214 = vpack.c.b16 %v790, %v782
    %v1215 = vpack.c.b16 %v791, %v783
    %v1216 = vpack.c.b16 %v792, %v784
    %v1217 = vpack.c.b16 %v793, %v785
    %v1218 = vpack.c.b16 %v794, %v786
    %v1219 = vpack.c.b16 %v803, %v795
    %v1220 = vpack.c.b16 %v804, %v796
    %v1221 = vpack.c.b16 %v805, %v797
    %v1222 = vpack.c.b16 %v806, %v798
    %v1223 = vpack.c.b16 %v807, %v799
    %v1224 = vpack.c.b16 %v808, %v800
    %v1225 = vpack.c.b16 %v809, %v801
    %v1226 = vpack.c.b16 %v810, %v802
    %v1227 = vpack.c.b16 %v819, %v811
    %v1228 = vpack.c.b16 %v820, %v812
    %v1229 = vpack.c.b16 %v821, %v813
    %v1230 = vpack.c.b16 %v822, %v814
    %v1231 = vpack.c.b16 %v823, %v815
    %v1232 = vpack.c.b16 %v824, %v816
    %v1233 = vpack.c.b16 %v825, %v817
    %v1234 = vpack.c.b16 %v826, %v818
    %v1235 = vpack.c.b16 %v835, %v827
    %v1236 = vpack.c.b16 %v836, %v828
    %v1237 = vpack.c.b16 %v837, %v829
    %v1238 = vpack.c.b16 %v838, %v830
    %v1239 = vpack.c.b16 %v839, %v831
    %v1240 = vpack.c.b16 %v840, %v832
    %v1241 = vpack.c.b16 %v841, %v833
    %v1242 = vpack.c.b16 %v842, %v834
    %v1243 = vpack.c.b16 %v851, %v843
    %v1244 = vpack.c.b16 %v852, %v844
    %v1245 = vpack.c.b16 %v853, %v845
    %v1246 = vpack.c.b16 %v854, %v846
    %v1247 = vpack.c.b16 %v855, %v847
    %v1248 = vpack.c.b16 %v856, %v848
    %v1249 = vpack.c.b16 %v857, %v849
    %v1250 = vpack.c.b16 %v858, %v850
    %v1251 = vpack.c.b16 %v867, %v859
    %v1252 = vpack.c.b16 %v868, %v860
    %v1253 = vpack.c.b16 %v869, %v861
    %v1254 = vpack.c.b16 %v870, %v862
    %v1255 = vpack.c.b16 %v871, %v863
    %v1256 = vpack.c.b16 %v872, %v864
    %v1257 = vpack.c.b16 %v873, %v865
    %v1258 = vpack.c.b16 %v874, %v866
    %v1259 = vpack.c.b16 %v883, %v875
    %v1260 = vpack.c.b16 %v884, %v876
    %v1261 = vpack.c.b16 %v885, %v877
    %v1262 = vpack.c.b16 %v886, %v878
    %v1263 = vpack.c.b16 %v887, %v879
    %v1264 = vpack.c.b16 %v888, %v880
    %v1265 = vpack.c.b16 %v889, %v881
    %v1266 = vpack.c.b16 %v890, %v882
    %v1267 = vpack.c.b16 %v899, %v891
    %v1268 = vpack.c.b16 %v900, %v892
    %v1269 = vpack.c.b16 %v901, %v893
    %v1270 = vpack.c.b16 %v902, %v894
    %v1271 = vpack.c.b16 %v903, %v895
    %v1272 = vpack.c.b16 %v904, %v896
    %v1273 = vpack.c.b16 %v905, %v897
    %v1274 = vpack.c.b16 %v906, %v898
    %v1275 = vpack.c.b16 %v915, %v907
    %v1276 = vpack.c.b16 %v916, %v908
    %v1277 = vpack.c.b16 %v917, %v909
    %v1278 = vpack.c.b16 %v918, %v910
    %v1279 = vpack.c.b16 %v919, %v911
    %v1280 = vpack.c.b16 %v920, %v912
    %v1281 = vpack.c.b16 %v921, %v913
    %v1282 = vpack.c.b16 %v922, %v914
    %v1283 = vpack.c.b16 %v931, %v923
    %v1284 = vpack.c.b16 %v932, %v924
    %v1285 = vpack.c.b16 %v933, %v925
    %v1286 = vpack.c.b16 %v934, %v926
    %v1287 = vpack.c.b16 %v935, %v927
    %v1288 = vpack.c.b16 %v936, %v928
    %v1289 = vpack.c.b16 %v937, %v929
    %v1290 = vpack.c.b16 %v938, %v930
    %v1291 = vpack.c.b16 %v947, %v939
    %v1292 = vpack.c.b16 %v948, %v940
    %v1293 = vpack.c.b16 %v949, %v941
    %v1294 = vpack.c.b16 %v950, %v942
    %v1295 = vpack.c.b16 %v951, %v943
    %v1296 = vpack.c.b16 %v952, %v944
    %v1297 = vpack.c.b16 %v953, %v945
    %v1298 = vpack.c.b16 %v954, %v946
    %v1299 = vpack.c.b16 %v963, %v955
    %v1300 = vpack.c.b16 %v964, %v956
    %v1301 = vpack.c.b16 %v965, %v957
    %v1302 = vpack.c.b16 %v966, %v958
    %v1303 = vpack.c.b16 %v967, %v959
    %v1304 = vpack.c.b16 %v968, %v960
    %v1305 = vpack.c.b16 %v969, %v961
    %v1306 = vpack.c.b16 %v970, %v962
    %v1307 = vpack.c.b16 %v979, %v971
    %v1308 = vpack.c.b16 %v980, %v972
    %v1309 = vpack.c.b16 %v981, %v973
    %v1310 = vpack.c.b16 %v982, %v974
    %v1311 = vpack.c.b16 %v983, %v975
    %v1312 = vpack.c.b16 %v984, %v976
    %v1313 = vpack.c.b16 %v985, %v977
    %v1314 = vpack.c.b16 %v986, %v978
    %v1315 = vpack.c.b16 %v995, %v987
    %v1316 = vpack.c.b16 %v996, %v988
    %v1317 = vpack.c.b16 %v997, %v989
    %v1318 = vpack.c.b16 %v998, %v990
    %v1319 = vpack.c.b16 %v999, %v991
    %v1320 = vpack.c.b16 %v1000, %v992
    %v1321 = vpack.c.b16 %v1001, %v993
    %v1322 = vpack.c.b16 %v1002, %v994
    %v1323 = vpack.c.b16 %v1011, %v1003
    %v1324 = vpack.c.b16 %v1012, %v1004
    %v1325 = vpack.c.b16 %v1013, %v1005
    %v1326 = vpack.c.b16 %v1014, %v1006
    %v1327 = vpack.c.b16 %v1015, %v1007
    %v1328 = vpack.c.b16 %v1016, %v1008
    %v1329 = vpack.c.b16 %v1017, %v1009
    %v1330 = vpack.c.b16 %v1018, %v1010
    %v1331 = vpack.c.b16 %v1027, %v1019
    %v1332 = vpack.c.b16 %v1028, %v1020
    %v1333 = vpack.c.b16 %v1029, %v1021
    %v1334 = vpack.c.b16 %v1030, %v1022
    %v1335 = vpack.c.b16 %v1031, %v1023
    %v1336 = vpack.c.b16 %v1032, %v1024
    %v1337 = vpack.c.b16 %v1033, %v1025
    %v1338 = vpack.c.b16 %v1034, %v1026
    %v1339 = vpack.c.b16 %v1043, %v1035
    %v1340 = vpack.c.b16 %v1044, %v1036
    %v1341 = vpack.c.b16 %v1045, %v1037
    %v1342 = vpack.c.b16 %v1046, %v1038
    %v1343 = vpack.c.b16 %v1047, %v1039
    %v1344 = vpack.c.b16 %v1048, %v1040
    %v1345 = vpack.c.b16 %v1049, %v1041
    %v1346 = vpack.c.b16 %v1050, %v1042
    %v1347 = vpack.c.b16 %v1059, %v1051
    %v1348 = vpack.c.b16 %v1060, %v1052
    %v1349 = vpack.c.b16 %v1061, %v1053
    %v1350 = vpack.c.b16 %v1062, %v1054
    %v1351 = vpack.c.b16 %v1063, %v1055
    %v1352 = vpack.c.b16 %v1064, %v1056
    %v1353 = vpack.c.b16 %v1065, %v1057
    %v1354 = vpack.c.b16 %v1066, %v1058
    %v1355 = vpack.c.b16 %v1075, %v1067
    %v1356 = vpack.c.b16 %v1076, %v1068
    %v1357 = vpack.c.b16 %v1077, %v1069
    %v1358 = vpack.c.b16 %v1078, %v1070
    %v1359 = vpack.c.b16 %v1079, %v1071
    %v1360 = vpack.c.b16 %v1080, %v1072
    %v1361 = vpack.c.b16 %v1081, %v1073
    %v1362 = vpack.c.b16 %v1082, %v1074
    %v1363 = vpack.c.b16 %v1091, %v1083
    %v1364 = vpack.c.b16 %v1092, %v1084
    %v1365 = vpack.c.b16 %v1093, %v1085
    %v1366 = vpack.c.b16 %v1094, %v1086
    %v1367 = vpack.c.b16 %v1095, %v1087
    %v1368 = vpack.c.b16 %v1096, %v1088
    %v1369 = vpack.c.b16 %v1097, %v1089
    %v1370 = vpack.c.b16 %v1098, %v1090
    %v1371 = vpack.c.b16 %v1107, %v1099
    %v1372 = vpack.c.b16 %v1108, %v1100
    %v1373 = vpack.c.b16 %v1109, %v1101
    %v1374 = vpack.c.b16 %v1110, %v1102
    %v1375 = vpack.c.b16 %v1111, %v1103
    %v1376 = vpack.c.b16 %v1112, %v1104
    %v1377 = vpack.c.b16 %v1113, %v1105
    %v1378 = vpack.c.b16 %v1114, %v1106
    %v1379 = vpack.c.b16 %v1123, %v1115
    %v1380 = vpack.c.b16 %v1124, %v1116
    %v1381 = vpack.c.b16 %v1125, %v1117
    %v1382 = vpack.c.b16 %v1126, %v1118
    %v1383 = vpack.c.b16 %v1127, %v1119
    %v1384 = vpack.c.b16 %v1128, %v1120
    %v1385 = vpack.c.b16 %v1129, %v1121
    %v1386 = vpack.c.b16 %v1130, %v1122
    %1643 = vmatprep.subr.bf16.mxu0 %v1132
    %1644 = vmatpush1.bf16.msra.mxu0 %v1131
    %1645 = vmatprep.subr.bf16.mxu0 %v1140
    %1646 = vmatpush1.bf16.msra.mxu0 %v1139
    %1647 = vmatprep.subr.bf16.mxu0 %v1148
    %1648 = vmatpush1.bf16.msra.mxu0 %v1147
    %1649 = vmatprep.subr.bf16.mxu0 %v1156
    %1650 = vmatpush1.bf16.msra.mxu0 %v1155
    %1651 = vmatprep.subr.bf16.mxu0 %v1164
    %1652 = vmatpush1.bf16.msra.mxu0 %v1163
    %1653 = vmatprep.subr.bf16.mxu0 %v1172
    %1654 = vmatpush1.bf16.msra.mxu0 %v1171
    %1655 = vmatprep.subr.bf16.mxu0 %v1180
    %1656 = vmatpush1.bf16.msra.mxu0 %v1179
    %1657 = vmatprep.subr.bf16.mxu0 %v1188
    %1658 = vmatpush1.bf16.msra.mxu0 %v1187
    %1659 = vmatprep.subr.bf16.mxu0 %v1196
    %1660 = vmatpush1.bf16.msra.mxu0 %v1195
    %1661 = vmatprep.subr.bf16.mxu0 %v1204
    %1662 = vmatpush1.bf16.msra.mxu0 %v1203
    %1663 = vmatprep.subr.bf16.mxu0 %v1212
    %1664 = vmatpush1.bf16.msra.mxu0 %v1211
    %1665 = vmatprep.subr.bf16.mxu0 %v1220
    %1666 = vmatpush1.bf16.msra.mxu0 %v1219
    %1667 = vmatprep.subr.bf16.mxu0 %v1228
    %1668 = vmatpush1.bf16.msra.mxu0 %v1227
    %1669 = vmatprep.subr.bf16.mxu0 %v1236
    %1670 = vmatpush1.bf16.msra.mxu0 %v1235
    %1671 = vmatprep.subr.bf16.mxu0 %v1244
    %1672 = vmatpush1.bf16.msra.mxu0 %v1243
    %1673 = vmatprep.subr.bf16.mxu0 %v1252
    %1674 = vmatpush1.bf16.msra.mxu0 %v1251
    %1675 = vmatprep.mubr.bf16.mxu0 %v356
    %1676 = vmatmul.mubr.bf16.gmra.mrb[0].mxu0 %v355
    %v1677 = vpop.f32.mrb[0].mxu0
    %v1678 = vadd.f32 %v312, %v1677
    %v1679 = vpop.f32.mrb[0].mxu0
    %v1680 = vadd.f32 %v316, %v1679
    %v1681 = vpop.f32.mrb[0].mxu0
    %v1682 = vpop.f32.mrb[0].mxu0
    %1683 = vdwg.mxu0
    %1684 = vmatprep.subr.bf16.mxu0 %v1260
    %1685 = vmatpush1.bf16.msra.mxu0 %v1259
    %1686 = vmatprep.subr.bf16.mxu0 %v1268
    %1687 = vmatpush1.bf16.msra.mxu0 %v1267
    %1688 = vmatprep.subr.bf16.mxu0 %v1276
    %1689 = vmatpush1.bf16.msra.mxu0 %v1275
    %1690 = vmatprep.subr.bf16.mxu0 %v1284
    %1691 = vmatpush1.bf16.msra.mxu0 %v1283
    %1692 = vmatprep.subr.bf16.mxu0 %v1292
    %1693 = vmatpush1.bf16.msra.mxu0 %v1291
    %1694 = vmatprep.subr.bf16.mxu0 %v1300
    %1695 = vmatpush1.bf16.msra.mxu0 %v1299
    %1696 = vmatprep.subr.bf16.mxu0 %v1308
    %1697 = vmatpush1.bf16.msra.mxu0 %v1307
    %1698 = vmatprep.subr.bf16.mxu0 %v1316
    %1699 = vmatpush1.bf16.msra.mxu0 %v1315
    %1700 = vmatprep.subr.bf16.mxu0 %v1324
    %1701 = vmatpush1.bf16.msra.mxu0 %v1323
    %1702 = vmatprep.subr.bf16.mxu0 %v1332
    %1703 = vmatpush1.bf16.msra.mxu0 %v1331
    %1704 = vmatprep.subr.bf16.mxu0 %v1340
    %1705 = vmatpush1.bf16.msra.mxu0 %v1339
    %1706 = vmatprep.subr.bf16.mxu0 %v1348
    %1707 = vmatpush1.bf16.msra.mxu0 %v1347
    %1708 = vmatprep.subr.bf16.mxu0 %v1356
    %1709 = vmatpush1.bf16.msra.mxu0 %v1355
    %1710 = vmatprep.subr.bf16.mxu0 %v1364
    %1711 = vmatpush1.bf16.msra.mxu0 %v1363
    %1712 = vmatprep.subr.bf16.mxu0 %v1372
    %1713 = vmatpush1.bf16.msra.mxu0 %v1371
    %1714 = vmatprep.subr.bf16.mxu0 %v1380
    %1715 = vmatpush1.bf16.msra.mxu0 %v1379
    %1716 = vmatprep.mubr.bf16.mxu0 %v358
    %1717 = vmatmul.mubr.bf16.gmra.mrb[0].mxu0 %v357
    %v1718 = vpop.f32.mrb[0].mxu0
    %v1719 = vadd.f32 %v1678, %v1718
    %v1720 = vpop.f32.mrb[0].mxu0
    %v1721 = vadd.f32 %v1680, %v1720
    %v1722 = vpop.f32.mrb[0].mxu0
    %v1723 = vpop.f32.mrb[0].mxu0
    %1724 = vdwg.mxu0
    %1725 = vmatprep.subr.bf16.mxu0 %v1134
    %1726 = vmatpush1.bf16.msra.mxu0 %v1133
    %1727 = vmatprep.subr.bf16.mxu0 %v1142
    %1728 = vmatpush1.bf16.msra.mxu0 %v1141
    %1729 = vmatprep.subr.bf16.mxu0 %v1150
    %1730 = vmatpush1.bf16.msra.mxu0 %v1149
    %1731 = vmatprep.subr.bf16.mxu0 %v1158
    %1732 = vmatpush1.bf16.msra.mxu0 %v1157
    %1733 = vmatprep.subr.bf16.mxu0 %v1166
    %1734 = vmatpush1.bf16.msra.mxu0 %v1165
    %1735 = vmatprep.subr.bf16.mxu0 %v1174
    %1736 = vmatpush1.bf16.msra.mxu0 %v1173
    %1737 = vmatprep.subr.bf16.mxu0 %v1182
    %1738 = vmatpush1.bf16.msra.mxu0 %v1181
    %1739 = vmatprep.subr.bf16.mxu0 %v1190
    %1740 = vmatpush1.bf16.msra.mxu0 %v1189
    %1741 = vmatprep.subr.bf16.mxu0 %v1198
    %1742 = vmatpush1.bf16.msra.mxu0 %v1197
    %1743 = vmatprep.subr.bf16.mxu0 %v1206
    %1744 = vmatpush1.bf16.msra.mxu0 %v1205
    %1745 = vmatprep.subr.bf16.mxu0 %v1214
    %1746 = vmatpush1.bf16.msra.mxu0 %v1213
    %1747 = vmatprep.subr.bf16.mxu0 %v1222
    %1748 = vmatpush1.bf16.msra.mxu0 %v1221
    %1749 = vmatprep.subr.bf16.mxu0 %v1230
    %1750 = vmatpush1.bf16.msra.mxu0 %v1229
    %1751 = vmatprep.subr.bf16.mxu0 %v1238
    %1752 = vmatpush1.bf16.msra.mxu0 %v1237
    %1753 = vmatprep.subr.bf16.mxu0 %v1246
    %1754 = vmatpush1.bf16.msra.mxu0 %v1245
    %1755 = vmatprep.subr.bf16.mxu0 %v1254
    %1756 = vmatpush1.bf16.msra.mxu0 %v1253
    %1757 = vmatprep.mubr.bf16.mxu0 %v356
    %1758 = vmatmul.mubr.bf16.gmra.mrb[0].mxu0 %v355
    %v1759 = vpop.f32.mrb[0].mxu0
    %v1760 = vadd.f32 %v320, %v1759
    %v1761 = vpop.f32.mrb[0].mxu0
    %v1762 = vadd.f32 %v324, %v1761
    %v1763 = vpop.f32.mrb[0].mxu0
    %v1764 = vpop.f32.mrb[0].mxu0
    %1765 = vdwg.mxu0
    %1766 = vmatprep.subr.bf16.mxu0 %v1262
    %1767 = vmatpush1.bf16.msra.mxu0 %v1261
    %1768 = vmatprep.subr.bf16.mxu0 %v1270
    %1769 = vmatpush1.bf16.msra.mxu0 %v1269
    %1770 = vmatprep.subr.bf16.mxu0 %v1278
    %1771 = vmatpush1.bf16.msra.mxu0 %v1277
    %1772 = vmatprep.subr.bf16.mxu0 %v1286
    %1773 = vmatpush1.bf16.msra.mxu0 %v1285
    %1774 = vmatprep.subr.bf16.mxu0 %v1294
    %1775 = vmatpush1.bf16.msra.mxu0 %v1293
    %1776 = vmatprep.subr.bf16.mxu0 %v1302
    %1777 = vmatpush1.bf16.msra.mxu0 %v1301
    %1778 = vmatprep.subr.bf16.mxu0 %v1310
    %1779 = vmatpush1.bf16.msra.mxu0 %v1309
    %1780 = vmatprep.subr.bf16.mxu0 %v1318
    %1781 = vmatpush1.bf16.msra.mxu0 %v1317
    %1782 = vmatprep.subr.bf16.mxu0 %v1326
    %1783 = vmatpush1.bf16.msra.mxu0 %v1325
    %1784 = vmatprep.subr.bf16.mxu0 %v1334
    %1785 = vmatpush1.bf16.msra.mxu0 %v1333
    %1786 = vmatprep.subr.bf16.mxu0 %v1342
    %1787 = vmatpush1.bf16.msra.mxu0 %v1341
    %1788 = vmatprep.subr.bf16.mxu0 %v1350
    %1789 = vmatpush1.bf16.msra.mxu0 %v1349
    %1790 = vmatprep.subr.bf16.mxu0 %v1358
    %1791 = vmatpush1.bf16.msra.mxu0 %v1357
    %1792 = vmatprep.subr.bf16.mxu0 %v1366
    %1793 = vmatpush1.bf16.msra.mxu0 %v1365
    %1794 = vmatprep.subr.bf16.mxu0 %v1374
    %1795 = vmatpush1.bf16.msra.mxu0 %v1373
    %1796 = vmatprep.subr.bf16.mxu0 %v1382
    %1797 = vmatpush1.bf16.msra.mxu0 %v1381
    %1798 = vmatprep.mubr.bf16.mxu0 %v358
    %1799 = vmatmul.mubr.bf16.gmra.mrb[0].mxu0 %v357
    %v1800 = vpop.f32.mrb[0].mxu0
    %v1801 = vadd.f32 %v1760, %v1800
    %v1802 = vpop.f32.mrb[0].mxu0
    %v1803 = vadd.f32 %v1762, %v1802
    %v1804 = vpop.f32.mrb[0].mxu0
    %v1805 = vpop.f32.mrb[0].mxu0
    %1806 = vdwg.mxu0
    %1807 = vmatprep.subr.bf16.mxu0 %v1136
    %1808 = vmatpush1.bf16.msra.mxu0 %v1135
    %1809 = vmatprep.subr.bf16.mxu0 %v1144
    %1810 = vmatpush1.bf16.msra.mxu0 %v1143
    %1811 = vmatprep.subr.bf16.mxu0 %v1152
    %1812 = vmatpush1.bf16.msra.mxu0 %v1151
    %1813 = vmatprep.subr.bf16.mxu0 %v1160
    %1814 = vmatpush1.bf16.msra.mxu0 %v1159
    %1815 = vmatprep.subr.bf16.mxu0 %v1168
    %1816 = vmatpush1.bf16.msra.mxu0 %v1167
    %1817 = vmatprep.subr.bf16.mxu0 %v1176
    %1818 = vmatpush1.bf16.msra.mxu0 %v1175
    %1819 = vmatprep.subr.bf16.mxu0 %v1184
    %1820 = vmatpush1.bf16.msra.mxu0 %v1183
    %1821 = vmatprep.subr.bf16.mxu0 %v1192
    %1822 = vmatpush1.bf16.msra.mxu0 %v1191
    %1823 = vmatprep.subr.bf16.mxu0 %v1200
    %1824 = vmatpush1.bf16.msra.mxu0 %v1199
    %1825 = vmatprep.subr.bf16.mxu0 %v1208
    %1826 = vmatpush1.bf16.msra.mxu0 %v1207
    %1827 = vmatprep.subr.bf16.mxu0 %v1216
    %1828 = vmatpush1.bf16.msra.mxu0 %v1215
    %1829 = vmatprep.subr.bf16.mxu0 %v1224
    %1830 = vmatpush1.bf16.msra.mxu0 %v1223
    %1831 = vmatprep.subr.bf16.mxu0 %v1232
    %1832 = vmatpush1.bf16.msra.mxu0 %v1231
    %1833 = vmatprep.subr.bf16.mxu0 %v1240
    %1834 = vmatpush1.bf16.msra.mxu0 %v1239
    %1835 = vmatprep.subr.bf16.mxu0 %v1248
    %1836 = vmatpush1.bf16.msra.mxu0 %v1247
    %1837 = vmatprep.subr.bf16.mxu0 %v1256
    %1838 = vmatpush1.bf16.msra.mxu0 %v1255
    %1839 = vmatprep.mubr.bf16.mxu0 %v356
    %1840 = vmatmul.mubr.bf16.gmra.mrb[0].mxu0 %v355
    %v1841 = vpop.f32.mrb[0].mxu0
    %v1842 = vadd.f32 %v328, %v1841
    %v1843 = vpop.f32.mrb[0].mxu0
    %v1844 = vadd.f32 %v332, %v1843
    %v1845 = vpop.f32.mrb[0].mxu0
    %v1846 = vpop.f32.mrb[0].mxu0
    %1847 = vdwg.mxu0
    %1848 = vmatprep.subr.bf16.mxu0 %v1264
    %1849 = vmatpush1.bf16.msra.mxu0 %v1263
    %1850 = vmatprep.subr.bf16.mxu0 %v1272
    %1851 = vmatpush1.bf16.msra.mxu0 %v1271
    %1852 = vmatprep.subr.bf16.mxu0 %v1280
    %1853 = vmatpush1.bf16.msra.mxu0 %v1279
    %1854 = vmatprep.subr.bf16.mxu0 %v1288
    %1855 = vmatpush1.bf16.msra.mxu0 %v1287
    %1856 = vmatprep.subr.bf16.mxu0 %v1296
    %1857 = vmatpush1.bf16.msra.mxu0 %v1295
    %1858 = vmatprep.subr.bf16.mxu0 %v1304
    %1859 = vmatpush1.bf16.msra.mxu0 %v1303
    %1860 = vmatprep.subr.bf16.mxu0 %v1312
    %1861 = vmatpush1.bf16.msra.mxu0 %v1311
    %1862 = vmatprep.subr.bf16.mxu0 %v1320
    %1863 = vmatpush1.bf16.msra.mxu0 %v1319
    %1864 = vmatprep.subr.bf16.mxu0 %v1328
    %1865 = vmatpush1.bf16.msra.mxu0 %v1327
    %1866 = vmatprep.subr.bf16.mxu0 %v1336
    %1867 = vmatpush1.bf16.msra.mxu0 %v1335
    %1868 = vmatprep.subr.bf16.mxu0 %v1344
    %1869 = vmatpush1.bf16.msra.mxu0 %v1343
    %1870 = vmatprep.subr.bf16.mxu0 %v1352
    %1871 = vmatpush1.bf16.msra.mxu0 %v1351
    %1872 = vmatprep.subr.bf16.mxu0 %v1360
    %1873 = vmatpush1.bf16.msra.mxu0 %v1359
    %1874 = vmatprep.subr.bf16.mxu0 %v1368
    %1875 = vmatpush1.bf16.msra.mxu0 %v1367
    %1876 = vmatprep.subr.bf16.mxu0 %v1376
    %1877 = vmatpush1.bf16.msra.mxu0 %v1375
    %1878 = vmatprep.subr.bf16.mxu0 %v1384
    %1879 = vmatpush1.bf16.msra.mxu0 %v1383
    %1880 = vmatprep.mubr.bf16.mxu0 %v358
    %1881 = vmatmul.mubr.bf16.gmra.mrb[0].mxu0 %v357
    %v1882 = vpop.f32.mrb[0].mxu0
    %v1883 = vadd.f32 %v1842, %v1882
    %v1884 = vpop.f32.mrb[0].mxu0
    %v1885 = vadd.f32 %v1844, %v1884
    %v1886 = vpop.f32.mrb[0].mxu0
    %v1887 = vpop.f32.mrb[0].mxu0
    %1888 = vdwg.mxu0
    %1889 = vmatprep.subr.bf16.mxu0 %v1138
    %1890 = vmatpush1.bf16.msra.mxu0 %v1137
    %1891 = vmatprep.subr.bf16.mxu0 %v1146
    %1892 = vmatpush1.bf16.msra.mxu0 %v1145
    %1893 = vmatprep.subr.bf16.mxu0 %v1154
    %1894 = vmatpush1.bf16.msra.mxu0 %v1153
    %1895 = vmatprep.subr.bf16.mxu0 %v1162
    %1896 = vmatpush1.bf16.msra.mxu0 %v1161
    %1897 = vmatprep.subr.bf16.mxu0 %v1170
    %1898 = vmatpush1.bf16.msra.mxu0 %v1169
    %1899 = vmatprep.subr.bf16.mxu0 %v1178
    %1900 = vmatpush1.bf16.msra.mxu0 %v1177
    %1901 = vmatprep.subr.bf16.mxu0 %v1186
    %1902 = vmatpush1.bf16.msra.mxu0 %v1185
    %1903 = vmatprep.subr.bf16.mxu0 %v1194
    %1904 = vmatpush1.bf16.msra.mxu0 %v1193
    %1905 = vmatprep.subr.bf16.mxu0 %v1202
    %1906 = vmatpush1.bf16.msra.mxu0 %v1201
    %1907 = vmatprep.subr.bf16.mxu0 %v1210
    %1908 = vmatpush1.bf16.msra.mxu0 %v1209
    %1909 = vmatprep.subr.bf16.mxu0 %v1218
    %1910 = vmatpush1.bf16.msra.mxu0 %v1217
    %1911 = vmatprep.subr.bf16.mxu0 %v1226
    %1912 = vmatpush1.bf16.msra.mxu0 %v1225
    %1913 = vmatprep.subr.bf16.mxu0 %v1234
    %1914 = vmatpush1.bf16.msra.mxu0 %v1233
    %1915 = vmatprep.subr.bf16.mxu0 %v1242
    %1916 = vmatpush1.bf16.msra.mxu0 %v1241
    %1917 = vmatprep.subr.bf16.mxu0 %v1250
    %1918 = vmatpush1.bf16.msra.mxu0 %v1249
    %1919 = vmatprep.subr.bf16.mxu0 %v1258
    %1920 = vmatpush1.bf16.msra.mxu0 %v1257
    %1921 = vmatprep.mubr.bf16.mxu0 %v356
    %1922 = vmatmul.mubr.bf16.gmra.mrb[0].mxu0 %v355
    %v1923 = vpop.f32.mrb[0].mxu0
    %v1924 = vadd.f32 %v336, %v1923
    %v1925 = vpop.f32.mrb[0].mxu0
    %v1926 = vadd.f32 %v340, %v1925
    %v1927 = vpop.f32.mrb[0].mxu0
    %v1928 = vpop.f32.mrb[0].mxu0
    %1929 = vdwg.mxu0
    %1930 = vmatprep.subr.bf16.mxu0 %v1266
    %1931 = vmatpush1.bf16.msra.mxu0 %v1265
    %1932 = vmatprep.subr.bf16.mxu0 %v1274
    %1933 = vmatpush1.bf16.msra.mxu0 %v1273
    %1934 = vmatprep.subr.bf16.mxu0 %v1282
    %1935 = vmatpush1.bf16.msra.mxu0 %v1281
    %1936 = vmatprep.subr.bf16.mxu0 %v1290
    %1937 = vmatpush1.bf16.msra.mxu0 %v1289
    %1938 = vmatprep.subr.bf16.mxu0 %v1298
    %1939 = vmatpush1.bf16.msra.mxu0 %v1297
    %1940 = vmatprep.subr.bf16.mxu0 %v1306
    %1941 = vmatpush1.bf16.msra.mxu0 %v1305
    %1942 = vmatprep.subr.bf16.mxu0 %v1314
    %1943 = vmatpush1.bf16.msra.mxu0 %v1313
    %1944 = vmatprep.subr.bf16.mxu0 %v1322
    %1945 = vmatpush1.bf16.msra.mxu0 %v1321
    %1946 = vmatprep.subr.bf16.mxu0 %v1330
    %1947 = vmatpush1.bf16.msra.mxu0 %v1329
    %1948 = vmatprep.subr.bf16.mxu0 %v1338
    %1949 = vmatpush1.bf16.msra.mxu0 %v1337
    %1950 = vmatprep.subr.bf16.mxu0 %v1346
    %1951 = vmatpush1.bf16.msra.mxu0 %v1345
    %1952 = vmatprep.subr.bf16.mxu0 %v1354
    %1953 = vmatpush1.bf16.msra.mxu0 %v1353
    %1954 = vmatprep.subr.bf16.mxu0 %v1362
    %1955 = vmatpush1.bf16.msra.mxu0 %v1361
    %1956 = vmatprep.subr.bf16.mxu0 %v1370
    %1957 = vmatpush1.bf16.msra.mxu0 %v1369
    %1958 = vmatprep.subr.bf16.mxu0 %v1378
    %1959 = vmatpush1.bf16.msra.mxu0 %v1377
    %1960 = vmatprep.subr.bf16.mxu0 %v1386
    %1961 = vmatpush1.bf16.msra.mxu0 %v1385
    %1962 = vmatprep.mubr.bf16.mxu0 %v358
    %1963 = vmatmul.mubr.bf16.gmra.mrb[0].mxu0 %v357
    %v1964 = vpop.f32.mrb[0].mxu0
    %v1965 = vadd.f32 %v1924, %v1964
    %v1966 = vpop.f32.mrb[0].mxu0
    %v1967 = vadd.f32 %v1926, %v1966
    %v1968 = vpop.f32.mrb[0].mxu0
    %v1969 = vpop.f32.mrb[0].mxu0
    %1970 = vdwg.mxu0
    %v1971 = vmax.f32 %v1719, 0.0
    %v1972 = vmax.f32 %v1721, 0.0
    %v1973 = vmax.f32 %v1801, 0.0
    %v1974 = vmax.f32 %v1803, 0.0
    %v1975 = vmax.f32 %v1883, 0.0
    %v1976 = vmax.f32 %v1885, 0.0
    %v1977 = vmax.f32 %v1965, 0.0
    %v1978 = vmax.f32 %v1967, 0.0
    %v1979 = vpack.c.bf16 %v1971, %v1971
    %v1980 = vpack.c.bf16 %v1972, %v1972
    %v1981 = vpack.c.bf16 %v1973, %v1973
    %v1982 = vpack.c.bf16 %v1974, %v1974
    %v1983 = vpack.c.bf16 %v1975, %v1975
    %v1984 = vpack.c.bf16 %v1976, %v1976
    %v1985 = vpack.c.bf16 %v1977, %v1977
    %v1986 = vpack.c.bf16 %v1978, %v1978
    %v1987 = vld [vmem:[#allocation5] sm:$0xff]
    %v1988 = vld [vmem:[#allocation5 + $0x8] sm:$0xff]
    %v1989 = vld [vmem:[#allocation5 + $0x10] sm:$0xff]
    %v1990 = vld [vmem:[#allocation5 + $0x18] sm:$0xff]
    %v1991 = vld [vmem:[#allocation5 + $0x20] sm:$0xff]
    %v1992 = vld [vmem:[#allocation5 + $0x28] sm:$0xff]
    %v1993 = vld [vmem:[#allocation5 + $0x30] sm:$0xff]
    %v1994 = vld [vmem:[#allocation5 + $0x38] sm:$0xff]
    %v1995 = vld [vmem:[#allocation5 + $0x40] sm:$0xff]
    %v1996 = vld [vmem:[#allocation5 + $0x48] sm:$0xff]
    %v1997 = vld [vmem:[#allocation5 + $0x50] sm:$0xff]
    %v1998 = vld [vmem:[#allocation5 + $0x58] sm:$0xff]
    %v1999 = vld [vmem:[#allocation5 + $0x60] sm:$0xff]
    %v2000 = vld [vmem:[#allocation5 + $0x68] sm:$0xff]
    %v2001 = vld [vmem:[#allocation5 + $0x70] sm:$0xff]
    %v2002 = vld [vmem:[#allocation5 + $0x78] sm:$0xff]
    %v2003 = vld [vmem:[#allocation5 + $0x80] sm:$0xff]
    %v2004 = vld [vmem:[#allocation5 + $0x88] sm:$0xff]
    %v2005 = vld [vmem:[#allocation5 + $0x90] sm:$0xff]
    %v2006 = vld [vmem:[#allocation5 + $0x98] sm:$0xff]
    %v2007 = vld [vmem:[#allocation5 + $0xa0] sm:$0xff]
    %v2008 = vld [vmem:[#allocation5 + $0xa8] sm:$0xff]
    %v2009 = vld [vmem:[#allocation5 + $0xb0] sm:$0xff]
    %v2010 = vld [vmem:[#allocation5 + $0xb8] sm:$0xff]
    %v2011 = vld [vmem:[#allocation5 + $0xc0] sm:$0xff]
    %v2012 = vld [vmem:[#allocation5 + $0xc8] sm:$0xff]
    %v2013 = vld [vmem:[#allocation5 + $0xd0] sm:$0xff]
    %v2014 = vld [vmem:[#allocation5 + $0xd8] sm:$0xff]
    %v2015 = vld [vmem:[#allocation5 + $0xe0] sm:$0xff]
    %v2016 = vld [vmem:[#allocation5 + $0xe8] sm:$0xff]
    %v2017 = vld [vmem:[#allocation5 + $0xf0] sm:$0xff]
    %v2018 = vld [vmem:[#allocation5 + $0xf8] sm:$0xff]
    %v2019 = vld [vmem:[#allocation5 + $0x100] sm:$0xff]
    %v2020 = vld [vmem:[#allocation5 + $0x108] sm:$0xff]
    %v2021 = vld [vmem:[#allocation5 + $0x110] sm:$0xff]
    %v2022 = vld [vmem:[#allocation5 + $0x118] sm:$0xff]
    %v2023 = vld [vmem:[#allocation5 + $0x120] sm:$0xff]
    %v2024 = vld [vmem:[#allocation5 + $0x128] sm:$0xff]
    %v2025 = vld [vmem:[#allocation5 + $0x130] sm:$0xff]
    %v2026 = vld [vmem:[#allocation5 + $0x138] sm:$0xff]
    %v2027 = vld [vmem:[#allocation5 + $0x140] sm:$0xff]
    %v2028 = vld [vmem:[#allocation5 + $0x148] sm:$0xff]
    %v2029 = vld [vmem:[#allocation5 + $0x150] sm:$0xff]
    %v2030 = vld [vmem:[#allocation5 + $0x158] sm:$0xff]
    %v2031 = vld [vmem:[#allocation5 + $0x160] sm:$0xff]
    %v2032 = vld [vmem:[#allocation5 + $0x168] sm:$0xff]
    %v2033 = vld [vmem:[#allocation5 + $0x170] sm:$0xff]
    %v2034 = vld [vmem:[#allocation5 + $0x178] sm:$0xff]
    %v2035 = vld [vmem:[#allocation5 + $0x180] sm:$0xff]
    %v2036 = vld [vmem:[#allocation5 + $0x188] sm:$0xff]
    %v2037 = vld [vmem:[#allocation5 + $0x190] sm:$0xff]
    %v2038 = vld [vmem:[#allocation5 + $0x198] sm:$0xff]
    %v2039 = vld [vmem:[#allocation5 + $0x1a0] sm:$0xff]
    %v2040 = vld [vmem:[#allocation5 + $0x1a8] sm:$0xff]
    %v2041 = vld [vmem:[#allocation5 + $0x1b0] sm:$0xff]
    %v2042 = vld [vmem:[#allocation5 + $0x1b8] sm:$0xff]
    %v2043 = vld [vmem:[#allocation5 + $0x1c0] sm:$0xff]
    %v2044 = vld [vmem:[#allocation5 + $0x1c8] sm:$0xff]
    %v2045 = vld [vmem:[#allocation5 + $0x1d0] sm:$0xff]
    %v2046 = vld [vmem:[#allocation5 + $0x1d8] sm:$0xff]
    %v2047 = vld [vmem:[#allocation5 + $0x1e0] sm:$0xff]
    %v2048 = vld [vmem:[#allocation5 + $0x1e8] sm:$0xff]
    %v2049 = vld [vmem:[#allocation5 + $0x1f0] sm:$0xff]
    %v2050 = vld [vmem:[#allocation5 + $0x1f8] sm:$0xff]
    %v2051 = vld [vmem:[#allocation5 + $0x200] sm:$0xff]
    %v2052 = vld [vmem:[#allocation5 + $0x208] sm:$0xff]
    %v2053 = vld [vmem:[#allocation5 + $0x210] sm:$0xff]
    %v2054 = vld [vmem:[#allocation5 + $0x218] sm:$0xff]
    %v2055 = vld [vmem:[#allocation5 + $0x220] sm:$0xff]
    %v2056 = vld [vmem:[#allocation5 + $0x228] sm:$0xff]
    %v2057 = vld [vmem:[#allocation5 + $0x230] sm:$0xff]
    %v2058 = vld [vmem:[#allocation5 + $0x238] sm:$0xff]
    %v2059 = vld [vmem:[#allocation5 + $0x240] sm:$0xff]
    %v2060 = vld [vmem:[#allocation5 + $0x248] sm:$0xff]
    %v2061 = vld [vmem:[#allocation5 + $0x250] sm:$0xff]
    %v2062 = vld [vmem:[#allocation5 + $0x258] sm:$0xff]
    %v2063 = vld [vmem:[#allocation5 + $0x260] sm:$0xff]
    %v2064 = vld [vmem:[#allocation5 + $0x268] sm:$0xff]
    %v2065 = vld [vmem:[#allocation5 + $0x270] sm:$0xff]
    %v2066 = vld [vmem:[#allocation5 + $0x278] sm:$0xff]
    %v2067 = vld [vmem:[#allocation5 + $0x280] sm:$0xff]
    %v2068 = vld [vmem:[#allocation5 + $0x288] sm:$0xff]
    %v2069 = vld [vmem:[#allocation5 + $0x290] sm:$0xff]
    %v2070 = vld [vmem:[#allocation5 + $0x298] sm:$0xff]
    %v2071 = vld [vmem:[#allocation5 + $0x2a0] sm:$0xff]
    %v2072 = vld [vmem:[#allocation5 + $0x2a8] sm:$0xff]
    %v2073 = vld [vmem:[#allocation5 + $0x2b0] sm:$0xff]
    %v2074 = vld [vmem:[#allocation5 + $0x2b8] sm:$0xff]
    %v2075 = vld [vmem:[#allocation5 + $0x2c0] sm:$0xff]
    %v2076 = vld [vmem:[#allocation5 + $0x2c8] sm:$0xff]
    %v2077 = vld [vmem:[#allocation5 + $0x2d0] sm:$0xff]
    %v2078 = vld [vmem:[#allocation5 + $0x2d8] sm:$0xff]
    %v2079 = vld [vmem:[#allocation5 + $0x2e0] sm:$0xff]
    %v2080 = vld [vmem:[#allocation5 + $0x2e8] sm:$0xff]
    %v2081 = vld [vmem:[#allocation5 + $0x2f0] sm:$0xff]
    %v2082 = vld [vmem:[#allocation5 + $0x2f8] sm:$0xff]
    %v2083 = vld [vmem:[#allocation5 + $0x300] sm:$0xff]
    %v2084 = vld [vmem:[#allocation5 + $0x308] sm:$0xff]
    %v2085 = vld [vmem:[#allocation5 + $0x310] sm:$0xff]
    %v2086 = vld [vmem:[#allocation5 + $0x318] sm:$0xff]
    %v2087 = vld [vmem:[#allocation5 + $0x320] sm:$0xff]
    %v2088 = vld [vmem:[#allocation5 + $0x328] sm:$0xff]
    %v2089 = vld [vmem:[#allocation5 + $0x330] sm:$0xff]
    %v2090 = vld [vmem:[#allocation5 + $0x338] sm:$0xff]
    %v2091 = vld [vmem:[#allocation5 + $0x340] sm:$0xff]
    %v2092 = vld [vmem:[#allocation5 + $0x348] sm:$0xff]
    %v2093 = vld [vmem:[#allocation5 + $0x350] sm:$0xff]
    %v2094 = vld [vmem:[#allocation5 + $0x358] sm:$0xff]
    %v2095 = vld [vmem:[#allocation5 + $0x360] sm:$0xff]
    %v2096 = vld [vmem:[#allocation5 + $0x368] sm:$0xff]
    %v2097 = vld [vmem:[#allocation5 + $0x370] sm:$0xff]
    %v2098 = vld [vmem:[#allocation5 + $0x378] sm:$0xff]
    %v2099 = vld [vmem:[#allocation5 + $0x380] sm:$0xff]
    %v2100 = vld [vmem:[#allocation5 + $0x388] sm:$0xff]
    %v2101 = vld [vmem:[#allocation5 + $0x390] sm:$0xff]
    %v2102 = vld [vmem:[#allocation5 + $0x398] sm:$0xff]
    %v2103 = vld [vmem:[#allocation5 + $0x3a0] sm:$0xff]
    %v2104 = vld [vmem:[#allocation5 + $0x3a8] sm:$0xff]
    %v2105 = vld [vmem:[#allocation5 + $0x3b0] sm:$0xff]
    %v2106 = vld [vmem:[#allocation5 + $0x3b8] sm:$0xff]
    %v2107 = vld [vmem:[#allocation5 + $0x3c0] sm:$0xff]
    %v2108 = vld [vmem:[#allocation5 + $0x3c8] sm:$0xff]
    %v2109 = vld [vmem:[#allocation5 + $0x3d0] sm:$0xff]
    %v2110 = vld [vmem:[#allocation5 + $0x3d8] sm:$0xff]
    %v2111 = vld [vmem:[#allocation5 + $0x3e0] sm:$0xff]
    %v2112 = vld [vmem:[#allocation5 + $0x3e8] sm:$0xff]
    %v2113 = vld [vmem:[#allocation5 + $0x3f0] sm:$0xff]
    %v2114 = vld [vmem:[#allocation5 + $0x3f8] sm:$0xff]
    %v2115 = vld [vmem:[#allocation5 + $0x400] sm:$0xff]
    %v2116 = vld [vmem:[#allocation5 + $0x408] sm:$0xff]
    %v2117 = vld [vmem:[#allocation5 + $0x410] sm:$0xff]
    %v2118 = vld [vmem:[#allocation5 + $0x418] sm:$0xff]
    %v2119 = vld [vmem:[#allocation5 + $0x420] sm:$0xff]
    %v2120 = vld [vmem:[#allocation5 + $0x428] sm:$0xff]
    %v2121 = vld [vmem:[#allocation5 + $0x430] sm:$0xff]
    %v2122 = vld [vmem:[#allocation5 + $0x438] sm:$0xff]
    %v2123 = vld [vmem:[#allocation5 + $0x440] sm:$0xff]
    %v2124 = vld [vmem:[#allocation5 + $0x448] sm:$0xff]
    %v2125 = vld [vmem:[#allocation5 + $0x450] sm:$0xff]
    %v2126 = vld [vmem:[#allocation5 + $0x458] sm:$0xff]
    %v2127 = vld [vmem:[#allocation5 + $0x460] sm:$0xff]
    %v2128 = vld [vmem:[#allocation5 + $0x468] sm:$0xff]
    %v2129 = vld [vmem:[#allocation5 + $0x470] sm:$0xff]
    %v2130 = vld [vmem:[#allocation5 + $0x478] sm:$0xff]
    %v2131 = vld [vmem:[#allocation5 + $0x480] sm:$0xff]
    %v2132 = vld [vmem:[#allocation5 + $0x488] sm:$0xff]
    %v2133 = vld [vmem:[#allocation5 + $0x490] sm:$0xff]
    %v2134 = vld [vmem:[#allocation5 + $0x498] sm:$0xff]
    %v2135 = vld [vmem:[#allocation5 + $0x4a0] sm:$0xff]
    %v2136 = vld [vmem:[#allocation5 + $0x4a8] sm:$0xff]
    %v2137 = vld [vmem:[#allocation5 + $0x4b0] sm:$0xff]
    %v2138 = vld [vmem:[#allocation5 + $0x4b8] sm:$0xff]
    %v2139 = vld [vmem:[#allocation5 + $0x4c0] sm:$0xff]
    %v2140 = vld [vmem:[#allocation5 + $0x4c8] sm:$0xff]
    %v2141 = vld [vmem:[#allocation5 + $0x4d0] sm:$0xff]
    %v2142 = vld [vmem:[#allocation5 + $0x4d8] sm:$0xff]
    %v2143 = vld [vmem:[#allocation5 + $0x4e0] sm:$0xff]
    %v2144 = vld [vmem:[#allocation5 + $0x4e8] sm:$0xff]
    %v2145 = vld [vmem:[#allocation5 + $0x4f0] sm:$0xff]
    %v2146 = vld [vmem:[#allocation5 + $0x4f8] sm:$0xff]
    %v2147 = vld [vmem:[#allocation5 + $0x500] sm:$0xff]
    %v2148 = vld [vmem:[#allocation5 + $0x508] sm:$0xff]
    %v2149 = vld [vmem:[#allocation5 + $0x510] sm:$0xff]
    %v2150 = vld [vmem:[#allocation5 + $0x518] sm:$0xff]
    %v2151 = vld [vmem:[#allocation5 + $0x520] sm:$0xff]
    %v2152 = vld [vmem:[#allocation5 + $0x528] sm:$0xff]
    %v2153 = vld [vmem:[#allocation5 + $0x530] sm:$0xff]
    %v2154 = vld [vmem:[#allocation5 + $0x538] sm:$0xff]
    %v2155 = vld [vmem:[#allocation5 + $0x540] sm:$0xff]
    %v2156 = vld [vmem:[#allocation5 + $0x548] sm:$0xff]
    %v2157 = vld [vmem:[#allocation5 + $0x550] sm:$0xff]
    %v2158 = vld [vmem:[#allocation5 + $0x558] sm:$0xff]
    %v2159 = vld [vmem:[#allocation5 + $0x560] sm:$0xff]
    %v2160 = vld [vmem:[#allocation5 + $0x568] sm:$0xff]
    %v2161 = vld [vmem:[#allocation5 + $0x570] sm:$0xff]
    %v2162 = vld [vmem:[#allocation5 + $0x578] sm:$0xff]
    %v2163 = vld [vmem:[#allocation5 + $0x580] sm:$0xff]
    %v2164 = vld [vmem:[#allocation5 + $0x588] sm:$0xff]
    %v2165 = vld [vmem:[#allocation5 + $0x590] sm:$0xff]
    %v2166 = vld [vmem:[#allocation5 + $0x598] sm:$0xff]
    %v2167 = vld [vmem:[#allocation5 + $0x5a0] sm:$0xff]
    %v2168 = vld [vmem:[#allocation5 + $0x5a8] sm:$0xff]
    %v2169 = vld [vmem:[#allocation5 + $0x5b0] sm:$0xff]
    %v2170 = vld [vmem:[#allocation5 + $0x5b8] sm:$0xff]
    %v2171 = vld [vmem:[#allocation5 + $0x5c0] sm:$0xff]
    %v2172 = vld [vmem:[#allocation5 + $0x5c8] sm:$0xff]
    %v2173 = vld [vmem:[#allocation5 + $0x5d0] sm:$0xff]
    %v2174 = vld [vmem:[#allocation5 + $0x5d8] sm:$0xff]
    %v2175 = vld [vmem:[#allocation5 + $0x5e0] sm:$0xff]
    %v2176 = vld [vmem:[#allocation5 + $0x5e8] sm:$0xff]
    %v2177 = vld [vmem:[#allocation5 + $0x5f0] sm:$0xff]
    %v2178 = vld [vmem:[#allocation5 + $0x5f8] sm:$0xff]
    %v2179 = vld [vmem:[#allocation5 + $0x600] sm:$0xff]
    %v2180 = vld [vmem:[#allocation5 + $0x608] sm:$0xff]
    %v2181 = vld [vmem:[#allocation5 + $0x610] sm:$0xff]
    %v2182 = vld [vmem:[#allocation5 + $0x618] sm:$0xff]
    %v2183 = vld [vmem:[#allocation5 + $0x620] sm:$0xff]
    %v2184 = vld [vmem:[#allocation5 + $0x628] sm:$0xff]
    %v2185 = vld [vmem:[#allocation5 + $0x630] sm:$0xff]
    %v2186 = vld [vmem:[#allocation5 + $0x638] sm:$0xff]
    %v2187 = vld [vmem:[#allocation5 + $0x640] sm:$0xff]
    %v2188 = vld [vmem:[#allocation5 + $0x648] sm:$0xff]
    %v2189 = vld [vmem:[#allocation5 + $0x650] sm:$0xff]
    %v2190 = vld [vmem:[#allocation5 + $0x658] sm:$0xff]
    %v2191 = vld [vmem:[#allocation5 + $0x660] sm:$0xff]
    %v2192 = vld [vmem:[#allocation5 + $0x668] sm:$0xff]
    %v2193 = vld [vmem:[#allocation5 + $0x670] sm:$0xff]
    %v2194 = vld [vmem:[#allocation5 + $0x678] sm:$0xff]
    %v2195 = vld [vmem:[#allocation5 + $0x680] sm:$0xff]
    %v2196 = vld [vmem:[#allocation5 + $0x688] sm:$0xff]
    %v2197 = vld [vmem:[#allocation5 + $0x690] sm:$0xff]
    %v2198 = vld [vmem:[#allocation5 + $0x698] sm:$0xff]
    %v2199 = vld [vmem:[#allocation5 + $0x6a0] sm:$0xff]
    %v2200 = vld [vmem:[#allocation5 + $0x6a8] sm:$0xff]
    %v2201 = vld [vmem:[#allocation5 + $0x6b0] sm:$0xff]
    %v2202 = vld [vmem:[#allocation5 + $0x6b8] sm:$0xff]
    %v2203 = vld [vmem:[#allocation5 + $0x6c0] sm:$0xff]
    %v2204 = vld [vmem:[#allocation5 + $0x6c8] sm:$0xff]
    %v2205 = vld [vmem:[#allocation5 + $0x6d0] sm:$0xff]
    %v2206 = vld [vmem:[#allocation5 + $0x6d8] sm:$0xff]
    %v2207 = vld [vmem:[#allocation5 + $0x6e0] sm:$0xff]
    %v2208 = vld [vmem:[#allocation5 + $0x6e8] sm:$0xff]
    %v2209 = vld [vmem:[#allocation5 + $0x6f0] sm:$0xff]
    %v2210 = vld [vmem:[#allocation5 + $0x6f8] sm:$0xff]
    %v2211 = vld [vmem:[#allocation5 + $0x700] sm:$0xff]
    %v2212 = vld [vmem:[#allocation5 + $0x708] sm:$0xff]
    %v2213 = vld [vmem:[#allocation5 + $0x710] sm:$0xff]
    %v2214 = vld [vmem:[#allocation5 + $0x718] sm:$0xff]
    %v2215 = vld [vmem:[#allocation5 + $0x720] sm:$0xff]
    %v2216 = vld [vmem:[#allocation5 + $0x728] sm:$0xff]
    %v2217 = vld [vmem:[#allocation5 + $0x730] sm:$0xff]
    %v2218 = vld [vmem:[#allocation5 + $0x738] sm:$0xff]
    %v2219 = vld [vmem:[#allocation5 + $0x740] sm:$0xff]
    %v2220 = vld [vmem:[#allocation5 + $0x748] sm:$0xff]
    %v2221 = vld [vmem:[#allocation5 + $0x750] sm:$0xff]
    %v2222 = vld [vmem:[#allocation5 + $0x758] sm:$0xff]
    %v2223 = vld [vmem:[#allocation5 + $0x760] sm:$0xff]
    %v2224 = vld [vmem:[#allocation5 + $0x768] sm:$0xff]
    %v2225 = vld [vmem:[#allocation5 + $0x770] sm:$0xff]
    %v2226 = vld [vmem:[#allocation5 + $0x778] sm:$0xff]
    %v2227 = vld [vmem:[#allocation5 + $0x780] sm:$0xff]
    %v2228 = vld [vmem:[#allocation5 + $0x788] sm:$0xff]
    %v2229 = vld [vmem:[#allocation5 + $0x790] sm:$0xff]
    %v2230 = vld [vmem:[#allocation5 + $0x798] sm:$0xff]
    %v2231 = vld [vmem:[#allocation5 + $0x7a0] sm:$0xff]
    %v2232 = vld [vmem:[#allocation5 + $0x7a8] sm:$0xff]
    %v2233 = vld [vmem:[#allocation5 + $0x7b0] sm:$0xff]
    %v2234 = vld [vmem:[#allocation5 + $0x7b8] sm:$0xff]
    %v2235 = vld [vmem:[#allocation5 + $0x7c0] sm:$0xff]
    %v2236 = vld [vmem:[#allocation5 + $0x7c8] sm:$0xff]
    %v2237 = vld [vmem:[#allocation5 + $0x7d0] sm:$0xff]
    %v2238 = vld [vmem:[#allocation5 + $0x7d8] sm:$0xff]
    %v2239 = vld [vmem:[#allocation5 + $0x7e0] sm:$0xff]
    %v2240 = vld [vmem:[#allocation5 + $0x7e8] sm:$0xff]
    %v2241 = vld [vmem:[#allocation5 + $0x7f0] sm:$0xff]
    %v2242 = vld [vmem:[#allocation5 + $0x7f8] sm:$0xff]
    %v2243 = vld [vmem:[%s4] sm:$0xf]
    %v2245 = vlaneseq
    %v2246 = vshrl.u32 %v2245, 7
    %v2247 = vsub.s32 0, %v2246
    %v2248 = vrot.slane %v2243, %v2247
    %v2249 = vlaneseq
    %v2250 = vshrl.u32 %v2249, 7
    %v2251 = vsub.s32 1, %v2250
    %v2252 = vrot.slane %v2243, %v2251
    %v2253 = vlaneseq
    %v2254 = vshrl.u32 %v2253, 7
    %v2255 = vsub.s32 2, %v2254
    %v2256 = vrot.slane %v2243, %v2255
    %v2257 = vlaneseq
    %v2258 = vshrl.u32 %v2257, 7
    %v2259 = vsub.s32 3, %v2258
    %v2260 = vrot.slane %v2243, %v2259
    %v2521 = vunpack.c.l.b16 %v1987
    %v2522 = vunpack.c.h.b16 %v1987
    %v2523 = vunpack.c.l.b16 %v1988
    %v2524 = vunpack.c.h.b16 %v1988
    %v2525 = vunpack.c.l.b16 %v1989
    %v2526 = vunpack.c.h.b16 %v1989
    %v2527 = vunpack.c.l.b16 %v1990
    %v2528 = vunpack.c.h.b16 %v1990
    %v2529 = vunpack.c.l.b16 %v1991
    %v2530 = vunpack.c.h.b16 %v1991
    %v2531 = vunpack.c.l.b16 %v1992
    %v2532 = vunpack.c.h.b16 %v1992
    %v2533 = vunpack.c.l.b16 %v1993
    %v2534 = vunpack.c.h.b16 %v1993
    %v2535 = vunpack.c.l.b16 %v1994
    %v2536 = vunpack.c.h.b16 %v1994
    %v2537 = vunpack.c.l.b16 %v1995
    %v2538 = vunpack.c.h.b16 %v1995
    %v2539 = vunpack.c.l.b16 %v1996
    %v2540 = vunpack.c.h.b16 %v1996
    %v2541 = vunpack.c.l.b16 %v1997
    %v2542 = vunpack.c.h.b16 %v1997
    %v2543 = vunpack.c.l.b16 %v1998
    %v2544 = vunpack.c.h.b16 %v1998
    %v2545 = vunpack.c.l.b16 %v1999
    %v2546 = vunpack.c.h.b16 %v1999
    %v2547 = vunpack.c.l.b16 %v2000
    %v2548 = vunpack.c.h.b16 %v2000
    %v2549 = vunpack.c.l.b16 %v2001
    %v2550 = vunpack.c.h.b16 %v2001
    %v2551 = vunpack.c.l.b16 %v2002
    %v2552 = vunpack.c.h.b16 %v2002
    %v2553 = vunpack.c.l.b16 %v2003
    %v2554 = vunpack.c.h.b16 %v2003
    %v2555 = vunpack.c.l.b16 %v2004
    %v2556 = vunpack.c.h.b16 %v2004
    %v2557 = vunpack.c.l.b16 %v2005
    %v2558 = vunpack.c.h.b16 %v2005
    %v2559 = vunpack.c.l.b16 %v2006
    %v2560 = vunpack.c.h.b16 %v2006
    %v2561 = vunpack.c.l.b16 %v2007
    %v2562 = vunpack.c.h.b16 %v2007
    %v2563 = vunpack.c.l.b16 %v2008
    %v2564 = vunpack.c.h.b16 %v2008
    %v2565 = vunpack.c.l.b16 %v2009
    %v2566 = vunpack.c.h.b16 %v2009
    %v2567 = vunpack.c.l.b16 %v2010
    %v2568 = vunpack.c.h.b16 %v2010
    %v2569 = vunpack.c.l.b16 %v2011
    %v2570 = vunpack.c.h.b16 %v2011
    %v2571 = vunpack.c.l.b16 %v2012
    %v2572 = vunpack.c.h.b16 %v2012
    %v2573 = vunpack.c.l.b16 %v2013
    %v2574 = vunpack.c.h.b16 %v2013
    %v2575 = vunpack.c.l.b16 %v2014
    %v2576 = vunpack.c.h.b16 %v2014
    %v2577 = vunpack.c.l.b16 %v2015
    %v2578 = vunpack.c.h.b16 %v2015
    %v2579 = vunpack.c.l.b16 %v2016
    %v2580 = vunpack.c.h.b16 %v2016
    %v2581 = vunpack.c.l.b16 %v2017
    %v2582 = vunpack.c.h.b16 %v2017
    %v2583 = vunpack.c.l.b16 %v2018
    %v2584 = vunpack.c.h.b16 %v2018
    %v2585 = vunpack.c.l.b16 %v2019
    %v2586 = vunpack.c.h.b16 %v2019
    %v2587 = vunpack.c.l.b16 %v2020
    %v2588 = vunpack.c.h.b16 %v2020
    %v2589 = vunpack.c.l.b16 %v2021
    %v2590 = vunpack.c.h.b16 %v2021
    %v2591 = vunpack.c.l.b16 %v2022
    %v2592 = vunpack.c.h.b16 %v2022
    %v2593 = vunpack.c.l.b16 %v2023
    %v2594 = vunpack.c.h.b16 %v2023
    %v2595 = vunpack.c.l.b16 %v2024
    %v2596 = vunpack.c.h.b16 %v2024
    %v2597 = vunpack.c.l.b16 %v2025
    %v2598 = vunpack.c.h.b16 %v2025
    %v2599 = vunpack.c.l.b16 %v2026
    %v2600 = vunpack.c.h.b16 %v2026
    %v2601 = vunpack.c.l.b16 %v2027
    %v2602 = vunpack.c.h.b16 %v2027
    %v2603 = vunpack.c.l.b16 %v2028
    %v2604 = vunpack.c.h.b16 %v2028
    %v2605 = vunpack.c.l.b16 %v2029
    %v2606 = vunpack.c.h.b16 %v2029
    %v2607 = vunpack.c.l.b16 %v2030
    %v2608 = vunpack.c.h.b16 %v2030
    %v2609 = vunpack.c.l.b16 %v2031
    %v2610 = vunpack.c.h.b16 %v2031
    %v2611 = vunpack.c.l.b16 %v2032
    %v2612 = vunpack.c.h.b16 %v2032
    %v2613 = vunpack.c.l.b16 %v2033
    %v2614 = vunpack.c.h.b16 %v2033
    %v2615 = vunpack.c.l.b16 %v2034
    %v2616 = vunpack.c.h.b16 %v2034
    %v2617 = vunpack.c.l.b16 %v2035
    %v2618 = vunpack.c.h.b16 %v2035
    %v2619 = vunpack.c.l.b16 %v2036
    %v2620 = vunpack.c.h.b16 %v2036
    %v2621 = vunpack.c.l.b16 %v2037
    %v2622 = vunpack.c.h.b16 %v2037
    %v2623 = vunpack.c.l.b16 %v2038
    %v2624 = vunpack.c.h.b16 %v2038
    %v2625 = vunpack.c.l.b16 %v2039
    %v2626 = vunpack.c.h.b16 %v2039
    %v2627 = vunpack.c.l.b16 %v2040
    %v2628 = vunpack.c.h.b16 %v2040
    %v2629 = vunpack.c.l.b16 %v2041
    %v2630 = vunpack.c.h.b16 %v2041
    %v2631 = vunpack.c.l.b16 %v2042
    %v2632 = vunpack.c.h.b16 %v2042
    %v2633 = vunpack.c.l.b16 %v2043
    %v2634 = vunpack.c.h.b16 %v2043
    %v2635 = vunpack.c.l.b16 %v2044
    %v2636 = vunpack.c.h.b16 %v2044
    %v2637 = vunpack.c.l.b16 %v2045
    %v2638 = vunpack.c.h.b16 %v2045
    %v2639 = vunpack.c.l.b16 %v2046
    %v2640 = vunpack.c.h.b16 %v2046
    %v2641 = vunpack.c.l.b16 %v2047
    %v2642 = vunpack.c.h.b16 %v2047
    %v2643 = vunpack.c.l.b16 %v2048
    %v2644 = vunpack.c.h.b16 %v2048
    %v2645 = vunpack.c.l.b16 %v2049
    %v2646 = vunpack.c.h.b16 %v2049
    %v2647 = vunpack.c.l.b16 %v2050
    %v2648 = vunpack.c.h.b16 %v2050
    %v2649 = vunpack.c.l.b16 %v2051
    %v2650 = vunpack.c.h.b16 %v2051
    %v2651 = vunpack.c.l.b16 %v2052
    %v2652 = vunpack.c.h.b16 %v2052
    %v2653 = vunpack.c.l.b16 %v2053
    %v2654 = vunpack.c.h.b16 %v2053
    %v2655 = vunpack.c.l.b16 %v2054
    %v2656 = vunpack.c.h.b16 %v2054
    %v2657 = vunpack.c.l.b16 %v2055
    %v2658 = vunpack.c.h.b16 %v2055
    %v2659 = vunpack.c.l.b16 %v2056
    %v2660 = vunpack.c.h.b16 %v2056
    %v2661 = vunpack.c.l.b16 %v2057
    %v2662 = vunpack.c.h.b16 %v2057
    %v2663 = vunpack.c.l.b16 %v2058
    %v2664 = vunpack.c.h.b16 %v2058
    %v2665 = vunpack.c.l.b16 %v2059
    %v2666 = vunpack.c.h.b16 %v2059
    %v2667 = vunpack.c.l.b16 %v2060
    %v2668 = vunpack.c.h.b16 %v2060
    %v2669 = vunpack.c.l.b16 %v2061
    %v2670 = vunpack.c.h.b16 %v2061
    %v2671 = vunpack.c.l.b16 %v2062
    %v2672 = vunpack.c.h.b16 %v2062
    %v2673 = vunpack.c.l.b16 %v2063
    %v2674 = vunpack.c.h.b16 %v2063
    %v2675 = vunpack.c.l.b16 %v2064
    %v2676 = vunpack.c.h.b16 %v2064
    %v2677 = vunpack.c.l.b16 %v2065
    %v2678 = vunpack.c.h.b16 %v2065
    %v2679 = vunpack.c.l.b16 %v2066
    %v2680 = vunpack.c.h.b16 %v2066
    %v2681 = vunpack.c.l.b16 %v2067
    %v2682 = vunpack.c.h.b16 %v2067
    %v2683 = vunpack.c.l.b16 %v2068
    %v2684 = vunpack.c.h.b16 %v2068
    %v2685 = vunpack.c.l.b16 %v2069
    %v2686 = vunpack.c.h.b16 %v2069
    %v2687 = vunpack.c.l.b16 %v2070
    %v2688 = vunpack.c.h.b16 %v2070
    %v2689 = vunpack.c.l.b16 %v2071
    %v2690 = vunpack.c.h.b16 %v2071
    %v2691 = vunpack.c.l.b16 %v2072
    %v2692 = vunpack.c.h.b16 %v2072
    %v2693 = vunpack.c.l.b16 %v2073
    %v2694 = vunpack.c.h.b16 %v2073
    %v2695 = vunpack.c.l.b16 %v2074
    %v2696 = vunpack.c.h.b16 %v2074
    %v2697 = vunpack.c.l.b16 %v2075
    %v2698 = vunpack.c.h.b16 %v2075
    %v2699 = vunpack.c.l.b16 %v2076
    %v2700 = vunpack.c.h.b16 %v2076
    %v2701 = vunpack.c.l.b16 %v2077
    %v2702 = vunpack.c.h.b16 %v2077
    %v2703 = vunpack.c.l.b16 %v2078
    %v2704 = vunpack.c.h.b16 %v2078
    %v2705 = vunpack.c.l.b16 %v2079
    %v2706 = vunpack.c.h.b16 %v2079
    %v2707 = vunpack.c.l.b16 %v2080
    %v2708 = vunpack.c.h.b16 %v2080
    %v2709 = vunpack.c.l.b16 %v2081
    %v2710 = vunpack.c.h.b16 %v2081
    %v2711 = vunpack.c.l.b16 %v2082
    %v2712 = vunpack.c.h.b16 %v2082
    %v2713 = vunpack.c.l.b16 %v2083
    %v2714 = vunpack.c.h.b16 %v2083
    %v2715 = vunpack.c.l.b16 %v2084
    %v2716 = vunpack.c.h.b16 %v2084
    %v2717 = vunpack.c.l.b16 %v2085
    %v2718 = vunpack.c.h.b16 %v2085
    %v2719 = vunpack.c.l.b16 %v2086
    %v2720 = vunpack.c.h.b16 %v2086
    %v2721 = vunpack.c.l.b16 %v2087
    %v2722 = vunpack.c.h.b16 %v2087
    %v2723 = vunpack.c.l.b16 %v2088
    %v2724 = vunpack.c.h.b16 %v2088
    %v2725 = vunpack.c.l.b16 %v2089
    %v2726 = vunpack.c.h.b16 %v2089
    %v2727 = vunpack.c.l.b16 %v2090
    %v2728 = vunpack.c.h.b16 %v2090
    %v2729 = vunpack.c.l.b16 %v2091
    %v2730 = vunpack.c.h.b16 %v2091
    %v2731 = vunpack.c.l.b16 %v2092
    %v2732 = vunpack.c.h.b16 %v2092
    %v2733 = vunpack.c.l.b16 %v2093
    %v2734 = vunpack.c.h.b16 %v2093
    %v2735 = vunpack.c.l.b16 %v2094
    %v2736 = vunpack.c.h.b16 %v2094
    %v2737 = vunpack.c.l.b16 %v2095
    %v2738 = vunpack.c.h.b16 %v2095
    %v2739 = vunpack.c.l.b16 %v2096
    %v2740 = vunpack.c.h.b16 %v2096
    %v2741 = vunpack.c.l.b16 %v2097
    %v2742 = vunpack.c.h.b16 %v2097
    %v2743 = vunpack.c.l.b16 %v2098
    %v2744 = vunpack.c.h.b16 %v2098
    %v2745 = vunpack.c.l.b16 %v2099
    %v2746 = vunpack.c.h.b16 %v2099
    %v2747 = vunpack.c.l.b16 %v2100
    %v2748 = vunpack.c.h.b16 %v2100
    %v2749 = vunpack.c.l.b16 %v2101
    %v2750 = vunpack.c.h.b16 %v2101
    %v2751 = vunpack.c.l.b16 %v2102
    %v2752 = vunpack.c.h.b16 %v2102
    %v2753 = vunpack.c.l.b16 %v2103
    %v2754 = vunpack.c.h.b16 %v2103
    %v2755 = vunpack.c.l.b16 %v2104
    %v2756 = vunpack.c.h.b16 %v2104
    %v2757 = vunpack.c.l.b16 %v2105
    %v2758 = vunpack.c.h.b16 %v2105
    %v2759 = vunpack.c.l.b16 %v2106
    %v2760 = vunpack.c.h.b16 %v2106
    %v2761 = vunpack.c.l.b16 %v2107
    %v2762 = vunpack.c.h.b16 %v2107
    %v2763 = vunpack.c.l.b16 %v2108
    %v2764 = vunpack.c.h.b16 %v2108
    %v2765 = vunpack.c.l.b16 %v2109
    %v2766 = vunpack.c.h.b16 %v2109
    %v2767 = vunpack.c.l.b16 %v2110
    %v2768 = vunpack.c.h.b16 %v2110
    %v2769 = vunpack.c.l.b16 %v2111
    %v2770 = vunpack.c.h.b16 %v2111
    %v2771 = vunpack.c.l.b16 %v2112
    %v2772 = vunpack.c.h.b16 %v2112
    %v2773 = vunpack.c.l.b16 %v2113
    %v2774 = vunpack.c.h.b16 %v2113
    %v2775 = vunpack.c.l.b16 %v2114
    %v2776 = vunpack.c.h.b16 %v2114
    %v2777 = vunpack.c.l.b16 %v2115
    %v2778 = vunpack.c.h.b16 %v2115
    %v2779 = vunpack.c.l.b16 %v2116
    %v2780 = vunpack.c.h.b16 %v2116
    %v2781 = vunpack.c.l.b16 %v2117
    %v2782 = vunpack.c.h.b16 %v2117
    %v2783 = vunpack.c.l.b16 %v2118
    %v2784 = vunpack.c.h.b16 %v2118
    %v2785 = vunpack.c.l.b16 %v2119
    %v2786 = vunpack.c.h.b16 %v2119
    %v2787 = vunpack.c.l.b16 %v2120
    %v2788 = vunpack.c.h.b16 %v2120
    %v2789 = vunpack.c.l.b16 %v2121
    %v2790 = vunpack.c.h.b16 %v2121
    %v2791 = vunpack.c.l.b16 %v2122
    %v2792 = vunpack.c.h.b16 %v2122
    %v2793 = vunpack.c.l.b16 %v2123
    %v2794 = vunpack.c.h.b16 %v2123
    %v2795 = vunpack.c.l.b16 %v2124
    %v2796 = vunpack.c.h.b16 %v2124
    %v2797 = vunpack.c.l.b16 %v2125
    %v2798 = vunpack.c.h.b16 %v2125
    %v2799 = vunpack.c.l.b16 %v2126
    %v2800 = vunpack.c.h.b16 %v2126
    %v2801 = vunpack.c.l.b16 %v2127
    %v2802 = vunpack.c.h.b16 %v2127
    %v2803 = vunpack.c.l.b16 %v2128
    %v2804 = vunpack.c.h.b16 %v2128
    %v2805 = vunpack.c.l.b16 %v2129
    %v2806 = vunpack.c.h.b16 %v2129
    %v2807 = vunpack.c.l.b16 %v2130
    %v2808 = vunpack.c.h.b16 %v2130
    %v2809 = vunpack.c.l.b16 %v2131
    %v2810 = vunpack.c.h.b16 %v2131
    %v2811 = vunpack.c.l.b16 %v2132
    %v2812 = vunpack.c.h.b16 %v2132
    %v2813 = vunpack.c.l.b16 %v2133
    %v2814 = vunpack.c.h.b16 %v2133
    %v2815 = vunpack.c.l.b16 %v2134
    %v2816 = vunpack.c.h.b16 %v2134
    %v2817 = vunpack.c.l.b16 %v2135
    %v2818 = vunpack.c.h.b16 %v2135
    %v2819 = vunpack.c.l.b16 %v2136
    %v2820 = vunpack.c.h.b16 %v2136
    %v2821 = vunpack.c.l.b16 %v2137
    %v2822 = vunpack.c.h.b16 %v2137
    %v2823 = vunpack.c.l.b16 %v2138
    %v2824 = vunpack.c.h.b16 %v2138
    %v2825 = vunpack.c.l.b16 %v2139
    %v2826 = vunpack.c.h.b16 %v2139
    %v2827 = vunpack.c.l.b16 %v2140
    %v2828 = vunpack.c.h.b16 %v2140
    %v2829 = vunpack.c.l.b16 %v2141
    %v2830 = vunpack.c.h.b16 %v2141
    %v2831 = vunpack.c.l.b16 %v2142
    %v2832 = vunpack.c.h.b16 %v2142
    %v2833 = vunpack.c.l.b16 %v2143
    %v2834 = vunpack.c.h.b16 %v2143
    %v2835 = vunpack.c.l.b16 %v2144
    %v2836 = vunpack.c.h.b16 %v2144
    %v2837 = vunpack.c.l.b16 %v2145
    %v2838 = vunpack.c.h.b16 %v2145
    %v2839 = vunpack.c.l.b16 %v2146
    %v2840 = vunpack.c.h.b16 %v2146
    %v2841 = vunpack.c.l.b16 %v2147
    %v2842 = vunpack.c.h.b16 %v2147
    %v2843 = vunpack.c.l.b16 %v2148
    %v2844 = vunpack.c.h.b16 %v2148
    %v2845 = vunpack.c.l.b16 %v2149
    %v2846 = vunpack.c.h.b16 %v2149
    %v2847 = vunpack.c.l.b16 %v2150
    %v2848 = vunpack.c.h.b16 %v2150
    %v2849 = vunpack.c.l.b16 %v2151
    %v2850 = vunpack.c.h.b16 %v2151
    %v2851 = vunpack.c.l.b16 %v2152
    %v2852 = vunpack.c.h.b16 %v2152
    %v2853 = vunpack.c.l.b16 %v2153
    %v2854 = vunpack.c.h.b16 %v2153
    %v2855 = vunpack.c.l.b16 %v2154
    %v2856 = vunpack.c.h.b16 %v2154
    %v2857 = vunpack.c.l.b16 %v2155
    %v2858 = vunpack.c.h.b16 %v2155
    %v2859 = vunpack.c.l.b16 %v2156
    %v2860 = vunpack.c.h.b16 %v2156
    %v2861 = vunpack.c.l.b16 %v2157
    %v2862 = vunpack.c.h.b16 %v2157
    %v2863 = vunpack.c.l.b16 %v2158
    %v2864 = vunpack.c.h.b16 %v2158
    %v2865 = vunpack.c.l.b16 %v2159
    %v2866 = vunpack.c.h.b16 %v2159
    %v2867 = vunpack.c.l.b16 %v2160
    %v2868 = vunpack.c.h.b16 %v2160
    %v2869 = vunpack.c.l.b16 %v2161
    %v2870 = vunpack.c.h.b16 %v2161
    %v2871 = vunpack.c.l.b16 %v2162
    %v2872 = vunpack.c.h.b16 %v2162
    %v2873 = vunpack.c.l.b16 %v2163
    %v2874 = vunpack.c.h.b16 %v2163
    %v2875 = vunpack.c.l.b16 %v2164
    %v2876 = vunpack.c.h.b16 %v2164
    %v2877 = vunpack.c.l.b16 %v2165
    %v2878 = vunpack.c.h.b16 %v2165
    %v2879 = vunpack.c.l.b16 %v2166
    %v2880 = vunpack.c.h.b16 %v2166
    %v2881 = vunpack.c.l.b16 %v2167
    %v2882 = vunpack.c.h.b16 %v2167
    %v2883 = vunpack.c.l.b16 %v2168
    %v2884 = vunpack.c.h.b16 %v2168
    %v2885 = vunpack.c.l.b16 %v2169
    %v2886 = vunpack.c.h.b16 %v2169
    %v2887 = vunpack.c.l.b16 %v2170
    %v2888 = vunpack.c.h.b16 %v2170
    %v2889 = vunpack.c.l.b16 %v2171
    %v2890 = vunpack.c.h.b16 %v2171
    %v2891 = vunpack.c.l.b16 %v2172
    %v2892 = vunpack.c.h.b16 %v2172
    %v2893 = vunpack.c.l.b16 %v2173
    %v2894 = vunpack.c.h.b16 %v2173
    %v2895 = vunpack.c.l.b16 %v2174
    %v2896 = vunpack.c.h.b16 %v2174
    %v2897 = vunpack.c.l.b16 %v2175
    %v2898 = vunpack.c.h.b16 %v2175
    %v2899 = vunpack.c.l.b16 %v2176
    %v2900 = vunpack.c.h.b16 %v2176
    %v2901 = vunpack.c.l.b16 %v2177
    %v2902 = vunpack.c.h.b16 %v2177
    %v2903 = vunpack.c.l.b16 %v2178
    %v2904 = vunpack.c.h.b16 %v2178
    %v2905 = vunpack.c.l.b16 %v2179
    %v2906 = vunpack.c.h.b16 %v2179
    %v2907 = vunpack.c.l.b16 %v2180
    %v2908 = vunpack.c.h.b16 %v2180
    %v2909 = vunpack.c.l.b16 %v2181
    %v2910 = vunpack.c.h.b16 %v2181
    %v2911 = vunpack.c.l.b16 %v2182
    %v2912 = vunpack.c.h.b16 %v2182
    %v2913 = vunpack.c.l.b16 %v2183
    %v2914 = vunpack.c.h.b16 %v2183
    %v2915 = vunpack.c.l.b16 %v2184
    %v2916 = vunpack.c.h.b16 %v2184
    %v2917 = vunpack.c.l.b16 %v2185
    %v2918 = vunpack.c.h.b16 %v2185
    %v2919 = vunpack.c.l.b16 %v2186
    %v2920 = vunpack.c.h.b16 %v2186
    %v2921 = vunpack.c.l.b16 %v2187
    %v2922 = vunpack.c.h.b16 %v2187
    %v2923 = vunpack.c.l.b16 %v2188
    %v2924 = vunpack.c.h.b16 %v2188
    %v2925 = vunpack.c.l.b16 %v2189
    %v2926 = vunpack.c.h.b16 %v2189
    %v2927 = vunpack.c.l.b16 %v2190
    %v2928 = vunpack.c.h.b16 %v2190
    %v2929 = vunpack.c.l.b16 %v2191
    %v2930 = vunpack.c.h.b16 %v2191
    %v2931 = vunpack.c.l.b16 %v2192
    %v2932 = vunpack.c.h.b16 %v2192
    %v2933 = vunpack.c.l.b16 %v2193
    %v2934 = vunpack.c.h.b16 %v2193
    %v2935 = vunpack.c.l.b16 %v2194
    %v2936 = vunpack.c.h.b16 %v2194
    %v2937 = vunpack.c.l.b16 %v2195
    %v2938 = vunpack.c.h.b16 %v2195
    %v2939 = vunpack.c.l.b16 %v2196
    %v2940 = vunpack.c.h.b16 %v2196
    %v2941 = vunpack.c.l.b16 %v2197
    %v2942 = vunpack.c.h.b16 %v2197
    %v2943 = vunpack.c.l.b16 %v2198
    %v2944 = vunpack.c.h.b16 %v2198
    %v2945 = vunpack.c.l.b16 %v2199
    %v2946 = vunpack.c.h.b16 %v2199
    %v2947 = vunpack.c.l.b16 %v2200
    %v2948 = vunpack.c.h.b16 %v2200
    %v2949 = vunpack.c.l.b16 %v2201
    %v2950 = vunpack.c.h.b16 %v2201
    %v2951 = vunpack.c.l.b16 %v2202
    %v2952 = vunpack.c.h.b16 %v2202
    %v2953 = vunpack.c.l.b16 %v2203
    %v2954 = vunpack.c.h.b16 %v2203
    %v2955 = vunpack.c.l.b16 %v2204
    %v2956 = vunpack.c.h.b16 %v2204
    %v2957 = vunpack.c.l.b16 %v2205
    %v2958 = vunpack.c.h.b16 %v2205
    %v2959 = vunpack.c.l.b16 %v2206
    %v2960 = vunpack.c.h.b16 %v2206
    %v2961 = vunpack.c.l.b16 %v2207
    %v2962 = vunpack.c.h.b16 %v2207
    %v2963 = vunpack.c.l.b16 %v2208
    %v2964 = vunpack.c.h.b16 %v2208
    %v2965 = vunpack.c.l.b16 %v2209
    %v2966 = vunpack.c.h.b16 %v2209
    %v2967 = vunpack.c.l.b16 %v2210
    %v2968 = vunpack.c.h.b16 %v2210
    %v2969 = vunpack.c.l.b16 %v2211
    %v2970 = vunpack.c.h.b16 %v2211
    %v2971 = vunpack.c.l.b16 %v2212
    %v2972 = vunpack.c.h.b16 %v2212
    %v2973 = vunpack.c.l.b16 %v2213
    %v2974 = vunpack.c.h.b16 %v2213
    %v2975 = vunpack.c.l.b16 %v2214
    %v2976 = vunpack.c.h.b16 %v2214
    %v2977 = vunpack.c.l.b16 %v2215
    %v2978 = vunpack.c.h.b16 %v2215
    %v2979 = vunpack.c.l.b16 %v2216
    %v2980 = vunpack.c.h.b16 %v2216
    %v2981 = vunpack.c.l.b16 %v2217
    %v2982 = vunpack.c.h.b16 %v2217
    %v2983 = vunpack.c.l.b16 %v2218
    %v2984 = vunpack.c.h.b16 %v2218
    %v2985 = vunpack.c.l.b16 %v2219
    %v2986 = vunpack.c.h.b16 %v2219
    %v2987 = vunpack.c.l.b16 %v2220
    %v2988 = vunpack.c.h.b16 %v2220
    %v2989 = vunpack.c.l.b16 %v2221
    %v2990 = vunpack.c.h.b16 %v2221
    %v2991 = vunpack.c.l.b16 %v2222
    %v2992 = vunpack.c.h.b16 %v2222
    %v2993 = vunpack.c.l.b16 %v2223
    %v2994 = vunpack.c.h.b16 %v2223
    %v2995 = vunpack.c.l.b16 %v2224
    %v2996 = vunpack.c.h.b16 %v2224
    %v2997 = vunpack.c.l.b16 %v2225
    %v2998 = vunpack.c.h.b16 %v2225
    %v2999 = vunpack.c.l.b16 %v2226
    %v3000 = vunpack.c.h.b16 %v2226
    %v3001 = vunpack.c.l.b16 %v2227
    %v3002 = vunpack.c.h.b16 %v2227
    %v3003 = vunpack.c.l.b16 %v2228
    %v3004 = vunpack.c.h.b16 %v2228
    %v3005 = vunpack.c.l.b16 %v2229
    %v3006 = vunpack.c.h.b16 %v2229
    %v3007 = vunpack.c.l.b16 %v2230
    %v3008 = vunpack.c.h.b16 %v2230
    %v3009 = vunpack.c.l.b16 %v2231
    %v3010 = vunpack.c.h.b16 %v2231
    %v3011 = vunpack.c.l.b16 %v2232
    %v3012 = vunpack.c.h.b16 %v2232
    %v3013 = vunpack.c.l.b16 %v2233
    %v3014 = vunpack.c.h.b16 %v2233
    %v3015 = vunpack.c.l.b16 %v2234
    %v3016 = vunpack.c.h.b16 %v2234
    %v3017 = vunpack.c.l.b16 %v2235
    %v3018 = vunpack.c.h.b16 %v2235
    %v3019 = vunpack.c.l.b16 %v2236
    %v3020 = vunpack.c.h.b16 %v2236
    %v3021 = vunpack.c.l.b16 %v2237
    %v3022 = vunpack.c.h.b16 %v2237
    %v3023 = vunpack.c.l.b16 %v2238
    %v3024 = vunpack.c.h.b16 %v2238
    %v3025 = vunpack.c.l.b16 %v2239
    %v3026 = vunpack.c.h.b16 %v2239
    %v3027 = vunpack.c.l.b16 %v2240
    %v3028 = vunpack.c.h.b16 %v2240
    %v3029 = vunpack.c.l.b16 %v2241
    %v3030 = vunpack.c.h.b16 %v2241
    %v3031 = vunpack.c.l.b16 %v2242
    %v3032 = vunpack.c.h.b16 %v2242
    %v3033 = vpack.c.b16 %v2525, %v2521
    %v3034 = vpack.c.b16 %v2526, %v2522
    %v3035 = vpack.c.b16 %v2527, %v2523
    %v3036 = vpack.c.b16 %v2528, %v2524
    %v3037 = vpack.c.b16 %v2533, %v2529
    %v3038 = vpack.c.b16 %v2534, %v2530
    %v3039 = vpack.c.b16 %v2535, %v2531
    %v3040 = vpack.c.b16 %v2536, %v2532
    %v3041 = vpack.c.b16 %v2541, %v2537
    %v3042 = vpack.c.b16 %v2542, %v2538
    %v3043 = vpack.c.b16 %v2543, %v2539
    %v3044 = vpack.c.b16 %v2544, %v2540
    %v3045 = vpack.c.b16 %v2549, %v2545
    %v3046 = vpack.c.b16 %v2550, %v2546
    %v3047 = vpack.c.b16 %v2551, %v2547
    %v3048 = vpack.c.b16 %v2552, %v2548
    %v3049 = vpack.c.b16 %v2557, %v2553
    %v3050 = vpack.c.b16 %v2558, %v2554
    %v3051 = vpack.c.b16 %v2559, %v2555
    %v3052 = vpack.c.b16 %v2560, %v2556
    %v3053 = vpack.c.b16 %v2565, %v2561
    %v3054 = vpack.c.b16 %v2566, %v2562
    %v3055 = vpack.c.b16 %v2567, %v2563
    %v3056 = vpack.c.b16 %v2568, %v2564
    %v3057 = vpack.c.b16 %v2573, %v2569
    %v3058 = vpack.c.b16 %v2574, %v2570
    %v3059 = vpack.c.b16 %v2575, %v2571
    %v3060 = vpack.c.b16 %v2576, %v2572
    %v3061 = vpack.c.b16 %v2581, %v2577
    %v3062 = vpack.c.b16 %v2582, %v2578
    %v3063 = vpack.c.b16 %v2583, %v2579
    %v3064 = vpack.c.b16 %v2584, %v2580
    %v3065 = vpack.c.b16 %v2589, %v2585
    %v3066 = vpack.c.b16 %v2590, %v2586
    %v3067 = vpack.c.b16 %v2591, %v2587
    %v3068 = vpack.c.b16 %v2592, %v2588
    %v3069 = vpack.c.b16 %v2597, %v2593
    %v3070 = vpack.c.b16 %v2598, %v2594
    %v3071 = vpack.c.b16 %v2599, %v2595
    %v3072 = vpack.c.b16 %v2600, %v2596
    %v3073 = vpack.c.b16 %v2605, %v2601
    %v3074 = vpack.c.b16 %v2606, %v2602
    %v3075 = vpack.c.b16 %v2607, %v2603
    %v3076 = vpack.c.b16 %v2608, %v2604
    %v3077 = vpack.c.b16 %v2613, %v2609
    %v3078 = vpack.c.b16 %v2614, %v2610
    %v3079 = vpack.c.b16 %v2615, %v2611
    %v3080 = vpack.c.b16 %v2616, %v2612
    %v3081 = vpack.c.b16 %v2621, %v2617
    %v3082 = vpack.c.b16 %v2622, %v2618
    %v3083 = vpack.c.b16 %v2623, %v2619
    %v3084 = vpack.c.b16 %v2624, %v2620
    %v3085 = vpack.c.b16 %v2629, %v2625
    %v3086 = vpack.c.b16 %v2630, %v2626
    %v3087 = vpack.c.b16 %v2631, %v2627
    %v3088 = vpack.c.b16 %v2632, %v2628
    %v3089 = vpack.c.b16 %v2637, %v2633
    %v3090 = vpack.c.b16 %v2638, %v2634
    %v3091 = vpack.c.b16 %v2639, %v2635
    %v3092 = vpack.c.b16 %v2640, %v2636
    %v3093 = vpack.c.b16 %v2645, %v2641
    %v3094 = vpack.c.b16 %v2646, %v2642
    %v3095 = vpack.c.b16 %v2647, %v2643
    %v3096 = vpack.c.b16 %v2648, %v2644
    %v3097 = vpack.c.b16 %v2653, %v2649
    %v3098 = vpack.c.b16 %v2654, %v2650
    %v3099 = vpack.c.b16 %v2655, %v2651
    %v3100 = vpack.c.b16 %v2656, %v2652
    %v3101 = vpack.c.b16 %v2661, %v2657
    %v3102 = vpack.c.b16 %v2662, %v2658
    %v3103 = vpack.c.b16 %v2663, %v2659
    %v3104 = vpack.c.b16 %v2664, %v2660
    %v3105 = vpack.c.b16 %v2669, %v2665
    %v3106 = vpack.c.b16 %v2670, %v2666
    %v3107 = vpack.c.b16 %v2671, %v2667
    %v3108 = vpack.c.b16 %v2672, %v2668
    %v3109 = vpack.c.b16 %v2677, %v2673
    %v3110 = vpack.c.b16 %v2678, %v2674
    %v3111 = vpack.c.b16 %v2679, %v2675
    %v3112 = vpack.c.b16 %v2680, %v2676
    %v3113 = vpack.c.b16 %v2685, %v2681
    %v3114 = vpack.c.b16 %v2686, %v2682
    %v3115 = vpack.c.b16 %v2687, %v2683
    %v3116 = vpack.c.b16 %v2688, %v2684
    %v3117 = vpack.c.b16 %v2693, %v2689
    %v3118 = vpack.c.b16 %v2694, %v2690
    %v3119 = vpack.c.b16 %v2695, %v2691
    %v3120 = vpack.c.b16 %v2696, %v2692
    %v3121 = vpack.c.b16 %v2701, %v2697
    %v3122 = vpack.c.b16 %v2702, %v2698
    %v3123 = vpack.c.b16 %v2703, %v2699
    %v3124 = vpack.c.b16 %v2704, %v2700
    %v3125 = vpack.c.b16 %v2709, %v2705
    %v3126 = vpack.c.b16 %v2710, %v2706
    %v3127 = vpack.c.b16 %v2711, %v2707
    %v3128 = vpack.c.b16 %v2712, %v2708
    %v3129 = vpack.c.b16 %v2717, %v2713
    %v3130 = vpack.c.b16 %v2718, %v2714
    %v3131 = vpack.c.b16 %v2719, %v2715
    %v3132 = vpack.c.b16 %v2720, %v2716
    %v3133 = vpack.c.b16 %v2725, %v2721
    %v3134 = vpack.c.b16 %v2726, %v2722
    %v3135 = vpack.c.b16 %v2727, %v2723
    %v3136 = vpack.c.b16 %v2728, %v2724
    %v3137 = vpack.c.b16 %v2733, %v2729
    %v3138 = vpack.c.b16 %v2734, %v2730
    %v3139 = vpack.c.b16 %v2735, %v2731
    %v3140 = vpack.c.b16 %v2736, %v2732
    %v3141 = vpack.c.b16 %v2741, %v2737
    %v3142 = vpack.c.b16 %v2742, %v2738
    %v3143 = vpack.c.b16 %v2743, %v2739
    %v3144 = vpack.c.b16 %v2744, %v2740
    %v3145 = vpack.c.b16 %v2749, %v2745
    %v3146 = vpack.c.b16 %v2750, %v2746
    %v3147 = vpack.c.b16 %v2751, %v2747
    %v3148 = vpack.c.b16 %v2752, %v2748
    %v3149 = vpack.c.b16 %v2757, %v2753
    %v3150 = vpack.c.b16 %v2758, %v2754
    %v3151 = vpack.c.b16 %v2759, %v2755
    %v3152 = vpack.c.b16 %v2760, %v2756
    %v3153 = vpack.c.b16 %v2765, %v2761
    %v3154 = vpack.c.b16 %v2766, %v2762
    %v3155 = vpack.c.b16 %v2767, %v2763
    %v3156 = vpack.c.b16 %v2768, %v2764
    %v3157 = vpack.c.b16 %v2773, %v2769
    %v3158 = vpack.c.b16 %v2774, %v2770
    %v3159 = vpack.c.b16 %v2775, %v2771
    %v3160 = vpack.c.b16 %v2776, %v2772
    %v3161 = vpack.c.b16 %v2781, %v2777
    %v3162 = vpack.c.b16 %v2782, %v2778
    %v3163 = vpack.c.b16 %v2783, %v2779
    %v3164 = vpack.c.b16 %v2784, %v2780
    %v3165 = vpack.c.b16 %v2789, %v2785
    %v3166 = vpack.c.b16 %v2790, %v2786
    %v3167 = vpack.c.b16 %v2791, %v2787
    %v3168 = vpack.c.b16 %v2792, %v2788
    %v3169 = vpack.c.b16 %v2797, %v2793
    %v3170 = vpack.c.b16 %v2798, %v2794
    %v3171 = vpack.c.b16 %v2799, %v2795
    %v3172 = vpack.c.b16 %v2800, %v2796
    %v3173 = vpack.c.b16 %v2805, %v2801
    %v3174 = vpack.c.b16 %v2806, %v2802
    %v3175 = vpack.c.b16 %v2807, %v2803
    %v3176 = vpack.c.b16 %v2808, %v2804
    %v3177 = vpack.c.b16 %v2813, %v2809
    %v3178 = vpack.c.b16 %v2814, %v2810
    %v3179 = vpack.c.b16 %v2815, %v2811
    %v3180 = vpack.c.b16 %v2816, %v2812
    %v3181 = vpack.c.b16 %v2821, %v2817
    %v3182 = vpack.c.b16 %v2822, %v2818
    %v3183 = vpack.c.b16 %v2823, %v2819
    %v3184 = vpack.c.b16 %v2824, %v2820
    %v3185 = vpack.c.b16 %v2829, %v2825
    %v3186 = vpack.c.b16 %v2830, %v2826
    %v3187 = vpack.c.b16 %v2831, %v2827
    %v3188 = vpack.c.b16 %v2832, %v2828
    %v3189 = vpack.c.b16 %v2837, %v2833
    %v3190 = vpack.c.b16 %v2838, %v2834
    %v3191 = vpack.c.b16 %v2839, %v2835
    %v3192 = vpack.c.b16 %v2840, %v2836
    %v3193 = vpack.c.b16 %v2845, %v2841
    %v3194 = vpack.c.b16 %v2846, %v2842
    %v3195 = vpack.c.b16 %v2847, %v2843
    %v3196 = vpack.c.b16 %v2848, %v2844
    %v3197 = vpack.c.b16 %v2853, %v2849
    %v3198 = vpack.c.b16 %v2854, %v2850
    %v3199 = vpack.c.b16 %v2855, %v2851
    %v3200 = vpack.c.b16 %v2856, %v2852
    %v3201 = vpack.c.b16 %v2861, %v2857
    %v3202 = vpack.c.b16 %v2862, %v2858
    %v3203 = vpack.c.b16 %v2863, %v2859
    %v3204 = vpack.c.b16 %v2864, %v2860
    %v3205 = vpack.c.b16 %v2869, %v2865
    %v3206 = vpack.c.b16 %v2870, %v2866
    %v3207 = vpack.c.b16 %v2871, %v2867
    %v3208 = vpack.c.b16 %v2872, %v2868
    %v3209 = vpack.c.b16 %v2877, %v2873
    %v3210 = vpack.c.b16 %v2878, %v2874
    %v3211 = vpack.c.b16 %v2879, %v2875
    %v3212 = vpack.c.b16 %v2880, %v2876
    %v3213 = vpack.c.b16 %v2885, %v2881
    %v3214 = vpack.c.b16 %v2886, %v2882
    %v3215 = vpack.c.b16 %v2887, %v2883
    %v3216 = vpack.c.b16 %v2888, %v2884
    %v3217 = vpack.c.b16 %v2893, %v2889
    %v3218 = vpack.c.b16 %v2894, %v2890
    %v3219 = vpack.c.b16 %v2895, %v2891
    %v3220 = vpack.c.b16 %v2896, %v2892
    %v3221 = vpack.c.b16 %v2901, %v2897
    %v3222 = vpack.c.b16 %v2902, %v2898
    %v3223 = vpack.c.b16 %v2903, %v2899
    %v3224 = vpack.c.b16 %v2904, %v2900
    %v3225 = vpack.c.b16 %v2909, %v2905
    %v3226 = vpack.c.b16 %v2910, %v2906
    %v3227 = vpack.c.b16 %v2911, %v2907
    %v3228 = vpack.c.b16 %v2912, %v2908
    %v3229 = vpack.c.b16 %v2917, %v2913
    %v3230 = vpack.c.b16 %v2918, %v2914
    %v3231 = vpack.c.b16 %v2919, %v2915
    %v3232 = vpack.c.b16 %v2920, %v2916
    %v3233 = vpack.c.b16 %v2925, %v2921
    %v3234 = vpack.c.b16 %v2926, %v2922
    %v3235 = vpack.c.b16 %v2927, %v2923
    %v3236 = vpack.c.b16 %v2928, %v2924
    %v3237 = vpack.c.b16 %v2933, %v2929
    %v3238 = vpack.c.b16 %v2934, %v2930
    %v3239 = vpack.c.b16 %v2935, %v2931
    %v3240 = vpack.c.b16 %v2936, %v2932
    %v3241 = vpack.c.b16 %v2941, %v2937
    %v3242 = vpack.c.b16 %v2942, %v2938
    %v3243 = vpack.c.b16 %v2943, %v2939
    %v3244 = vpack.c.b16 %v2944, %v2940
    %v3245 = vpack.c.b16 %v2949, %v2945
    %v3246 = vpack.c.b16 %v2950, %v2946
    %v3247 = vpack.c.b16 %v2951, %v2947
    %v3248 = vpack.c.b16 %v2952, %v2948
    %v3249 = vpack.c.b16 %v2957, %v2953
    %v3250 = vpack.c.b16 %v2958, %v2954
    %v3251 = vpack.c.b16 %v2959, %v2955
    %v3252 = vpack.c.b16 %v2960, %v2956
    %v3253 = vpack.c.b16 %v2965, %v2961
    %v3254 = vpack.c.b16 %v2966, %v2962
    %v3255 = vpack.c.b16 %v2967, %v2963
    %v3256 = vpack.c.b16 %v2968, %v2964
    %v3257 = vpack.c.b16 %v2973, %v2969
    %v3258 = vpack.c.b16 %v2974, %v2970
    %v3259 = vpack.c.b16 %v2975, %v2971
    %v3260 = vpack.c.b16 %v2976, %v2972
    %v3261 = vpack.c.b16 %v2981, %v2977
    %v3262 = vpack.c.b16 %v2982, %v2978
    %v3263 = vpack.c.b16 %v2983, %v2979
    %v3264 = vpack.c.b16 %v2984, %v2980
    %v3265 = vpack.c.b16 %v2989, %v2985
    %v3266 = vpack.c.b16 %v2990, %v2986
    %v3267 = vpack.c.b16 %v2991, %v2987
    %v3268 = vpack.c.b16 %v2992, %v2988
    %v3269 = vpack.c.b16 %v2997, %v2993
    %v3270 = vpack.c.b16 %v2998, %v2994
    %v3271 = vpack.c.b16 %v2999, %v2995
    %v3272 = vpack.c.b16 %v3000, %v2996
    %v3273 = vpack.c.b16 %v3005, %v3001
    %v3274 = vpack.c.b16 %v3006, %v3002
    %v3275 = vpack.c.b16 %v3007, %v3003
    %v3276 = vpack.c.b16 %v3008, %v3004
    %v3277 = vpack.c.b16 %v3013, %v3009
    %v3278 = vpack.c.b16 %v3014, %v3010
    %v3279 = vpack.c.b16 %v3015, %v3011
    %v3280 = vpack.c.b16 %v3016, %v3012
    %v3281 = vpack.c.b16 %v3021, %v3017
    %v3282 = vpack.c.b16 %v3022, %v3018
    %v3283 = vpack.c.b16 %v3023, %v3019
    %v3284 = vpack.c.b16 %v3024, %v3020
    %v3285 = vpack.c.b16 %v3029, %v3025
    %v3286 = vpack.c.b16 %v3030, %v3026
    %v3287 = vpack.c.b16 %v3031, %v3027
    %v3288 = vpack.c.b16 %v3032, %v3028
    %3545 = vmatprep.subr.bf16.mxu0 %v3034
    %3546 = vmatpush1.bf16.msra.mxu0 %v3033
    %3547 = vmatprep.subr.bf16.mxu0 %v3038
    %3548 = vmatpush1.bf16.msra.mxu0 %v3037
    %3549 = vmatprep.subr.bf16.mxu0 %v3042
    %3550 = vmatpush1.bf16.msra.mxu0 %v3041
    %3551 = vmatprep.subr.bf16.mxu0 %v3046
    %3552 = vmatpush1.bf16.msra.mxu0 %v3045
    %3553 = vmatprep.subr.bf16.mxu0 %v3050
    %3554 = vmatpush1.bf16.msra.mxu0 %v3049
    %3555 = vmatprep.subr.bf16.mxu0 %v3054
    %3556 = vmatpush1.bf16.msra.mxu0 %v3053
    %3557 = vmatprep.subr.bf16.mxu0 %v3058
    %3558 = vmatpush1.bf16.msra.mxu0 %v3057
    %3559 = vmatprep.subr.bf16.mxu0 %v3062
    %3560 = vmatpush1.bf16.msra.mxu0 %v3061
    %3561 = vmatprep.subr.bf16.mxu0 %v3066
    %3562 = vmatpush1.bf16.msra.mxu0 %v3065
    %3563 = vmatprep.subr.bf16.mxu0 %v3070
    %3564 = vmatpush1.bf16.msra.mxu0 %v3069
    %3565 = vmatprep.subr.bf16.mxu0 %v3074
    %3566 = vmatpush1.bf16.msra.mxu0 %v3073
    %3567 = vmatprep.subr.bf16.mxu0 %v3078
    %3568 = vmatpush1.bf16.msra.mxu0 %v3077
    %3569 = vmatprep.subr.bf16.mxu0 %v3082
    %3570 = vmatpush1.bf16.msra.mxu0 %v3081
    %3571 = vmatprep.subr.bf16.mxu0 %v3086
    %3572 = vmatpush1.bf16.msra.mxu0 %v3085
    %3573 = vmatprep.subr.bf16.mxu0 %v3090
    %3574 = vmatpush1.bf16.msra.mxu0 %v3089
    %3575 = vmatprep.subr.bf16.mxu0 %v3094
    %3576 = vmatpush1.bf16.msra.mxu0 %v3093
    %3577 = vmatprep.mubr.bf16.mxu0 %v1980
    %3578 = vmatmul.mubr.bf16.gmra.mrb[0].mxu0 %v1979
    %v3579 = vpop.f32.mrb[0].mxu0
    %v3580 = vadd.f32 %v2248, %v3579
    %v3581 = vpop.f32.mrb[0].mxu0
    %v3582 = vadd.f32 %v2252, %v3581
    %v3583 = vpop.f32.mrb[0].mxu0
    %v3584 = vpop.f32.mrb[0].mxu0
    %3585 = vdwg.mxu0
    %3586 = vmatprep.subr.bf16.mxu0 %v3098
    %3587 = vmatpush1.bf16.msra.mxu0 %v3097
    %3588 = vmatprep.subr.bf16.mxu0 %v3102
    %3589 = vmatpush1.bf16.msra.mxu0 %v3101
    %3590 = vmatprep.subr.bf16.mxu0 %v3106
    %3591 = vmatpush1.bf16.msra.mxu0 %v3105
    %3592 = vmatprep.subr.bf16.mxu0 %v3110
    %3593 = vmatpush1.bf16.msra.mxu0 %v3109
    %3594 = vmatprep.subr.bf16.mxu0 %v3114
    %3595 = vmatpush1.bf16.msra.mxu0 %v3113
    %3596 = vmatprep.subr.bf16.mxu0 %v3118
    %3597 = vmatpush1.bf16.msra.mxu0 %v3117
    %3598 = vmatprep.subr.bf16.mxu0 %v3122
    %3599 = vmatpush1.bf16.msra.mxu0 %v3121
    %3600 = vmatprep.subr.bf16.mxu0 %v3126
    %3601 = vmatpush1.bf16.msra.mxu0 %v3125
    %3602 = vmatprep.subr.bf16.mxu0 %v3130
    %3603 = vmatpush1.bf16.msra.mxu0 %v3129
    %3604 = vmatprep.subr.bf16.mxu0 %v3134
    %3605 = vmatpush1.bf16.msra.mxu0 %v3133
    %3606 = vmatprep.subr.bf16.mxu0 %v3138
    %3607 = vmatpush1.bf16.msra.mxu0 %v3137
    %3608 = vmatprep.subr.bf16.mxu0 %v3142
    %3609 = vmatpush1.bf16.msra.mxu0 %v3141
    %3610 = vmatprep.subr.bf16.mxu0 %v3146
    %3611 = vmatpush1.bf16.msra.mxu0 %v3145
    %3612 = vmatprep.subr.bf16.mxu0 %v3150
    %3613 = vmatpush1.bf16.msra.mxu0 %v3149
    %3614 = vmatprep.subr.bf16.mxu0 %v3154
    %3615 = vmatpush1.bf16.msra.mxu0 %v3153
    %3616 = vmatprep.subr.bf16.mxu0 %v3158
    %3617 = vmatpush1.bf16.msra.mxu0 %v3157
    %3618 = vmatprep.mubr.bf16.mxu0 %v1982
    %3619 = vmatmul.mubr.bf16.gmra.mrb[0].mxu0 %v1981
    %v3620 = vpop.f32.mrb[0].mxu0
    %v3621 = vadd.f32 %v3580, %v3620
    %v3622 = vpop.f32.mrb[0].mxu0
    %v3623 = vadd.f32 %v3582, %v3622
    %v3624 = vpop.f32.mrb[0].mxu0
    %v3625 = vpop.f32.mrb[0].mxu0
    %3626 = vdwg.mxu0
    %3627 = vmatprep.subr.bf16.mxu0 %v3162
    %3628 = vmatpush1.bf16.msra.mxu0 %v3161
    %3629 = vmatprep.subr.bf16.mxu0 %v3166
    %3630 = vmatpush1.bf16.msra.mxu0 %v3165
    %3631 = vmatprep.subr.bf16.mxu0 %v3170
    %3632 = vmatpush1.bf16.msra.mxu0 %v3169
    %3633 = vmatprep.subr.bf16.mxu0 %v3174
    %3634 = vmatpush1.bf16.msra.mxu0 %v3173
    %3635 = vmatprep.subr.bf16.mxu0 %v3178
    %3636 = vmatpush1.bf16.msra.mxu0 %v3177
    %3637 = vmatprep.subr.bf16.mxu0 %v3182
    %3638 = vmatpush1.bf16.msra.mxu0 %v3181
    %3639 = vmatprep.subr.bf16.mxu0 %v3186
    %3640 = vmatpush1.bf16.msra.mxu0 %v3185
    %3641 = vmatprep.subr.bf16.mxu0 %v3190
    %3642 = vmatpush1.bf16.msra.mxu0 %v3189
    %3643 = vmatprep.subr.bf16.mxu0 %v3194
    %3644 = vmatpush1.bf16.msra.mxu0 %v3193
    %3645 = vmatprep.subr.bf16.mxu0 %v3198
    %3646 = vmatpush1.bf16.msra.mxu0 %v3197
    %3647 = vmatprep.subr.bf16.mxu0 %v3202
    %3648 = vmatpush1.bf16.msra.mxu0 %v3201
    %3649 = vmatprep.subr.bf16.mxu0 %v3206
    %3650 = vmatpush1.bf16.msra.mxu0 %v3205
    %3651 = vmatprep.subr.bf16.mxu0 %v3210
    %3652 = vmatpush1.bf16.msra.mxu0 %v3209
    %3653 = vmatprep.subr.bf16.mxu0 %v3214
    %3654 = vmatpush1.bf16.msra.mxu0 %v3213
    %3655 = vmatprep.subr.bf16.mxu0 %v3218
    %3656 = vmatpush1.bf16.msra.mxu0 %v3217
    %3657 = vmatprep.subr.bf16.mxu0 %v3222
    %3658 = vmatpush1.bf16.msra.mxu0 %v3221
    %3659 = vmatprep.mubr.bf16.mxu0 %v1984
    %3660 = vmatmul.mubr.bf16.gmra.mrb[0].mxu0 %v1983
    %v3661 = vpop.f32.mrb[0].mxu0
    %v3662 = vadd.f32 %v3621, %v3661
    %v3663 = vpop.f32.mrb[0].mxu0
    %v3664 = vadd.f32 %v3623, %v3663
    %v3665 = vpop.f32.mrb[0].mxu0
    %v3666 = vpop.f32.mrb[0].mxu0
    %3667 = vdwg.mxu0
    %3668 = vmatprep.subr.bf16.mxu0 %v3226
    %3669 = vmatpush1.bf16.msra.mxu0 %v3225
    %3670 = vmatprep.subr.bf16.mxu0 %v3230
    %3671 = vmatpush1.bf16.msra.mxu0 %v3229
    %3672 = vmatprep.subr.bf16.mxu0 %v3234
    %3673 = vmatpush1.bf16.msra.mxu0 %v3233
    %3674 = vmatprep.subr.bf16.mxu0 %v3238
    %3675 = vmatpush1.bf16.msra.mxu0 %v3237
    %3676 = vmatprep.subr.bf16.mxu0 %v3242
    %3677 = vmatpush1.bf16.msra.mxu0 %v3241
    %3678 = vmatprep.subr.bf16.mxu0 %v3246
    %3679 = vmatpush1.bf16.msra.mxu0 %v3245
    %3680 = vmatprep.subr.bf16.mxu0 %v3250
    %3681 = vmatpush1.bf16.msra.mxu0 %v3249
    %3682 = vmatprep.subr.bf16.mxu0 %v3254
    %3683 = vmatpush1.bf16.msra.mxu0 %v3253
    %3684 = vmatprep.subr.bf16.mxu0 %v3258
    %3685 = vmatpush1.bf16.msra.mxu0 %v3257
    %3686 = vmatprep.subr.bf16.mxu0 %v3262
    %3687 = vmatpush1.bf16.msra.mxu0 %v3261
    %3688 = vmatprep.subr.bf16.mxu0 %v3266
    %3689 = vmatpush1.bf16.msra.mxu0 %v3265
    %3690 = vmatprep.subr.bf16.mxu0 %v3270
    %3691 = vmatpush1.bf16.msra.mxu0 %v3269
    %3692 = vmatprep.subr.bf16.mxu0 %v3274
    %3693 = vmatpush1.bf16.msra.mxu0 %v3273
    %3694 = vmatprep.subr.bf16.mxu0 %v3278
    %3695 = vmatpush1.bf16.msra.mxu0 %v3277
    %3696 = vmatprep.subr.bf16.mxu0 %v3282
    %3697 = vmatpush1.bf16.msra.mxu0 %v3281
    %3698 = vmatprep.subr.bf16.mxu0 %v3286
    %3699 = vmatpush1.bf16.msra.mxu0 %v3285
    %3700 = vmatprep.mubr.bf16.mxu0 %v1986
    %3701 = vmatmul.mubr.bf16.gmra.mrb[0].mxu0 %v1985
    %v3702 = vpop.f32.mrb[0].mxu0
    %v3703 = vadd.f32 %v3662, %v3702
    %v3704 = vpop.f32.mrb[0].mxu0
    %v3705 = vadd.f32 %v3664, %v3704
    %v3706 = vpop.f32.mrb[0].mxu0
    %v3707 = vpop.f32.mrb[0].mxu0
    %3708 = vdwg.mxu0
    %3709 = vmatprep.subr.bf16.mxu0 %v3036
    %3710 = vmatpush1.bf16.msra.mxu0 %v3035
    %3711 = vmatprep.subr.bf16.mxu0 %v3040
    %3712 = vmatpush1.bf16.msra.mxu0 %v3039
    %3713 = vmatprep.subr.bf16.mxu0 %v3044
    %3714 = vmatpush1.bf16.msra.mxu0 %v3043
    %3715 = vmatprep.subr.bf16.mxu0 %v3048
    %3716 = vmatpush1.bf16.msra.mxu0 %v3047
    %3717 = vmatprep.subr.bf16.mxu0 %v3052
    %3718 = vmatpush1.bf16.msra.mxu0 %v3051
    %3719 = vmatprep.subr.bf16.mxu0 %v3056
    %3720 = vmatpush1.bf16.msra.mxu0 %v3055
    %3721 = vmatprep.subr.bf16.mxu0 %v3060
    %3722 = vmatpush1.bf16.msra.mxu0 %v3059
    %3723 = vmatprep.subr.bf16.mxu0 %v3064
    %3724 = vmatpush1.bf16.msra.mxu0 %v3063
    %3725 = vmatprep.subr.bf16.mxu0 %v3068
    %3726 = vmatpush1.bf16.msra.mxu0 %v3067
    %3727 = vmatprep.subr.bf16.mxu0 %v3072
    %3728 = vmatpush1.bf16.msra.mxu0 %v3071
    %3729 = vmatprep.subr.bf16.mxu0 %v3076
    %3730 = vmatpush1.bf16.msra.mxu0 %v3075
    %3731 = vmatprep.subr.bf16.mxu0 %v3080
    %3732 = vmatpush1.bf16.msra.mxu0 %v3079
    %3733 = vmatprep.subr.bf16.mxu0 %v3084
    %3734 = vmatpush1.bf16.msra.mxu0 %v3083
    %3735 = vmatprep.subr.bf16.mxu0 %v3088
    %3736 = vmatpush1.bf16.msra.mxu0 %v3087
    %3737 = vmatprep.subr.bf16.mxu0 %v3092
    %3738 = vmatpush1.bf16.msra.mxu0 %v3091
    %3739 = vmatprep.subr.bf16.mxu0 %v3096
    %3740 = vmatpush1.bf16.msra.mxu0 %v3095
    %3741 = vmatprep.mubr.bf16.mxu0 %v1980
    %3742 = vmatmul.mubr.bf16.gmra.mrb[0].mxu0 %v1979
    %v3743 = vpop.f32.mrb[0].mxu0
    %v3744 = vadd.f32 %v2256, %v3743
    %v3745 = vpop.f32.mrb[0].mxu0
    %v3746 = vadd.f32 %v2260, %v3745
    %v3747 = vpop.f32.mrb[0].mxu0
    %v3748 = vpop.f32.mrb[0].mxu0
    %3749 = vdwg.mxu0
    %3750 = vmatprep.subr.bf16.mxu0 %v3100
    %3751 = vmatpush1.bf16.msra.mxu0 %v3099
    %3752 = vmatprep.subr.bf16.mxu0 %v3104
    %3753 = vmatpush1.bf16.msra.mxu0 %v3103
    %3754 = vmatprep.subr.bf16.mxu0 %v3108
    %3755 = vmatpush1.bf16.msra.mxu0 %v3107
    %3756 = vmatprep.subr.bf16.mxu0 %v3112
    %3757 = vmatpush1.bf16.msra.mxu0 %v3111
    %3758 = vmatprep.subr.bf16.mxu0 %v3116
    %3759 = vmatpush1.bf16.msra.mxu0 %v3115
    %3760 = vmatprep.subr.bf16.mxu0 %v3120
    %3761 = vmatpush1.bf16.msra.mxu0 %v3119
    %3762 = vmatprep.subr.bf16.mxu0 %v3124
    %3763 = vmatpush1.bf16.msra.mxu0 %v3123
    %3764 = vmatprep.subr.bf16.mxu0 %v3128
    %3765 = vmatpush1.bf16.msra.mxu0 %v3127
    %3766 = vmatprep.subr.bf16.mxu0 %v3132
    %3767 = vmatpush1.bf16.msra.mxu0 %v3131
    %3768 = vmatprep.subr.bf16.mxu0 %v3136
    %3769 = vmatpush1.bf16.msra.mxu0 %v3135
    %3770 = vmatprep.subr.bf16.mxu0 %v3140
    %3771 = vmatpush1.bf16.msra.mxu0 %v3139
    %3772 = vmatprep.subr.bf16.mxu0 %v3144
    %3773 = vmatpush1.bf16.msra.mxu0 %v3143
    %3774 = vmatprep.subr.bf16.mxu0 %v3148
    %3775 = vmatpush1.bf16.msra.mxu0 %v3147
    %3776 = vmatprep.subr.bf16.mxu0 %v3152
    %3777 = vmatpush1.bf16.msra.mxu0 %v3151
    %3778 = vmatprep.subr.bf16.mxu0 %v3156
    %3779 = vmatpush1.bf16.msra.mxu0 %v3155
    %3780 = vmatprep.subr.bf16.mxu0 %v3160
    %3781 = vmatpush1.bf16.msra.mxu0 %v3159
    %3782 = vmatprep.mubr.bf16.mxu0 %v1982
    %3783 = vmatmul.mubr.bf16.gmra.mrb[0].mxu0 %v1981
    %v3784 = vpop.f32.mrb[0].mxu0
    %v3785 = vadd.f32 %v3744, %v3784
    %v3786 = vpop.f32.mrb[0].mxu0
    %v3787 = vadd.f32 %v3746, %v3786
    %v3788 = vpop.f32.mrb[0].mxu0
    %v3789 = vpop.f32.mrb[0].mxu0
    %3790 = vdwg.mxu0
    %3791 = vmatprep.subr.bf16.mxu0 %v3164
    %3792 = vmatpush1.bf16.msra.mxu0 %v3163
    %3793 = vmatprep.subr.bf16.mxu0 %v3168
    %3794 = vmatpush1.bf16.msra.mxu0 %v3167
    %3795 = vmatprep.subr.bf16.mxu0 %v3172
    %3796 = vmatpush1.bf16.msra.mxu0 %v3171
    %3797 = vmatprep.subr.bf16.mxu0 %v3176
    %3798 = vmatpush1.bf16.msra.mxu0 %v3175
    %3799 = vmatprep.subr.bf16.mxu0 %v3180
    %3800 = vmatpush1.bf16.msra.mxu0 %v3179
    %3801 = vmatprep.subr.bf16.mxu0 %v3184
    %3802 = vmatpush1.bf16.msra.mxu0 %v3183
    %3803 = vmatprep.subr.bf16.mxu0 %v3188
    %3804 = vmatpush1.bf16.msra.mxu0 %v3187
    %3805 = vmatprep.subr.bf16.mxu0 %v3192
    %3806 = vmatpush1.bf16.msra.mxu0 %v3191
    %3807 = vmatprep.subr.bf16.mxu0 %v3196
    %3808 = vmatpush1.bf16.msra.mxu0 %v3195
    %3809 = vmatprep.subr.bf16.mxu0 %v3200
    %3810 = vmatpush1.bf16.msra.mxu0 %v3199
    %3811 = vmatprep.subr.bf16.mxu0 %v3204
    %3812 = vmatpush1.bf16.msra.mxu0 %v3203
    %3813 = vmatprep.subr.bf16.mxu0 %v3208
    %3814 = vmatpush1.bf16.msra.mxu0 %v3207
    %3815 = vmatprep.subr.bf16.mxu0 %v3212
    %3816 = vmatpush1.bf16.msra.mxu0 %v3211
    %3817 = vmatprep.subr.bf16.mxu0 %v3216
    %3818 = vmatpush1.bf16.msra.mxu0 %v3215
    %3819 = vmatprep.subr.bf16.mxu0 %v3220
    %3820 = vmatpush1.bf16.msra.mxu0 %v3219
    %3821 = vmatprep.subr.bf16.mxu0 %v3224
    %3822 = vmatpush1.bf16.msra.mxu0 %v3223
    %3823 = vmatprep.mubr.bf16.mxu0 %v1984
    %3824 = vmatmul.mubr.bf16.gmra.mrb[0].mxu0 %v1983
    %v3825 = vpop.f32.mrb[0].mxu0
    %v3826 = vadd.f32 %v3785, %v3825
    %v3827 = vpop.f32.mrb[0].mxu0
    %v3828 = vadd.f32 %v3787, %v3827
    %v3829 = vpop.f32.mrb[0].mxu0
    %v3830 = vpop.f32.mrb[0].mxu0
    %3831 = vdwg.mxu0
    %3832 = vmatprep.subr.bf16.mxu0 %v3228
    %3833 = vmatpush1.bf16.msra.mxu0 %v3227
    %3834 = vmatprep.subr.bf16.mxu0 %v3232
    %3835 = vmatpush1.bf16.msra.mxu0 %v3231
    %3836 = vmatprep.subr.bf16.mxu0 %v3236
    %3837 = vmatpush1.bf16.msra.mxu0 %v3235
    %3838 = vmatprep.subr.bf16.mxu0 %v3240
    %3839 = vmatpush1.bf16.msra.mxu0 %v3239
    %3840 = vmatprep.subr.bf16.mxu0 %v3244
    %3841 = vmatpush1.bf16.msra.mxu0 %v3243
    %3842 = vmatprep.subr.bf16.mxu0 %v3248
    %3843 = vmatpush1.bf16.msra.mxu0 %v3247
    %3844 = vmatprep.subr.bf16.mxu0 %v3252
    %3845 = vmatpush1.bf16.msra.mxu0 %v3251
    %3846 = vmatprep.subr.bf16.mxu0 %v3256
    %3847 = vmatpush1.bf16.msra.mxu0 %v3255
    %3848 = vmatprep.subr.bf16.mxu0 %v3260
    %3849 = vmatpush1.bf16.msra.mxu0 %v3259
    %3850 = vmatprep.subr.bf16.mxu0 %v3264
    %3851 = vmatpush1.bf16.msra.mxu0 %v3263
    %3852 = vmatprep.subr.bf16.mxu0 %v3268
    %3853 = vmatpush1.bf16.msra.mxu0 %v3267
    %3854 = vmatprep.subr.bf16.mxu0 %v3272
    %3855 = vmatpush1.bf16.msra.mxu0 %v3271
    %3856 = vmatprep.subr.bf16.mxu0 %v3276
    %3857 = vmatpush1.bf16.msra.mxu0 %v3275
    %3858 = vmatprep.subr.bf16.mxu0 %v3280
    %3859 = vmatpush1.bf16.msra.mxu0 %v3279
    %3860 = vmatprep.subr.bf16.mxu0 %v3284
    %3861 = vmatpush1.bf16.msra.mxu0 %v3283
    %3862 = vmatprep.subr.bf16.mxu0 %v3288
    %3863 = vmatpush1.bf16.msra.mxu0 %v3287
    %3864 = vmatprep.mubr.bf16.mxu0 %v1986
    %3865 = vmatmul.mubr.bf16.gmra.mrb[0].mxu0 %v1985
    %v3866 = vpop.f32.mrb[0].mxu0
    %v3867 = vadd.f32 %v3826, %v3866
    %v3868 = vpop.f32.mrb[0].mxu0
    %v3869 = vadd.f32 %v3828, %v3868
    %v3870 = vpop.f32.mrb[0].mxu0
    %v3871 = vpop.f32.mrb[0].mxu0
    %3872 = vdwg.mxu0
    %v3873 = vmax.f32 %v3703, 0.0
    %v3874 = vmax.f32 %v3705, 0.0
    %v3875 = vmax.f32 %v3867, 0.0
    %v3876 = vmax.f32 %v3869, 0.0
    %v3877 = vpack.c.bf16 %v3873, %v3873
    %v3878 = vpack.c.bf16 %v3874, %v3874
    %v3879 = vpack.c.bf16 %v3875, %v3875
    %v3880 = vpack.c.bf16 %v3876, %v3876
    %v3885 = vunpack.c.l.b16 %v3877
    %v3886 = vunpack.c.l.b16 %v3878
    %v3887 = vunpack.c.l.b16 %v3879
    %v3888 = vunpack.c.l.b16 %v3880
    %v3889 = vpack.c.b16 %v3886, %v3885
    %v3890 = vpack.c.b16 %v3888, %v3887
    %3893 = vst [vmem:[#allocation7] sm:$0xff] %v3889
    %3894 = vst [vmem:[#allocation7 + $0x8] sm:$0xff] %v3890
    // Predicated region
    $region30: #{encoder_forward.1} parent=1 // pred_check
      _
    $region31: #{encoder_forward.1} parent=1 // pred_check_branch
      %3896 = sbr.rel (0) target = $region33
    $region32: #{encoder_forward.1} parent=1 // pred_region
      %s3898 = ssub.s32 256, 256
      %3899 = vsyncadd [#allocation4], %s3898
      %s3901 = sshll.u32 [#allocation7], 4
      %s3902 = int_to_ptr.vmem [resolvable:$true] %s3901
      %3904 = dma.vmem_to_hbm [thread:$0]  %s3902, 256, %s5, [#allocation4]
    $region33: #{encoder_forward.1} parent=1 // pred_fallthru
      _
    // Predicated region
    $region34: #{encoder_forward.1} parent=1 // pred_check
      _
    $region35: #{encoder_forward.1} parent=1 // pred_check_branch
      %3906 = sbr.rel (0) target = $region37
    $region36: #{encoder_forward.1} parent=1 // pred_region
      %3907 = dma.done [#allocation4], 256
    $region37: #{encoder_forward.1} parent=1 // pred_fallthru
      _
    %3908 = vsyncpa [#allocation3], 1
    %3909 = vsyncpa [#allocation6], 1
    %3910 = vsyncpa [#allocation4], 1

</llo_original>
